<compile_context>
chip_gen: v5e
topology: v5e:2x2
jax: 0.10.0
libtpu: 0.0.40
codegen_flags: <defaults>
</compile_context>

<pallas_src>
import functools

import jax
import jax.numpy as jnp
from jax.experimental import pallas as pl
from jax.experimental.pallas import tpu as pltpu


# ----------------------------------------------------------------------------
# Pallas kernels
# ----------------------------------------------------------------------------
def _conv_bn_relu_pool_kernel(p_ref, w_ref, s_ref, o_ref, *, n_pool):
    """Fused conv(im2col matmul) + BN + ReLU + 2x2 max-pool for one image.

    p_ref: (1, 4*n_pool, Kp) bf16 im2col patches; rows grouped into the four
           2x2-pool quadrants, each quadrant ordered (ho, wo) row-major.
    w_ref: (Kp, Cp) bf16 weights with BN scale folded in, Cp = channels padded
           to a multiple of 128 lanes.
    s_ref: (1, Cp)  f32 folded conv-bias / BN shift.
    o_ref: (1, n_pool, Cp) f32 pooled output (rows = (ho, wo), lanes = channels).
    """
    p = p_ref[0]                       # (4*n_pool, Kp)
    w = w_ref[...]                     # (Kp, Cp)
    # conv output for pool-quadrant 0, then running max with the other three
    acc = jnp.dot(p[0:n_pool, :], w, preferred_element_type=jnp.float32)
    for q in range(1, 4):
        y = jnp.dot(p[q * n_pool:(q + 1) * n_pool, :], w,
                    preferred_element_type=jnp.float32)
        acc = jnp.maximum(acc, y)
    # max-pool commutes with the monotone (+shift, ReLU) epilogue, so the
    # epilogue only touches the 4x-smaller pooled tile.  Full 128-lane store.
    o_ref[0] = jnp.maximum(acc + s_ref[...], 0.0)


def _fc_kernel(x_ref, w_ref, b_ref, o_ref):
    y = jnp.dot(x_ref[...], w_ref[...], preferred_element_type=jnp.float32)
    o_ref[...] = y + b_ref[...]


# ----------------------------------------------------------------------------
# Layers (glue + kernel calls)
# ----------------------------------------------------------------------------
def conv_bn_relu_pool(x_nhwc, w_oikk, bias, gamma, beta, mean, var, eps=1e-5):
    """3x3 / pad=1 conv + BatchNorm (eval stats) + ReLU + 2x2/2 max-pool.

    Returns (B, Ho*Wo, Cp) float32 with rows in (ho, wo) order; the true Cout
    channels sit in the first lanes, the rest are zero padding (lane density).
    """
    B, H, W, Cin = x_nhwc.shape
    Cout = w_oikk.shape[0]
    Ho, Wo = H // 2, W // 2
    n_pool = Ho * Wo
    K = 9 * Cin
    Kp = ((K + 15) // 16) * 16            # bf16 sublane alignment (27 -> 32)
    Cp = ((Cout + 127) // 128) * 128      # lane-dense output channels

    # --- glue: im2col, rows ordered by 2x2-pool quadrant --------------------
    xp = jnp.pad(x_nhwc, ((0, 0), (1, 1), (1, 1), (0, 0)))
    patches = jnp.concatenate(
        [xp[:, i:i + H, j:j + W, :] for i in range(3) for j in range(3)],
        axis=-1)                                          # (B, H, W, 9*Cin)
    patches = patches.reshape(B, Ho, 2, Wo, 2, K)
    patches = patches.transpose(0, 2, 4, 1, 3, 5)         # (B, ph, pw, ho, wo, K)
    patches = patches.reshape(B, 4 * n_pool, K)
    if Kp != K:
        patches = jnp.pad(patches, ((0, 0), (0, 0), (0, Kp - K)))
    patches = patches.astype(jnp.bfloat16)

    # --- glue: fold BN scale into weights, bias/mean/beta into one shift ----
    scale = gamma / jnp.sqrt(var + eps)                                # (Cout,)
    wm = jnp.transpose(w_oikk, (2, 3, 1, 0)).reshape(K, Cout) * scale[None, :]
    wm = jnp.pad(wm, ((0, Kp - K), (0, Cp - Cout))).astype(jnp.bfloat16)
    shift = ((bias - mean) * scale + beta).astype(jnp.float32)
    shift = jnp.pad(shift, (0, Cp - Cout))[None, :]                    # (1, Cp)

    return pl.pallas_call(
        functools.partial(_conv_bn_relu_pool_kernel, n_pool=n_pool),
        out_shape=jax.ShapeDtypeStruct((B, n_pool, Cp), jnp.float32),
        grid_spec=pltpu.PrefetchScalarGridSpec(
            num_scalar_prefetch=0,
            grid=(B,),                                    # one image per step
            in_specs=[
                pl.BlockSpec((1, 4 * n_pool, Kp), lambda b: (b, 0, 0)),
                pl.BlockSpec((Kp, Cp), lambda b: (0, 0)),
                pl.BlockSpec((1, Cp), lambda b: (0, 0)),
            ],
            out_specs=pl.BlockSpec((1, n_pool, Cp), lambda b: (b, 0, 0)),
        ),
        compiler_params=pltpu.CompilerParams(
            dimension_semantics=("parallel",)),
    )(patches, wm, shift)


def fc_layer(x_feat, w_fc_nhwc, b_fc):
    """logits = x_feat @ w.T + b ; x_feat (B, F) in (h, w, c) feature order."""
    B, F = x_feat.shape
    NC = w_fc_nhwc.shape[0]
    return pl.pallas_call(
        _fc_kernel,
        out_shape=jax.ShapeDtypeStruct((B, NC), jnp.float32),
        grid_spec=pltpu.PrefetchScalarGridSpec(
            num_scalar_prefetch=0,
            grid=(1,),
            in_specs=[
                pl.BlockSpec((B, F), lambda i: (0, 0)),
                pl.BlockSpec((F, NC), lambda i: (0, 0)),
                pl.BlockSpec((1, NC), lambda i: (0, 0)),
            ],
            out_specs=pl.BlockSpec((B, NC), lambda i: (0, 0)),
        ),
        compiler_params=pltpu.CompilerParams(
            dimension_semantics=("arbitrary",)),
    )(x_feat.astype(jnp.bfloat16),
      jnp.transpose(w_fc_nhwc).astype(jnp.bfloat16),
      b_fc.astype(jnp.float32)[None, :])


def simple_cnn_forward(x_nchw, params):
    x = jnp.transpose(x_nchw, (0, 2, 3, 1))               # NCHW -> NHWC once
    for name in ("layer1", "layer2", "layer3"):
        p = params[name]
        B, H, W, _ = x.shape
        Cout = p["conv_w"].shape[0]
        y = conv_bn_relu_pool(x, p["conv_w"], p["conv_b"], p["bn_gamma"],
                              p["bn_beta"], p["bn_mean"], p["bn_var"])
        # drop the lane padding; rows are already in (ho, wo) NHWC order
        x = y[:, :, :Cout].reshape(B, H // 2, W // 2, Cout)
    B, Hf, Wf, Cf = x.shape
    x_feat = x.reshape(B, Hf * Wf * Cf)                    # (h, w, c) flatten
    # permute the PyTorch (c, h, w)-ordered FC columns to (h, w, c): keeps the
    # activation in its lane-dense layout (no runtime activation transpose).
    w_fc = params["fc"]["w"]                               # (NC, C*H*W)
    NC = w_fc.shape[0]
    w_fc_nhwc = jnp.transpose(w_fc.reshape(NC, Cf, Hf, Wf),
                              (0, 2, 3, 1)).reshape(NC, Hf * Wf * Cf)
    return fc_layer(x_feat, w_fc_nhwc, params["fc"]["b"])


# ----------------------------------------------------------------------------
# Deterministic parameter init (synthetic; matches nn.Module shapes)
# ----------------------------------------------------------------------------
def init_params(key, num_classes=10):
    params = {}
    cfgs = [("layer1", 3, 16), ("layer2", 16, 32), ("layer3", 32, 64)]
    for name, cin, cout in cfgs:
        key, k1, k2, k3, k4, k5, k6 = jax.random.split(key, 7)
        fan_in = cin * 9
        params[name] = {
            "conv_w": jax.random.normal(k1, (cout, cin, 3, 3), jnp.float32)
            / jnp.sqrt(fan_in),
            "conv_b": 0.01 * jax.random.normal(k2, (cout,), jnp.float32),
            "bn_gamma": 1.0 + 0.1 * jax.random.normal(k3, (cout,), jnp.float32),
            "bn_beta": 0.1 * jax.random.normal(k4, (cout,), jnp.float32),
            "bn_mean": 0.05 * jax.random.normal(k5, (cout,), jnp.float32),
            "bn_var": 0.5 + jax.random.uniform(k6, (cout,), jnp.float32),
        }
    key, k1, k2 = jax.random.split(key, 3)
    in_f = 64 * 4 * 4
    params["fc"] = {
        "w": jax.random.normal(k1, (num_classes, in_f), jnp.float32) / jnp.sqrt(in_f),
        "b": 0.01 * jax.random.normal(k2, (num_classes,), jnp.float32),
    }
    return params


def reference_forward(x_nchw, params, eps=1e-5):
    """Pure-XLA float32 reference matching the PyTorch module in eval mode."""
    x = x_nchw
    for name in ("layer1", "layer2", "layer3"):
        p = params[name]
        x = jax.lax.conv_general_dilated(
            x, p["conv_w"], window_strides=(1, 1), padding=((1, 1), (1, 1)),
            dimension_numbers=("NCHW", "OIHW", "NCHW"),
            precision=jax.lax.Precision.HIGHEST)
        x = x + p["conv_b"][None, :, None, None]
        scale = p["bn_gamma"] / jnp.sqrt(p["bn_var"] + eps)
        x = (x - p["bn_mean"][None, :, None, None]) * scale[None, :, None, None]
        x = x + p["bn_beta"][None, :, None, None]
        x = jnp.maximum(x, 0.0)
        x = jax.lax.reduce_window(x, -jnp.inf, jax.lax.max,
                                  (1, 1, 2, 2), (1, 1, 2, 2), "VALID")
    x = x.reshape(x.shape[0], -1)
    return jnp.dot(x, params["fc"]["w"].T,
                   precision=jax.lax.Precision.HIGHEST) + params["fc"]["b"][None, :]


if __name__ == "__main__":
    key = jax.random.PRNGKey(0)
    kx, kp = jax.random.split(key)
    # CIFAR-10 style input: the fc layer (64*4*4) requires 32x32 spatial.
    batch, num_classes = 2, 10
    x = jax.random.normal(kx, (batch, 3, 32, 32), jnp.float32)  # NCHW as in PyTorch
    params = init_params(kp, num_classes)

    logits = jax.jit(simple_cnn_forward)(x, params)
    jax.block_until_ready(logits)
    assert logits.shape == (batch, num_classes)
    assert logits.dtype == jnp.float32

    # numerical sanity check vs a float32 XLA reference (the kernels use bf16
    # MXU inputs with f32 accumulation, hence the loose tolerance)
    ref = reference_forward(x, params)
    max_err = float(jnp.max(jnp.abs(logits - ref)))
    assert max_err < 0.25, f"max |logits - ref| = {max_err}"
    print("KERNEL_OK")
</pallas_src>

<mosaic_0001>
module attributes {stable_mosaic.version = 11 : i64} {
  func.func @_conv_bn_relu_pool_kernel(%arg0: i32, %arg1: memref<1x1024x32xbf16, #tpu.memory_space<vmem>>, %arg2: memref<32x128xbf16, #tpu.memory_space<vmem>>, %arg3: memref<1x128xf32, #tpu.memory_space<vmem>>, %arg4: memref<1x256x128xf32, #tpu.memory_space<vmem>>) attributes {dimension_semantics = [#tpu.dimension_semantics<parallel>], iteration_bounds = array<i64: 2>, scalar_prefetch = 0 : i64, scratch_operands = 0 : i64, tpu.core_type = #tpu.core_type<tc>, window_params = [{transform_indices = @transform_0, window_bounds = array<i64: 1, 1024, 32>}, {pipeline_mode = #tpu.pipeline_mode<synchronous>, transform_indices = @transform_1, window_bounds = array<i64: 32, 128>}, {pipeline_mode = #tpu.pipeline_mode<synchronous>, transform_indices = @transform_2, window_bounds = array<i64: 1, 128>}, {transform_indices = @transform_3, window_bounds = array<i64: 1, 256, 128>}]} {
    %c0 = arith.constant 0 : index
    %c0_0 = arith.constant 0 : index
    %c0_1 = arith.constant 0 : index
    %0 = vector.load %arg1[%c0, %c0_0, %c0_1] : memref<1x1024x32xbf16, #tpu.memory_space<vmem>>, vector<1x1024x32xbf16>
    %1 = vector.shape_cast %0 : vector<1x1024x32xbf16> to vector<1024x32xbf16>
    %c0_2 = arith.constant 0 : index
    %c0_3 = arith.constant 0 : index
    %2 = vector.load %arg2[%c0_2, %c0_3] : memref<32x128xbf16, #tpu.memory_space<vmem>>, vector<32x128xbf16>
    %3 = vector.extract_strided_slice %1 {offsets = [0, 0], sizes = [256, 32], strides = [1, 1]} : vector<1024x32xbf16> to vector<256x32xbf16>
    %cst = arith.constant dense<0.000000e+00> : vector<256x128xf32>
    %4 = tpu.matmul %3, %2, %cst {dimension_numbers = #tpu.dot_dimension_numbers<[1], [0], [0], [1], [0, 0, 1, 1], [], []>} : vector<256x32xbf16>, vector<32x128xbf16>, vector<256x128xf32> -> vector<256x128xf32>
    %5 = vector.extract_strided_slice %1 {offsets = [256, 0], sizes = [256, 32], strides = [1, 1]} : vector<1024x32xbf16> to vector<256x32xbf16>
    %cst_4 = arith.constant dense<0.000000e+00> : vector<256x128xf32>
    %6 = tpu.matmul %5, %2, %cst_4 {dimension_numbers = #tpu.dot_dimension_numbers<[1], [0], [0], [1], [0, 0, 1, 1], [], []>} : vector<256x32xbf16>, vector<32x128xbf16>, vector<256x128xf32> -> vector<256x128xf32>
    %7 = arith.maximumf %4, %6 : vector<256x128xf32>
    %8 = vector.extract_strided_slice %1 {offsets = [512, 0], sizes = [256, 32], strides = [1, 1]} : vector<1024x32xbf16> to vector<256x32xbf16>
    %cst_5 = arith.constant dense<0.000000e+00> : vector<256x128xf32>
    %9 = tpu.matmul %8, %2, %cst_5 {dimension_numbers = #tpu.dot_dimension_numbers<[1], [0], [0], [1], [0, 0, 1, 1], [], []>} : vector<256x32xbf16>, vector<32x128xbf16>, vector<256x128xf32> -> vector<256x128xf32>
    %10 = arith.maximumf %7, %9 : vector<256x128xf32>
    %11 = vector.extract_strided_slice %1 {offsets = [768, 0], sizes = [256, 32], strides = [1, 1]} : vector<1024x32xbf16> to vector<256x32xbf16>
    %cst_6 = arith.constant dense<0.000000e+00> : vector<256x128xf32>
    %12 = tpu.matmul %11, %2, %cst_6 {dimension_numbers = #tpu.dot_dimension_numbers<[1], [0], [0], [1], [0, 0, 1, 1], [], []>} : vector<256x32xbf16>, vector<32x128xbf16>, vector<256x128xf32> -> vector<256x128xf32>
    %13 = arith.maximumf %10, %12 : vector<256x128xf32>
    %c0_7 = arith.constant 0 : index
    %c0_8 = arith.constant 0 : index
    %14 = vector.load %arg3[%c0_7, %c0_8] : memref<1x128xf32, #tpu.memory_space<vmem>>, vector<1x128xf32>
    %15 = vector.broadcast %14 : vector<1x128xf32> to vector<256x128xf32>
    %16 = arith.addf %13, %15 : vector<256x128xf32>
    %cst_9 = arith.constant 0.000000e+00 : f32
    %17 = vector.broadcast %cst_9 : f32 to vector<256x128xf32>
    %18 = arith.maximumf %16, %17 : vector<256x128xf32>
    %c0_10 = arith.constant 0 : index
    %c0_11 = arith.constant 0 : index
    %c0_12 = arith.constant 0 : index
    %19 = vector.load %arg4[%c0_10, %c0_11, %c0_12] : memref<1x256x128xf32, #tpu.memory_space<vmem>>, vector<1x256x128xf32>
    %20 = vector.shape_cast %19 : vector<1x256x128xf32> to vector<256x128xf32>
    %21 = vector.shape_cast %18 : vector<256x128xf32> to vector<1x256x128xf32>
    tpu.vector_store %arg4[%c0_10, %c0_11, %c0_12], %21 {strides = array<i32>} : memref<1x256x128xf32, #tpu.memory_space<vmem>>, vector<1x256x128xf32>,
    return
  }
  func.func @transform_0(%arg0: i32) -> (i32, i32, i32) {
    %c0_i32 = arith.constant 0 : i32
    %c0_i32_0 = arith.constant 0 : i32
    %c0_i32_1 = arith.constant 0 : i32
    return %arg0, %c0_i32, %c0_i32_0 : i32, i32, i32
  }
  func.func @transform_1(%arg0: i32) -> (i32, i32) {
    %c0_i32 = arith.constant 0 : i32
    %c0_i32_0 = arith.constant 0 : i32
    %c0_i32_1 = arith.constant 0 : i32
    return %c0_i32, %c0_i32_0 : i32, i32
  }
  func.func @transform_2(%arg0: i32) -> (i32, i32) {
    %c0_i32 = arith.constant 0 : i32
    %c0_i32_0 = arith.constant 0 : i32
    %c0_i32_1 = arith.constant 0 : i32
    return %c0_i32, %c0_i32_0 : i32, i32
  }
  func.func @transform_3(%arg0: i32) -> (i32, i32, i32) {
    %c0_i32 = arith.constant 0 : i32
    %c0_i32_0 = arith.constant 0 : i32
    %c0_i32_1 = arith.constant 0 : i32
    return %arg0, %c0_i32, %c0_i32_0 : i32, i32, i32
  }
}

module attributes {stable_mosaic.version = 11 : i64} {
  func.func @_conv_bn_relu_pool_kernel(%arg0: i32, %arg1: memref<1x256x144xbf16, #tpu.memory_space<vmem>>, %arg2: memref<144x128xbf16, #tpu.memory_space<vmem>>, %arg3: memref<1x128xf32, #tpu.memory_space<vmem>>, %arg4: memref<1x64x128xf32, #tpu.memory_space<vmem>>) attributes {dimension_semantics = [#tpu.dimension_semantics<parallel>], iteration_bounds = array<i64: 2>, scalar_prefetch = 0 : i64, scratch_operands = 0 : i64, tpu.core_type = #tpu.core_type<tc>, window_params = [{transform_indices = @transform_0, window_bounds = array<i64: 1, 256, 144>}, {pipeline_mode = #tpu.pipeline_mode<synchronous>, transform_indices = @transform_1, window_bounds = array<i64: 144, 128>}, {pipeline_mode = #tpu.pipeline_mode<synchronous>, transform_indices = @transform_2, window_bounds = array<i64: 1, 128>}, {transform_indices = @transform_3, window_bounds = array<i64: 1, 64, 128>}]} {
    %c0 = arith.constant 0 : index
    %c0_0 = arith.constant 0 : index
    %c0_1 = arith.constant 0 : index
    %0 = vector.load %arg1[%c0, %c0_0, %c0_1] : memref<1x256x144xbf16, #tpu.memory_space<vmem>>, vector<1x256x144xbf16>
    %1 = vector.shape_cast %0 : vector<1x256x144xbf16> to vector<256x144xbf16>
    %c0_2 = arith.constant 0 : index
    %c0_3 = arith.constant 0 : index
    %2 = vector.load %arg2[%c0_2, %c0_3] : memref<144x128xbf16, #tpu.memory_space<vmem>>, vector<144x128xbf16>
    %3 = vector.extract_strided_slice %1 {offsets = [0, 0], sizes = [64, 144], strides = [1, 1]} : vector<256x144xbf16> to vector<64x144xbf16>
    %cst = arith.constant dense<0.000000e+00> : vector<64x128xf32>
    %4 = tpu.matmul %3, %2, %cst {dimension_numbers = #tpu.dot_dimension_numbers<[1], [0], [0], [1], [0, 0, 1, 1], [], []>} : vector<64x144xbf16>, vector<144x128xbf16>, vector<64x128xf32> -> vector<64x128xf32>
    %5 = vector.extract_strided_slice %1 {offsets = [64, 0], sizes = [64, 144], strides = [1, 1]} : vector<256x144xbf16> to vector<64x144xbf16>
    %cst_4 = arith.constant dense<0.000000e+00> : vector<64x128xf32>
    %6 = tpu.matmul %5, %2, %cst_4 {dimension_numbers = #tpu.dot_dimension_numbers<[1], [0], [0], [1], [0, 0, 1, 1], [], []>} : vector<64x144xbf16>, vector<144x128xbf16>, vector<64x128xf32> -> vector<64x128xf32>
    %7 = arith.maximumf %4, %6 : vector<64x128xf32>
    %8 = vector.extract_strided_slice %1 {offsets = [128, 0], sizes = [64, 144], strides = [1, 1]} : vector<256x144xbf16> to vector<64x144xbf16>
    %cst_5 = arith.constant dense<0.000000e+00> : vector<64x128xf32>
    %9 = tpu.matmul %8, %2, %cst_5 {dimension_numbers = #tpu.dot_dimension_numbers<[1], [0], [0], [1], [0, 0, 1, 1], [], []>} : vector<64x144xbf16>, vector<144x128xbf16>, vector<64x128xf32> -> vector<64x128xf32>
    %10 = arith.maximumf %7, %9 : vector<64x128xf32>
    %11 = vector.extract_strided_slice %1 {offsets = [192, 0], sizes = [64, 144], strides = [1, 1]} : vector<256x144xbf16> to vector<64x144xbf16>
    %cst_6 = arith.constant dense<0.000000e+00> : vector<64x128xf32>
    %12 = tpu.matmul %11, %2, %cst_6 {dimension_numbers = #tpu.dot_dimension_numbers<[1], [0], [0], [1], [0, 0, 1, 1], [], []>} : vector<64x144xbf16>, vector<144x128xbf16>, vector<64x128xf32> -> vector<64x128xf32>
    %13 = arith.maximumf %10, %12 : vector<64x128xf32>
    %c0_7 = arith.constant 0 : index
    %c0_8 = arith.constant 0 : index
    %14 = vector.load %arg3[%c0_7, %c0_8] : memref<1x128xf32, #tpu.memory_space<vmem>>, vector<1x128xf32>
    %15 = vector.broadcast %14 : vector<1x128xf32> to vector<64x128xf32>
    %16 = arith.addf %13, %15 : vector<64x128xf32>
    %cst_9 = arith.constant 0.000000e+00 : f32
    %17 = vector.broadcast %cst_9 : f32 to vector<64x128xf32>
    %18 = arith.maximumf %16, %17 : vector<64x128xf32>
    %c0_10 = arith.constant 0 : index
    %c0_11 = arith.constant 0 : index
    %c0_12 = arith.constant 0 : index
    %19 = vector.load %arg4[%c0_10, %c0_11, %c0_12] : memref<1x64x128xf32, #tpu.memory_space<vmem>>, vector<1x64x128xf32>
    %20 = vector.shape_cast %19 : vector<1x64x128xf32> to vector<64x128xf32>
    %21 = vector.shape_cast %18 : vector<64x128xf32> to vector<1x64x128xf32>
    tpu.vector_store %arg4[%c0_10, %c0_11, %c0_12], %21 {strides = array<i32>} : memref<1x64x128xf32, #tpu.memory_space<vmem>>, vector<1x64x128xf32>,
    return
  }
  func.func @transform_0(%arg0: i32) -> (i32, i32, i32) {
    %c0_i32 = arith.constant 0 : i32
    %c0_i32_0 = arith.constant 0 : i32
    %c0_i32_1 = arith.constant 0 : i32
    return %arg0, %c0_i32, %c0_i32_0 : i32, i32, i32
  }
  func.func @transform_1(%arg0: i32) -> (i32, i32) {
    %c0_i32 = arith.constant 0 : i32
    %c0_i32_0 = arith.constant 0 : i32
    %c0_i32_1 = arith.constant 0 : i32
    return %c0_i32, %c0_i32_0 : i32, i32
  }
  func.func @transform_2(%arg0: i32) -> (i32, i32) {
    %c0_i32 = arith.constant 0 : i32
    %c0_i32_0 = arith.constant 0 : i32
    %c0_i32_1 = arith.constant 0 : i32
    return %c0_i32, %c0_i32_0 : i32, i32
  }
  func.func @transform_3(%arg0: i32) -> (i32, i32, i32) {
    %c0_i32 = arith.constant 0 : i32
    %c0_i32_0 = arith.constant 0 : i32
    %c0_i32_1 = arith.constant 0 : i32
    return %arg0, %c0_i32, %c0_i32_0 : i32, i32, i32
  }
}

module attributes {stable_mosaic.version = 11 : i64} {
  func.func @_conv_bn_relu_pool_kernel(%arg0: i32, %arg1: memref<1x64x288xbf16, #tpu.memory_space<vmem>>, %arg2: memref<288x128xbf16, #tpu.memory_space<vmem>>, %arg3: memref<1x128xf32, #tpu.memory_space<vmem>>, %arg4: memref<1x16x128xf32, #tpu.memory_space<vmem>>) attributes {dimension_semantics = [#tpu.dimension_semantics<parallel>], iteration_bounds = array<i64: 2>, scalar_prefetch = 0 : i64, scratch_operands = 0 : i64, tpu.core_type = #tpu.core_type<tc>, window_params = [{transform_indices = @transform_0, window_bounds = array<i64: 1, 64, 288>}, {pipeline_mode = #tpu.pipeline_mode<synchronous>, transform_indices = @transform_1, window_bounds = array<i64: 288, 128>}, {pipeline_mode = #tpu.pipeline_mode<synchronous>, transform_indices = @transform_2, window_bounds = array<i64: 1, 128>}, {transform_indices = @transform_3, window_bounds = array<i64: 1, 16, 128>}]} {
    %c0 = arith.constant 0 : index
    %c0_0 = arith.constant 0 : index
    %c0_1 = arith.constant 0 : index
    %0 = vector.load %arg1[%c0, %c0_0, %c0_1] : memref<1x64x288xbf16, #tpu.memory_space<vmem>>, vector<1x64x288xbf16>
    %1 = vector.shape_cast %0 : vector<1x64x288xbf16> to vector<64x288xbf16>
    %c0_2 = arith.constant 0 : index
    %c0_3 = arith.constant 0 : index
    %2 = vector.load %arg2[%c0_2, %c0_3] : memref<288x128xbf16, #tpu.memory_space<vmem>>, vector<288x128xbf16>
    %3 = vector.extract_strided_slice %1 {offsets = [0, 0], sizes = [16, 288], strides = [1, 1]} : vector<64x288xbf16> to vector<16x288xbf16>
    %cst = arith.constant dense<0.000000e+00> : vector<16x128xf32>
    %4 = tpu.matmul %3, %2, %cst {dimension_numbers = #tpu.dot_dimension_numbers<[1], [0], [0], [1], [0, 0, 1, 1], [], []>} : vector<16x288xbf16>, vector<288x128xbf16>, vector<16x128xf32> -> vector<16x128xf32>
    %5 = vector.extract_strided_slice %1 {offsets = [16, 0], sizes = [16, 288], strides = [1, 1]} : vector<64x288xbf16> to vector<16x288xbf16>
    %cst_4 = arith.constant dense<0.000000e+00> : vector<16x128xf32>
    %6 = tpu.matmul %5, %2, %cst_4 {dimension_numbers = #tpu.dot_dimension_numbers<[1], [0], [0], [1], [0, 0, 1, 1], [], []>} : vector<16x288xbf16>, vector<288x128xbf16>, vector<16x128xf32> -> vector<16x128xf32>
    %7 = arith.maximumf %4, %6 : vector<16x128xf32>
    %8 = vector.extract_strided_slice %1 {offsets = [32, 0], sizes = [16, 288], strides = [1, 1]} : vector<64x288xbf16> to vector<16x288xbf16>
    %cst_5 = arith.constant dense<0.000000e+00> : vector<16x128xf32>
    %9 = tpu.matmul %8, %2, %cst_5 {dimension_numbers = #tpu.dot_dimension_numbers<[1], [0], [0], [1], [0, 0, 1, 1], [], []>} : vector<16x288xbf16>, vector<288x128xbf16>, vector<16x128xf32> -> vector<16x128xf32>
    %10 = arith.maximumf %7, %9 : vector<16x128xf32>
    %11 = vector.extract_strided_slice %1 {offsets = [48, 0], sizes = [16, 288], strides = [1, 1]} : vector<64x288xbf16> to vector<16x288xbf16>
    %cst_6 = arith.constant dense<0.000000e+00> : vector<16x128xf32>
    %12 = tpu.matmul %11, %2, %cst_6 {dimension_numbers = #tpu.dot_dimension_numbers<[1], [0], [0], [1], [0, 0, 1, 1], [], []>} : vector<16x288xbf16>, vector<288x128xbf16>, vector<16x128xf32> -> vector<16x128xf32>
    %13 = arith.maximumf %10, %12 : vector<16x128xf32>
    %c0_7 = arith.constant 0 : index
    %c0_8 = arith.constant 0 : index
    %14 = vector.load %arg3[%c0_7, %c0_8] : memref<1x128xf32, #tpu.memory_space<vmem>>, vector<1x128xf32>
    %15 = vector.broadcast %14 : vector<1x128xf32> to vector<16x128xf32>
    %16 = arith.addf %13, %15 : vector<16x128xf32>
    %cst_9 = arith.constant 0.000000e+00 : f32
    %17 = vector.broadcast %cst_9 : f32 to vector<16x128xf32>
    %18 = arith.maximumf %16, %17 : vector<16x128xf32>
    %c0_10 = arith.constant 0 : index
    %c0_11 = arith.constant 0 : index
    %c0_12 = arith.constant 0 : index
    %19 = vector.load %arg4[%c0_10, %c0_11, %c0_12] : memref<1x16x128xf32, #tpu.memory_space<vmem>>, vector<1x16x128xf32>
    %20 = vector.shape_cast %19 : vector<1x16x128xf32> to vector<16x128xf32>
    %21 = vector.shape_cast %18 : vector<16x128xf32> to vector<1x16x128xf32>
    tpu.vector_store %arg4[%c0_10, %c0_11, %c0_12], %21 {strides = array<i32>} : memref<1x16x128xf32, #tpu.memory_space<vmem>>, vector<1x16x128xf32>,
    return
  }
  func.func @transform_0(%arg0: i32) -> (i32, i32, i32) {
    %c0_i32 = arith.constant 0 : i32
    %c0_i32_0 = arith.constant 0 : i32
    %c0_i32_1 = arith.constant 0 : i32
    return %arg0, %c0_i32, %c0_i32_0 : i32, i32, i32
  }
  func.func @transform_1(%arg0: i32) -> (i32, i32) {
    %c0_i32 = arith.constant 0 : i32
    %c0_i32_0 = arith.constant 0 : i32
    %c0_i32_1 = arith.constant 0 : i32
    return %c0_i32, %c0_i32_0 : i32, i32
  }
  func.func @transform_2(%arg0: i32) -> (i32, i32) {
    %c0_i32 = arith.constant 0 : i32
    %c0_i32_0 = arith.constant 0 : i32
    %c0_i32_1 = arith.constant 0 : i32
    return %c0_i32, %c0_i32_0 : i32, i32
  }
  func.func @transform_3(%arg0: i32) -> (i32, i32, i32) {
    %c0_i32 = arith.constant 0 : i32
    %c0_i32_0 = arith.constant 0 : i32
    %c0_i32_1 = arith.constant 0 : i32
    return %arg0, %c0_i32, %c0_i32_0 : i32, i32, i32
  }
}

module attributes {stable_mosaic.version = 11 : i64} {
  func.func @_fc_kernel(%arg0: i32, %arg1: memref<2x1024xbf16, #tpu.memory_space<vmem>>, %arg2: memref<1024x10xbf16, #tpu.memory_space<vmem>>, %arg3: memref<1x10xf32, #tpu.memory_space<vmem>>, %arg4: memref<2x10xf32, #tpu.memory_space<vmem>>) attributes {dimension_semantics = [#tpu.dimension_semantics<arbitrary>], iteration_bounds = array<i64: 1>, scalar_prefetch = 0 : i64, scratch_operands = 0 : i64, tpu.core_type = #tpu.core_type<tc>, window_params = [{pipeline_mode = #tpu.pipeline_mode<synchronous>, transform_indices = @transform_0, window_bounds = array<i64: 2, 1024>}, {pipeline_mode = #tpu.pipeline_mode<synchronous>, transform_indices = @transform_1, window_bounds = array<i64: 1024, 10>}, {pipeline_mode = #tpu.pipeline_mode<synchronous>, transform_indices = @transform_2, window_bounds = array<i64: 1, 10>}, {pipeline_mode = #tpu.pipeline_mode<synchronous>, transform_indices = @transform_3, window_bounds = array<i64: 2, 10>}]} {
    %c0 = arith.constant 0 : index
    %c0_0 = arith.constant 0 : index
    %0 = vector.load %arg1[%c0, %c0_0] : memref<2x1024xbf16, #tpu.memory_space<vmem>>, vector<2x1024xbf16>
    %c0_1 = arith.constant 0 : index
    %c0_2 = arith.constant 0 : index
    %1 = vector.load %arg2[%c0_1, %c0_2] : memref<1024x10xbf16, #tpu.memory_space<vmem>>, vector<1024x10xbf16>
    %cst = arith.constant dense<0.000000e+00> : vector<2x10xf32>
    %2 = tpu.matmul %0, %1, %cst {dimension_numbers = #tpu.dot_dimension_numbers<[1], [0], [0], [1], [0, 0, 1, 1], [], []>} : vector<2x1024xbf16>, vector<1024x10xbf16>, vector<2x10xf32> -> vector<2x10xf32>
    %c0_3 = arith.constant 0 : index
    %c0_4 = arith.constant 0 : index
    %3 = vector.load %arg3[%c0_3, %c0_4] : memref<1x10xf32, #tpu.memory_space<vmem>>, vector<1x10xf32>
    %4 = vector.broadcast %3 : vector<1x10xf32> to vector<2x10xf32>
    %5 = arith.addf %2, %4 : vector<2x10xf32>
    %c0_5 = arith.constant 0 : index
    %c0_6 = arith.constant 0 : index
    %6 = vector.load %arg4[%c0_5, %c0_6] : memref<2x10xf32, #tpu.memory_space<vmem>>, vector<2x10xf32>
    tpu.vector_store %arg4[%c0_5, %c0_6], %5 {strides = array<i32>} : memref<2x10xf32, #tpu.memory_space<vmem>>, vector<2x10xf32>,
    return
  }
  func.func @transform_0(%arg0: i32) -> (i32, i32) {
    %c0_i32 = arith.constant 0 : i32
    %c0_i32_0 = arith.constant 0 : i32
    %c0_i32_1 = arith.constant 0 : i32
    return %c0_i32, %c0_i32_0 : i32, i32
  }
  func.func @transform_1(%arg0: i32) -> (i32, i32) {
    %c0_i32 = arith.constant 0 : i32
    %c0_i32_0 = arith.constant 0 : i32
    %c0_i32_1 = arith.constant 0 : i32
    return %c0_i32, %c0_i32_0 : i32, i32
  }
  func.func @transform_2(%arg0: i32) -> (i32, i32) {
    %c0_i32 = arith.constant 0 : i32
    %c0_i32_0 = arith.constant 0 : i32
    %c0_i32_1 = arith.constant 0 : i32
    return %c0_i32, %c0_i32_0 : i32, i32
  }
  func.func @transform_3(%arg0: i32) -> (i32, i32) {
    %c0_i32 = arith.constant 0 : i32
    %c0_i32_0 = arith.constant 0 : i32
    %c0_i32_1 = arith.constant 0 : i32
    return %c0_i32, %c0_i32_0 : i32, i32
  }
}

</mosaic_0001>

<llo_original>
// kernel: simple_cnn_forward.4
$region0: #{simple_cnn_forward.4}
  #allocation0 [shape = 'u32[]', space=smem, size = 0x4, offset = 0x4, fixed_abs, tag = 'smem constant byte address 0x4 - core index']
  #allocation1 [shape = 'u32[72,128]{1,0:T(1,128)}', space=vmem, size = 0x9000, scoped, tag = 'internal scratch']
  %s0 = inlined_call_operand.vmem [shape: bf16[2,1024,32], index: 0, kind: input, shape index: {}]
  %s1 = inlined_call_operand.vmem [shape: bf16[32,128], index: 1, kind: input, shape index: {}]
  %s2 = inlined_call_operand.vmem [shape: f32[1,128], index: 2, kind: input, shape index: {}]
  %s3 = inlined_call_operand.vmem [shape: f32[2,256,128], index: 3, kind: output, shape index: {}]
  %s4 = sld [smem:[#allocation0]]
  $region45: #{simple_cnn_forward.4} parent=0
    _
  %s6 = ssub.s32 1, %s4
  %s7 = scalar_select 0, %s6, %s4
  loop: start=0, step=1, limit=4
  $region2: #{simple_cnn_forward.4} parent=0 // loop_pre_header
    _
  $region3: #{simple_cnn_forward.4} parent=0 // loop_header
    %s9 = sphi 0, %s13
    %p10 = scmp.ge.s32.totalorder %s9, 4
    %s19 = sphi 0, %s21
    %s22 = sphi 0, %s19
    %s23 = sphi 0, %s22
    %s39 = sphi 0, %s23
    %s43 = sphi 0, %s43
    %s45 = sphi 0, %s43
    %s46 = sphi 0, %s45
    %s60 = sphi 0, %s46
    %s64 = sphi 0, %s64
    %s66 = sphi 0, %s64
    %s67 = sphi 0, %s66
    %s81 = sphi 0, %s67
    %s87 = sphi 0, %s89
    %s90 = sphi 0, %s87
    %s91 = sphi 0, %s90
    %s107 = sphi 0, %s91
  $region4: #{simple_cnn_forward.4} parent=0 // loop_header_branch
    %12 = sbr.rel (%p10) target = $region8
  $region5: #{simple_cnn_forward.4} parent=0 // loop_body
    %s14 = ssub.s32 %s9, 1
    %s15 = ssub.s32 %s9, 2
    %s16 = sadd.s32 %s9, 1
    %s17 = ssub.s32 %s9, %s16
    %p18 = scmp.eq.s32.totalorder %s17, 0
    %s20 = sadd.s32 %s19, 1
    %s21 = scalar_select %p18, %s19, %s20
    %p24 = pneg %p18
    %p25 = scmp.eq.s32.totalorder %s9, 1
    %p26 = por %p24, %p25
    %p27 = scmp.ne.s32.totalorder %s19, %s22
    %p28 = scmp.eq.s32.totalorder %s9, 0
    %p29 = por %p27, %p28
    %p30 = scmp.ne.s32.totalorder %s19, %s22
    %p31 = scmp.eq.s32.totalorder %s14, 1
    %p32 = por %p30, %p31
    %p33 = scmp.ne.s32.totalorder %s22, %s23
    %p34 = scmp.eq.s32.totalorder %s14, 0
    %p35 = por %p33, %p34
    %p36 = scmp.ne.s32.totalorder %s22, %s23
    %p37 = scmp.eq.s32.totalorder %s15, 1
    %p38 = por %p36, %p37
    %p40 = scmp.ne.s32.totalorder %s23, %s39
    %p41 = scmp.eq.s32.totalorder %s15, 0
    %p42 = por %p40, %p41
    %s44 = sadd.s32 %s43, 1
    %p47 = scmp.eq.s32.totalorder %s9, 1
    %p48 = scmp.ne.s32.totalorder %s43, %s45
    %p49 = scmp.eq.s32.totalorder %s9, 0
    %p50 = por %p48, %p49
    %p51 = scmp.ne.s32.totalorder %s43, %s45
    %p52 = scmp.eq.s32.totalorder %s14, 1
    %p53 = por %p51, %p52
    %p54 = scmp.ne.s32.totalorder %s45, %s46
    %p55 = scmp.eq.s32.totalorder %s14, 0
    %p56 = por %p54, %p55
    %p57 = scmp.ne.s32.totalorder %s45, %s46
    %p58 = scmp.eq.s32.totalorder %s15, 1
    %p59 = por %p57, %p58
    %p61 = scmp.ne.s32.totalorder %s46, %s60
    %p62 = scmp.eq.s32.totalorder %s15, 0
    %p63 = por %p61, %p62
    %s65 = sadd.s32 %s64, 1
    %p68 = scmp.eq.s32.totalorder %s9, 1
    %p69 = scmp.ne.s32.totalorder %s64, %s66
    %p70 = scmp.eq.s32.totalorder %s9, 0
    %p71 = por %p69, %p70
    %p72 = scmp.ne.s32.totalorder %s64, %s66
    %p73 = scmp.eq.s32.totalorder %s14, 1
    %p74 = por %p72, %p73
    %p75 = scmp.ne.s32.totalorder %s66, %s67
    %p76 = scmp.eq.s32.totalorder %s14, 0
    %p77 = por %p75, %p76
    %p78 = scmp.ne.s32.totalorder %s66, %s67
    %p79 = scmp.eq.s32.totalorder %s15, 1
    %p80 = por %p78, %p79
    %p82 = scmp.ne.s32.totalorder %s67, %s81
    %p83 = scmp.eq.s32.totalorder %s15, 0
    %p84 = por %p82, %p83
    %s85 = ssub.s32 %s9, %s16
    %p86 = scmp.eq.s32.totalorder %s85, 0
    %s88 = sadd.s32 %s87, 1
    %s89 = scalar_select %p86, %s87, %s88
    %p92 = pneg %p86
    %p93 = scmp.eq.s32.totalorder %s9, 1
    %p94 = por %p92, %p93
    %p95 = scmp.ne.s32.totalorder %s87, %s90
    %p96 = scmp.eq.s32.totalorder %s9, 0
    %p97 = por %p95, %p96
    %p98 = scmp.ne.s32.totalorder %s87, %s90
    %p99 = scmp.eq.s32.totalorder %s14, 1
    %p100 = por %p98, %p99
    %p101 = scmp.ne.s32.totalorder %s90, %s91
    %p102 = scmp.eq.s32.totalorder %s14, 0
    %p103 = por %p101, %p102
    %p104 = scmp.ne.s32.totalorder %s90, %s91
    %p105 = scmp.eq.s32.totalorder %s15, 1
    %p106 = por %p104, %p105
    %p108 = scmp.ne.s32.totalorder %s91, %s107
    %p109 = scmp.eq.s32.totalorder %s15, 0
    %p110 = por %p108, %p109
    %p111 = scmp.le.s32.totalorder 1, %s9
    %p112 = scmp.lt.s32.totalorder %s9, 3
    %p113 = pnand %p111, %p112
    %p114 = pneg %p113
    // Predicated region
    $region9: #{simple_cnn_forward.4} parent=5 // pred_check
      _
    $region10: #{simple_cnn_forward.4} parent=5 // pred_check_branch
      %116 = sbr.rel (%p113) target = $region12
    $region11: #{simple_cnn_forward.4} parent=5 // pred_region
      %s117 = ssub.s32 %s9, 1
      // Predicated region
      $region13: #{simple_cnn_forward.4} parent=11 // pred_check
        %p118 = pneg %p56
      $region14: #{simple_cnn_forward.4} parent=11 // pred_check_branch
        %120 = sbr.rel (%p118) target = $region16
      $region15: #{simple_cnn_forward.4} parent=11 // pred_region
        _
      $region16: #{simple_cnn_forward.4} parent=11 // pred_fallthru
        _
      // Predicated region
      $region17: #{simple_cnn_forward.4} parent=11 // pred_check
        %p121 = pneg %p77
      $region18: #{simple_cnn_forward.4} parent=11 // pred_check_branch
        %123 = sbr.rel (%p121) target = $region20
      $region19: #{simple_cnn_forward.4} parent=11 // pred_region
        _
      $region20: #{simple_cnn_forward.4} parent=11 // pred_fallthru
        _
    $region12: #{simple_cnn_forward.4} parent=5 // pred_fallthru
      _
    %p124 = scmp.lt.s32.totalorder %s9, 2
    // Predicated region
    $region21: #{simple_cnn_forward.4} parent=5 // pred_check
      %p125 = pneg %p124
    $region22: #{simple_cnn_forward.4} parent=5 // pred_check_branch
      %127 = sbr.rel (%p125) target = $region24
    $region23: #{simple_cnn_forward.4} parent=5 // pred_region
      // Predicated region
      $region25: #{simple_cnn_forward.4} parent=23 // pred_check
        %p128 = pneg %p29
      $region26: #{simple_cnn_forward.4} parent=23 // pred_check_branch
        %130 = sbr.rel (%p128) target = $region28
      $region27: #{simple_cnn_forward.4} parent=23 // pred_region
        %p131 = scmp.lt.s32.totalorder %s9, 1
        %s132 = scalar_select %p131, %s9, 1
        %s133 = smul.addr %s132, 128
        %s134 = smul.addr %s133, 4
        %s135 = scalar_lea.vmem %s0, %s134
      $region28: #{simple_cnn_forward.4} parent=23 // pred_fallthru
        _
    $region24: #{simple_cnn_forward.4} parent=5 // pred_fallthru
      _
    %p136 = scmp.le.s32.totalorder 1, %s9
    %p137 = scmp.lt.s32.totalorder %s9, 3
    %p138 = pnand %p136, %p137
    %p139 = pneg %p138
    // Predicated region
    $region29: #{simple_cnn_forward.4} parent=5 // pred_check
      _
    $region30: #{simple_cnn_forward.4} parent=5 // pred_check_branch
      %141 = sbr.rel (%p138) target = $region32
    $region31: #{simple_cnn_forward.4} parent=5 // pred_region
      %s142 = ssub.s32 %s9, 1
      %p143 = scmp.lt.s32.totalorder %s14, 1
      %s144 = scalar_select %p143, %s14, 1
      %s145 = smul.addr %s144, 128
      %s146 = smul.addr %s145, 4
      %s147 = scalar_lea.vmem %s0, %s146
      %p148 = pneg %p35
      %p149 = pneg %p32
      %p150 = pneg %p56
      %p151 = pneg %p53
      %p152 = pneg %p77
      %p153 = pneg %p74
      %p154 = pneg %p103
      %p155 = pneg %p100
      %p156 = scmp.lt.s32.totalorder %s14, 1
      %s157 = scalar_select %p156, %s14, 1
      %s158 = smul.addr %s157, 32
      %s159 = smul.addr %s158, 8
      %s160 = scalar_lea.vmem %s3, %s159
      %p161 = scmp.lt.s32.totalorder %s14, 1
      %s162 = scalar_select %p161, %s14, 1
      %s163 = smul.addr %s162, 128
      %s164 = smul.addr %s163, 4
      %s165 = scalar_lea.vmem %s0, %s164
      %p166 = scmp.lt.s32.totalorder %s14, 1
      %s167 = scalar_select %p166, %s14, 1
      %s168 = smul.addr %s167, 32
      %s169 = smul.addr %s168, 8
      %s170 = scalar_lea.vmem %s3, %s169
      %v172 = vld [vmem:[%s165] sm:$0xf]
      %v173 = vld [vmem:[%s165 + $0x4] sm:$0xf]
      %v174 = vld [vmem:[%s165 + $0x8] sm:$0xf]
      %v175 = vld [vmem:[%s165 + $0xc] sm:$0xf]
      %v176 = vld [vmem:[%s165 + $0x10] sm:$0xf]
      %v177 = vld [vmem:[%s165 + $0x14] sm:$0xf]
      %v178 = vld [vmem:[%s165 + $0x18] sm:$0xf]
      %v179 = vld [vmem:[%s165 + $0x1c] sm:$0xf]
      %v180 = vld [vmem:[%s165 + $0x20] sm:$0xf]
      %v181 = vld [vmem:[%s165 + $0x24] sm:$0xf]
      %v182 = vld [vmem:[%s165 + $0x28] sm:$0xf]
      %v183 = vld [vmem:[%s165 + $0x2c] sm:$0xf]
      %v184 = vld [vmem:[%s165 + $0x30] sm:$0xf]
      %v185 = vld [vmem:[%s165 + $0x34] sm:$0xf]
      %v186 = vld [vmem:[%s165 + $0x38] sm:$0xf]
      %v187 = vld [vmem:[%s165 + $0x3c] sm:$0xf]
      %v188 = vld [vmem:[%s165 + $0x40] sm:$0xf]
      %v189 = vld [vmem:[%s165 + $0x44] sm:$0xf]
      %v190 = vld [vmem:[%s165 + $0x48] sm:$0xf]
      %v191 = vld [vmem:[%s165 + $0x4c] sm:$0xf]
      %v192 = vld [vmem:[%s165 + $0x50] sm:$0xf]
      %v193 = vld [vmem:[%s165 + $0x54] sm:$0xf]
      %v194 = vld [vmem:[%s165 + $0x58] sm:$0xf]
      %v195 = vld [vmem:[%s165 + $0x5c] sm:$0xf]
      %v196 = vld [vmem:[%s165 + $0x60] sm:$0xf]
      %v197 = vld [vmem:[%s165 + $0x64] sm:$0xf]
      %v198 = vld [vmem:[%s165 + $0x68] sm:$0xf]
      %v199 = vld [vmem:[%s165 + $0x6c] sm:$0xf]
      %v200 = vld [vmem:[%s165 + $0x70] sm:$0xf]
      %v201 = vld [vmem:[%s165 + $0x74] sm:$0xf]
      %v202 = vld [vmem:[%s165 + $0x78] sm:$0xf]
      %v203 = vld [vmem:[%s165 + $0x7c] sm:$0xf]
      %v204 = vld [vmem:[%s165 + $0x80] sm:$0xf]
      %v205 = vld [vmem:[%s165 + $0x84] sm:$0xf]
      %v206 = vld [vmem:[%s165 + $0x88] sm:$0xf]
      %v207 = vld [vmem:[%s165 + $0x8c] sm:$0xf]
      %v208 = vld [vmem:[%s165 + $0x90] sm:$0xf]
      %v209 = vld [vmem:[%s165 + $0x94] sm:$0xf]
      %v210 = vld [vmem:[%s165 + $0x98] sm:$0xf]
      %v211 = vld [vmem:[%s165 + $0x9c] sm:$0xf]
      %v212 = vld [vmem:[%s165 + $0xa0] sm:$0xf]
      %v213 = vld [vmem:[%s165 + $0xa4] sm:$0xf]
      %v214 = vld [vmem:[%s165 + $0xa8] sm:$0xf]
      %v215 = vld [vmem:[%s165 + $0xac] sm:$0xf]
      %v216 = vld [vmem:[%s165 + $0xb0] sm:$0xf]
      %v217 = vld [vmem:[%s165 + $0xb4] sm:$0xf]
      %v218 = vld [vmem:[%s165 + $0xb8] sm:$0xf]
      %v219 = vld [vmem:[%s165 + $0xbc] sm:$0xf]
      %v220 = vld [vmem:[%s165 + $0xc0] sm:$0xf]
      %v221 = vld [vmem:[%s165 + $0xc4] sm:$0xf]
      %v222 = vld [vmem:[%s165 + $0xc8] sm:$0xf]
      %v223 = vld [vmem:[%s165 + $0xcc] sm:$0xf]
      %v224 = vld [vmem:[%s165 + $0xd0] sm:$0xf]
      %v225 = vld [vmem:[%s165 + $0xd4] sm:$0xf]
      %v226 = vld [vmem:[%s165 + $0xd8] sm:$0xf]
      %v227 = vld [vmem:[%s165 + $0xdc] sm:$0xf]
      %v228 = vld [vmem:[%s165 + $0xe0] sm:$0xf]
      %v229 = vld [vmem:[%s165 + $0xe4] sm:$0xf]
      %v230 = vld [vmem:[%s165 + $0xe8] sm:$0xf]
      %v231 = vld [vmem:[%s165 + $0xec] sm:$0xf]
      %v232 = vld [vmem:[%s165 + $0xf0] sm:$0xf]
      %v233 = vld [vmem:[%s165 + $0xf4] sm:$0xf]
      %v234 = vld [vmem:[%s165 + $0xf8] sm:$0xf]
      %v235 = vld [vmem:[%s165 + $0xfc] sm:$0xf]
      %v236 = vld [vmem:[%s165 + $0x100] sm:$0xf]
      %v237 = vld [vmem:[%s165 + $0x104] sm:$0xf]
      %v238 = vld [vmem:[%s165 + $0x108] sm:$0xf]
      %v239 = vld [vmem:[%s165 + $0x10c] sm:$0xf]
      %v240 = vld [vmem:[%s165 + $0x110] sm:$0xf]
      %v241 = vld [vmem:[%s165 + $0x114] sm:$0xf]
      %v242 = vld [vmem:[%s165 + $0x118] sm:$0xf]
      %v243 = vld [vmem:[%s165 + $0x11c] sm:$0xf]
      %v244 = vld [vmem:[%s165 + $0x120] sm:$0xf]
      %v245 = vld [vmem:[%s165 + $0x124] sm:$0xf]
      %v246 = vld [vmem:[%s165 + $0x128] sm:$0xf]
      %v247 = vld [vmem:[%s165 + $0x12c] sm:$0xf]
      %v248 = vld [vmem:[%s165 + $0x130] sm:$0xf]
      %v249 = vld [vmem:[%s165 + $0x134] sm:$0xf]
      %v250 = vld [vmem:[%s165 + $0x138] sm:$0xf]
      %v251 = vld [vmem:[%s165 + $0x13c] sm:$0xf]
      %v252 = vld [vmem:[%s165 + $0x140] sm:$0xf]
      %v253 = vld [vmem:[%s165 + $0x144] sm:$0xf]
      %v254 = vld [vmem:[%s165 + $0x148] sm:$0xf]
      %v255 = vld [vmem:[%s165 + $0x14c] sm:$0xf]
      %v256 = vld [vmem:[%s165 + $0x150] sm:$0xf]
      %v257 = vld [vmem:[%s165 + $0x154] sm:$0xf]
      %v258 = vld [vmem:[%s165 + $0x158] sm:$0xf]
      %v259 = vld [vmem:[%s165 + $0x15c] sm:$0xf]
      %v260 = vld [vmem:[%s165 + $0x160] sm:$0xf]
      %v261 = vld [vmem:[%s165 + $0x164] sm:$0xf]
      %v262 = vld [vmem:[%s165 + $0x168] sm:$0xf]
      %v263 = vld [vmem:[%s165 + $0x16c] sm:$0xf]
      %v264 = vld [vmem:[%s165 + $0x170] sm:$0xf]
      %v265 = vld [vmem:[%s165 + $0x174] sm:$0xf]
      %v266 = vld [vmem:[%s165 + $0x178] sm:$0xf]
      %v267 = vld [vmem:[%s165 + $0x17c] sm:$0xf]
      %v268 = vld [vmem:[%s165 + $0x180] sm:$0xf]
      %v269 = vld [vmem:[%s165 + $0x184] sm:$0xf]
      %v270 = vld [vmem:[%s165 + $0x188] sm:$0xf]
      %v271 = vld [vmem:[%s165 + $0x18c] sm:$0xf]
      %v272 = vld [vmem:[%s165 + $0x190] sm:$0xf]
      %v273 = vld [vmem:[%s165 + $0x194] sm:$0xf]
      %v274 = vld [vmem:[%s165 + $0x198] sm:$0xf]
      %v275 = vld [vmem:[%s165 + $0x19c] sm:$0xf]
      %v276 = vld [vmem:[%s165 + $0x1a0] sm:$0xf]
      %v277 = vld [vmem:[%s165 + $0x1a4] sm:$0xf]
      %v278 = vld [vmem:[%s165 + $0x1a8] sm:$0xf]
      %v279 = vld [vmem:[%s165 + $0x1ac] sm:$0xf]
      %v280 = vld [vmem:[%s165 + $0x1b0] sm:$0xf]
      %v281 = vld [vmem:[%s165 + $0x1b4] sm:$0xf]
      %v282 = vld [vmem:[%s165 + $0x1b8] sm:$0xf]
      %v283 = vld [vmem:[%s165 + $0x1bc] sm:$0xf]
      %v284 = vld [vmem:[%s165 + $0x1c0] sm:$0xf]
      %v285 = vld [vmem:[%s165 + $0x1c4] sm:$0xf]
      %v286 = vld [vmem:[%s165 + $0x1c8] sm:$0xf]
      %v287 = vld [vmem:[%s165 + $0x1cc] sm:$0xf]
      %v288 = vld [vmem:[%s165 + $0x1d0] sm:$0xf]
      %v289 = vld [vmem:[%s165 + $0x1d4] sm:$0xf]
      %v290 = vld [vmem:[%s165 + $0x1d8] sm:$0xf]
      %v291 = vld [vmem:[%s165 + $0x1dc] sm:$0xf]
      %v292 = vld [vmem:[%s165 + $0x1e0] sm:$0xf]
      %v293 = vld [vmem:[%s165 + $0x1e4] sm:$0xf]
      %v294 = vld [vmem:[%s165 + $0x1e8] sm:$0xf]
      %v295 = vld [vmem:[%s165 + $0x1ec] sm:$0xf]
      %v296 = vld [vmem:[%s165 + $0x1f0] sm:$0xf]
      %v297 = vld [vmem:[%s165 + $0x1f4] sm:$0xf]
      %v298 = vld [vmem:[%s165 + $0x1f8] sm:$0xf]
      %v299 = vld [vmem:[%s165 + $0x1fc] sm:$0xf]
      %v300 = vld [vmem:[%s1] sm:$0xf]
      %v301 = vld [vmem:[%s1 + $0x4] sm:$0xf]
      %v302 = vld [vmem:[%s1 + $0x8] sm:$0xf]
      %v303 = vld [vmem:[%s1 + $0xc] sm:$0xf]
      %v336 = vunpack.c.l.b16 %v172
      %v337 = vunpack.c.l.b16 %v173
      %v338 = vunpack.c.l.b16 %v174
      %v339 = vunpack.c.l.b16 %v175
      %v340 = vunpack.c.l.b16 %v176
      %v341 = vunpack.c.l.b16 %v177
      %v342 = vunpack.c.l.b16 %v178
      %v343 = vunpack.c.l.b16 %v179
      %v344 = vunpack.c.l.b16 %v180
      %v345 = vunpack.c.l.b16 %v181
      %v346 = vunpack.c.l.b16 %v182
      %v347 = vunpack.c.l.b16 %v183
      %v348 = vunpack.c.l.b16 %v184
      %v349 = vunpack.c.l.b16 %v185
      %v350 = vunpack.c.l.b16 %v186
      %v351 = vunpack.c.l.b16 %v187
      %v352 = vunpack.c.l.b16 %v188
      %v353 = vunpack.c.l.b16 %v189
      %v354 = vunpack.c.l.b16 %v190
      %v355 = vunpack.c.l.b16 %v191
      %v356 = vunpack.c.l.b16 %v192
      %v357 = vunpack.c.l.b16 %v193
      %v358 = vunpack.c.l.b16 %v194
      %v359 = vunpack.c.l.b16 %v195
      %v360 = vunpack.c.l.b16 %v196
      %v361 = vunpack.c.l.b16 %v197
      %v362 = vunpack.c.l.b16 %v198
      %v363 = vunpack.c.l.b16 %v199
      %v364 = vunpack.c.l.b16 %v200
      %v365 = vunpack.c.l.b16 %v201
      %v366 = vunpack.c.l.b16 %v202
      %v367 = vunpack.c.l.b16 %v203
      %v368 = vpack.c.b16 %v337, %v336
      %v369 = vpack.c.b16 %v339, %v338
      %v370 = vpack.c.b16 %v341, %v340
      %v371 = vpack.c.b16 %v343, %v342
      %v372 = vpack.c.b16 %v345, %v344
      %v373 = vpack.c.b16 %v347, %v346
      %v374 = vpack.c.b16 %v349, %v348
      %v375 = vpack.c.b16 %v351, %v350
      %v376 = vpack.c.b16 %v353, %v352
      %v377 = vpack.c.b16 %v355, %v354
      %v378 = vpack.c.b16 %v357, %v356
      %v379 = vpack.c.b16 %v359, %v358
      %v380 = vpack.c.b16 %v361, %v360
      %v381 = vpack.c.b16 %v363, %v362
      %v382 = vpack.c.b16 %v365, %v364
      %v383 = vpack.c.b16 %v367, %v366
      %v388 = vunpack.c.l.b16 %v300
      %v389 = vunpack.c.l.b16 %v301
      %v390 = vunpack.c.l.b16 %v302
      %v391 = vunpack.c.l.b16 %v303
      %v392 = vpack.c.b16 %v389, %v388
      %v393 = vpack.c.b16 %v391, %v390
      %vm396 = vcmask 261120
      %v398 = vsel %vm396, %v368, 0
      %v401 = vsel %vm396, %v369, 0
      %v404 = vsel %vm396, %v370, 0
      %v407 = vsel %vm396, %v371, 0
      %v410 = vsel %vm396, %v372, 0
      %v413 = vsel %vm396, %v373, 0
      %v416 = vsel %vm396, %v374, 0
      %v419 = vsel %vm396, %v375, 0
      %v422 = vsel %vm396, %v376, 0
      %v425 = vsel %vm396, %v377, 0
      %v428 = vsel %vm396, %v378, 0
      %v431 = vsel %vm396, %v379, 0
      %v434 = vsel %vm396, %v380, 0
      %v437 = vsel %vm396, %v381, 0
      %v440 = vsel %vm396, %v382, 0
      %v443 = vsel %vm396, %v383, 0
      %445 = vmatpush.bf16.msra.mxu0 0
      %446 = vmatpush.bf16.msra.mxu0 0
      %447 = vmatpush.bf16.msra.mxu0 0
      %448 = vmatpush.bf16.msra.mxu0 0
      %449 = vmatpush.bf16.msra.mxu0 0
      %450 = vmatpush.bf16.msra.mxu0 0
      %451 = vmatpush.bf16.msra.mxu0 %v393
      %452 = vmatpush.bf16.msra.mxu0 %v392
      %453 = vmatmul.bf16.gmra.mxu0 %v398
      %v454 = vpop.f32.mrf.mxu0
      %v455 = vadd.f32 0.0, %v454
      %v456 = vpop.f32.mrf.mxu0
      %v457 = vadd.f32 0.0, %v456
      %458 = vmatmul.bf16.gmra.mxu0 %v401
      %v459 = vpop.f32.mrf.mxu0
      %v460 = vadd.f32 0.0, %v459
      %v461 = vpop.f32.mrf.mxu0
      %v462 = vadd.f32 0.0, %v461
      %463 = vmatmul.bf16.gmra.mxu0 %v404
      %v464 = vpop.f32.mrf.mxu0
      %v465 = vadd.f32 0.0, %v464
      %v466 = vpop.f32.mrf.mxu0
      %v467 = vadd.f32 0.0, %v466
      %468 = vmatmul.bf16.gmra.mxu0 %v407
      %v469 = vpop.f32.mrf.mxu0
      %v470 = vadd.f32 0.0, %v469
      %v471 = vpop.f32.mrf.mxu0
      %v472 = vadd.f32 0.0, %v471
      %473 = vmatmul.bf16.gmra.mxu0 %v410
      %v474 = vpop.f32.mrf.mxu0
      %v475 = vadd.f32 0.0, %v474
      %v476 = vpop.f32.mrf.mxu0
      %v477 = vadd.f32 0.0, %v476
      %478 = vmatmul.bf16.gmra.mxu0 %v413
      %v479 = vpop.f32.mrf.mxu0
      %v480 = vadd.f32 0.0, %v479
      %v481 = vpop.f32.mrf.mxu0
      %v482 = vadd.f32 0.0, %v481
      %483 = vmatmul.bf16.gmra.mxu0 %v416
      %v484 = vpop.f32.mrf.mxu0
      %v485 = vadd.f32 0.0, %v484
      %v486 = vpop.f32.mrf.mxu0
      %v487 = vadd.f32 0.0, %v486
      %488 = vmatmul.bf16.gmra.mxu0 %v419
      %v489 = vpop.f32.mrf.mxu0
      %v490 = vadd.f32 0.0, %v489
      %v491 = vpop.f32.mrf.mxu0
      %v492 = vadd.f32 0.0, %v491
      %493 = vmatmul.bf16.gmra.mxu0 %v422
      %v494 = vpop.f32.mrf.mxu0
      %v495 = vadd.f32 0.0, %v494
      %v496 = vpop.f32.mrf.mxu0
      %v497 = vadd.f32 0.0, %v496
      %498 = vmatmul.bf16.gmra.mxu0 %v425
      %v499 = vpop.f32.mrf.mxu0
      %v500 = vadd.f32 0.0, %v499
      %v501 = vpop.f32.mrf.mxu0
      %v502 = vadd.f32 0.0, %v501
      %503 = vmatmul.bf16.gmra.mxu0 %v428
      %v504 = vpop.f32.mrf.mxu0
      %v505 = vadd.f32 0.0, %v504
      %v506 = vpop.f32.mrf.mxu0
      %v507 = vadd.f32 0.0, %v506
      %508 = vmatmul.bf16.gmra.mxu0 %v431
      %v509 = vpop.f32.mrf.mxu0
      %v510 = vadd.f32 0.0, %v509
      %v511 = vpop.f32.mrf.mxu0
      %v512 = vadd.f32 0.0, %v511
      %513 = vmatmul.bf16.gmra.mxu0 %v434
      %v514 = vpop.f32.mrf.mxu0
      %v515 = vadd.f32 0.0, %v514
      %v516 = vpop.f32.mrf.mxu0
      %v517 = vadd.f32 0.0, %v516
      %518 = vmatmul.bf16.gmra.mxu0 %v437
      %v519 = vpop.f32.mrf.mxu0
      %v520 = vadd.f32 0.0, %v519
      %v521 = vpop.f32.mrf.mxu0
      %v522 = vadd.f32 0.0, %v521
      %523 = vmatmul.bf16.gmra.mxu0 %v440
      %v524 = vpop.f32.mrf.mxu0
      %v525 = vadd.f32 0.0, %v524
      %v526 = vpop.f32.mrf.mxu0
      %v527 = vadd.f32 0.0, %v526
      %528 = vmatmul.bf16.gmra.mxu0 %v443
      %v529 = vpop.f32.mrf.mxu0
      %v530 = vadd.f32 0.0, %v529
      %v531 = vpop.f32.mrf.mxu0
      %v532 = vadd.f32 0.0, %v531
      %533 = vdwg.mxu0
      %v566 = vunpack.c.l.b16 %v204
      %v567 = vunpack.c.l.b16 %v205
      %v568 = vunpack.c.l.b16 %v206
      %v569 = vunpack.c.l.b16 %v207
      %v570 = vunpack.c.l.b16 %v208
      %v571 = vunpack.c.l.b16 %v209
      %v572 = vunpack.c.l.b16 %v210
      %v573 = vunpack.c.l.b16 %v211
      %v574 = vunpack.c.l.b16 %v212
      %v575 = vunpack.c.l.b16 %v213
      %v576 = vunpack.c.l.b16 %v214
      %v577 = vunpack.c.l.b16 %v215
      %v578 = vunpack.c.l.b16 %v216
      %v579 = vunpack.c.l.b16 %v217
      %v580 = vunpack.c.l.b16 %v218
      %v581 = vunpack.c.l.b16 %v219
      %v582 = vunpack.c.l.b16 %v220
      %v583 = vunpack.c.l.b16 %v221
      %v584 = vunpack.c.l.b16 %v222
      %v585 = vunpack.c.l.b16 %v223
      %v586 = vunpack.c.l.b16 %v224
      %v587 = vunpack.c.l.b16 %v225
      %v588 = vunpack.c.l.b16 %v226
      %v589 = vunpack.c.l.b16 %v227
      %v590 = vunpack.c.l.b16 %v228
      %v591 = vunpack.c.l.b16 %v229
      %v592 = vunpack.c.l.b16 %v230
      %v593 = vunpack.c.l.b16 %v231
      %v594 = vunpack.c.l.b16 %v232
      %v595 = vunpack.c.l.b16 %v233
      %v596 = vunpack.c.l.b16 %v234
      %v597 = vunpack.c.l.b16 %v235
      %v598 = vpack.c.b16 %v567, %v566
      %v599 = vpack.c.b16 %v569, %v568
      %v600 = vpack.c.b16 %v571, %v570
      %v601 = vpack.c.b16 %v573, %v572
      %v602 = vpack.c.b16 %v575, %v574
      %v603 = vpack.c.b16 %v577, %v576
      %v604 = vpack.c.b16 %v579, %v578
      %v605 = vpack.c.b16 %v581, %v580
      %v606 = vpack.c.b16 %v583, %v582
      %v607 = vpack.c.b16 %v585, %v584
      %v608 = vpack.c.b16 %v587, %v586
      %v609 = vpack.c.b16 %v589, %v588
      %v610 = vpack.c.b16 %v591, %v590
      %v611 = vpack.c.b16 %v593, %v592
      %v612 = vpack.c.b16 %v595, %v594
      %v613 = vpack.c.b16 %v597, %v596
      %v615 = vsel %vm396, %v598, 0
      %v618 = vsel %vm396, %v599, 0
      %v621 = vsel %vm396, %v600, 0
      %v624 = vsel %vm396, %v601, 0
      %v627 = vsel %vm396, %v602, 0
      %v630 = vsel %vm396, %v603, 0
      %v633 = vsel %vm396, %v604, 0
      %v636 = vsel %vm396, %v605, 0
      %v639 = vsel %vm396, %v606, 0
      %v642 = vsel %vm396, %v607, 0
      %v645 = vsel %vm396, %v608, 0
      %v648 = vsel %vm396, %v609, 0
      %v651 = vsel %vm396, %v610, 0
      %v654 = vsel %vm396, %v611, 0
      %v657 = vsel %vm396, %v612, 0
      %v660 = vsel %vm396, %v613, 0
      %662 = vmatpush.bf16.msra.mxu0 0
      %663 = vmatpush.bf16.msra.mxu0 0
      %664 = vmatpush.bf16.msra.mxu0 0
      %665 = vmatpush.bf16.msra.mxu0 0
      %666 = vmatpush.bf16.msra.mxu0 0
      %667 = vmatpush.bf16.msra.mxu0 0
      %668 = vmatpush.bf16.msra.mxu0 %v393
      %669 = vmatpush.bf16.msra.mxu0 %v392
      %670 = vmatmul.bf16.gmra.mxu0 %v615
      %v671 = vpop.f32.mrf.mxu0
      %v672 = vadd.f32 0.0, %v671
      %v673 = vpop.f32.mrf.mxu0
      %v674 = vadd.f32 0.0, %v673
      %675 = vmatmul.bf16.gmra.mxu0 %v618
      %v676 = vpop.f32.mrf.mxu0
      %v677 = vadd.f32 0.0, %v676
      %v678 = vpop.f32.mrf.mxu0
      %v679 = vadd.f32 0.0, %v678
      %680 = vmatmul.bf16.gmra.mxu0 %v621
      %v681 = vpop.f32.mrf.mxu0
      %v682 = vadd.f32 0.0, %v681
      %v683 = vpop.f32.mrf.mxu0
      %v684 = vadd.f32 0.0, %v683
      %685 = vmatmul.bf16.gmra.mxu0 %v624
      %v686 = vpop.f32.mrf.mxu0
      %v687 = vadd.f32 0.0, %v686
      %v688 = vpop.f32.mrf.mxu0
      %v689 = vadd.f32 0.0, %v688
      %690 = vmatmul.bf16.gmra.mxu0 %v627
      %v691 = vpop.f32.mrf.mxu0
      %v692 = vadd.f32 0.0, %v691
      %v693 = vpop.f32.mrf.mxu0
      %v694 = vadd.f32 0.0, %v693
      %695 = vmatmul.bf16.gmra.mxu0 %v630
      %v696 = vpop.f32.mrf.mxu0
      %v697 = vadd.f32 0.0, %v696
      %v698 = vpop.f32.mrf.mxu0
      %v699 = vadd.f32 0.0, %v698
      %700 = vmatmul.bf16.gmra.mxu0 %v633
      %v701 = vpop.f32.mrf.mxu0
      %v702 = vadd.f32 0.0, %v701
      %v703 = vpop.f32.mrf.mxu0
      %v704 = vadd.f32 0.0, %v703
      %705 = vmatmul.bf16.gmra.mxu0 %v636
      %v706 = vpop.f32.mrf.mxu0
      %v707 = vadd.f32 0.0, %v706
      %v708 = vpop.f32.mrf.mxu0
      %v709 = vadd.f32 0.0, %v708
      %710 = vmatmul.bf16.gmra.mxu0 %v639
      %v711 = vpop.f32.mrf.mxu0
      %v712 = vadd.f32 0.0, %v711
      %v713 = vpop.f32.mrf.mxu0
      %v714 = vadd.f32 0.0, %v713
      %715 = vmatmul.bf16.gmra.mxu0 %v642
      %v716 = vpop.f32.mrf.mxu0
      %v717 = vadd.f32 0.0, %v716
      %v718 = vpop.f32.mrf.mxu0
      %v719 = vadd.f32 0.0, %v718
      %720 = vmatmul.bf16.gmra.mxu0 %v645
      %v721 = vpop.f32.mrf.mxu0
      %v722 = vadd.f32 0.0, %v721
      %v723 = vpop.f32.mrf.mxu0
      %v724 = vadd.f32 0.0, %v723
      %725 = vmatmul.bf16.gmra.mxu0 %v648
      %v726 = vpop.f32.mrf.mxu0
      %v727 = vadd.f32 0.0, %v726
      %v728 = vpop.f32.mrf.mxu0
      %v729 = vadd.f32 0.0, %v728
      %730 = vmatmul.bf16.gmra.mxu0 %v651
      %v731 = vpop.f32.mrf.mxu0
      %v732 = vadd.f32 0.0, %v731
      %v733 = vpop.f32.mrf.mxu0
      %v734 = vadd.f32 0.0, %v733
      %735 = vmatmul.bf16.gmra.mxu0 %v654
      %v736 = vpop.f32.mrf.mxu0
      %v737 = vadd.f32 0.0, %v736
      %v738 = vpop.f32.mrf.mxu0
      %v739 = vadd.f32 0.0, %v738
      %740 = vmatmul.bf16.gmra.mxu0 %v657
      %v741 = vpop.f32.mrf.mxu0
      %v742 = vadd.f32 0.0, %v741
      %v743 = vpop.f32.mrf.mxu0
      %v744 = vadd.f32 0.0, %v743
      %745 = vmatmul.bf16.gmra.mxu0 %v660
      %v746 = vpop.f32.mrf.mxu0
      %v747 = vadd.f32 0.0, %v746
      %v748 = vpop.f32.mrf.mxu0
      %v749 = vadd.f32 0.0, %v748
      %750 = vdwg.mxu0
      %v751 = vmax.f32 %v455, %v672
      %v752 = vmax.f32 %v457, %v674
      %v753 = vmax.f32 %v460, %v677
      %v754 = vmax.f32 %v462, %v679
      %v755 = vmax.f32 %v465, %v682
      %v756 = vmax.f32 %v467, %v684
      %v757 = vmax.f32 %v470, %v687
      %v758 = vmax.f32 %v472, %v689
      %v759 = vmax.f32 %v475, %v692
      %v760 = vmax.f32 %v477, %v694
      %v761 = vmax.f32 %v480, %v697
      %v762 = vmax.f32 %v482, %v699
      %v763 = vmax.f32 %v485, %v702
      %v764 = vmax.f32 %v487, %v704
      %v765 = vmax.f32 %v490, %v707
      %v766 = vmax.f32 %v492, %v709
      %v767 = vmax.f32 %v495, %v712
      %v768 = vmax.f32 %v497, %v714
      %v769 = vmax.f32 %v500, %v717
      %v770 = vmax.f32 %v502, %v719
      %v771 = vmax.f32 %v505, %v722
      %v772 = vmax.f32 %v507, %v724
      %v773 = vmax.f32 %v510, %v727
      %v774 = vmax.f32 %v512, %v729
      %v775 = vmax.f32 %v515, %v732
      %v776 = vmax.f32 %v517, %v734
      %v777 = vmax.f32 %v520, %v737
      %v778 = vmax.f32 %v522, %v739
      %v779 = vmax.f32 %v525, %v742
      %v780 = vmax.f32 %v527, %v744
      %v781 = vmax.f32 %v530, %v747
      %v782 = vmax.f32 %v532, %v749
      %v815 = vunpack.c.l.b16 %v236
      %v816 = vunpack.c.l.b16 %v237
      %v817 = vunpack.c.l.b16 %v238
      %v818 = vunpack.c.l.b16 %v239
      %v819 = vunpack.c.l.b16 %v240
      %v820 = vunpack.c.l.b16 %v241
      %v821 = vunpack.c.l.b16 %v242
      %v822 = vunpack.c.l.b16 %v243
      %v823 = vunpack.c.l.b16 %v244
      %v824 = vunpack.c.l.b16 %v245
      %v825 = vunpack.c.l.b16 %v246
      %v826 = vunpack.c.l.b16 %v247
      %v827 = vunpack.c.l.b16 %v248
      %v828 = vunpack.c.l.b16 %v249
      %v829 = vunpack.c.l.b16 %v250
      %v830 = vunpack.c.l.b16 %v251
      %v831 = vunpack.c.l.b16 %v252
      %v832 = vunpack.c.l.b16 %v253
      %v833 = vunpack.c.l.b16 %v254
      %v834 = vunpack.c.l.b16 %v255
      %v835 = vunpack.c.l.b16 %v256
      %v836 = vunpack.c.l.b16 %v257
      %v837 = vunpack.c.l.b16 %v258
      %v838 = vunpack.c.l.b16 %v259
      %v839 = vunpack.c.l.b16 %v260
      %v840 = vunpack.c.l.b16 %v261
      %v841 = vunpack.c.l.b16 %v262
      %v842 = vunpack.c.l.b16 %v263
      %v843 = vunpack.c.l.b16 %v264
      %v844 = vunpack.c.l.b16 %v265
      %v845 = vunpack.c.l.b16 %v266
      %v846 = vunpack.c.l.b16 %v267
      %v847 = vpack.c.b16 %v816, %v815
      %v848 = vpack.c.b16 %v818, %v817
      %v849 = vpack.c.b16 %v820, %v819
      %v850 = vpack.c.b16 %v822, %v821
      %v851 = vpack.c.b16 %v824, %v823
      %v852 = vpack.c.b16 %v826, %v825
      %v853 = vpack.c.b16 %v828, %v827
      %v854 = vpack.c.b16 %v830, %v829
      %v855 = vpack.c.b16 %v832, %v831
      %v856 = vpack.c.b16 %v834, %v833
      %v857 = vpack.c.b16 %v836, %v835
      %v858 = vpack.c.b16 %v838, %v837
      %v859 = vpack.c.b16 %v840, %v839
      %v860 = vpack.c.b16 %v842, %v841
      %v861 = vpack.c.b16 %v844, %v843
      %v862 = vpack.c.b16 %v846, %v845
      %v864 = vsel %vm396, %v847, 0
      %v867 = vsel %vm396, %v848, 0
      %v870 = vsel %vm396, %v849, 0
      %v873 = vsel %vm396, %v850, 0
      %v876 = vsel %vm396, %v851, 0
      %v879 = vsel %vm396, %v852, 0
      %v882 = vsel %vm396, %v853, 0
      %v885 = vsel %vm396, %v854, 0
      %v888 = vsel %vm396, %v855, 0
      %v891 = vsel %vm396, %v856, 0
      %v894 = vsel %vm396, %v857, 0
      %v897 = vsel %vm396, %v858, 0
      %v900 = vsel %vm396, %v859, 0
      %v903 = vsel %vm396, %v860, 0
      %v906 = vsel %vm396, %v861, 0
      %v909 = vsel %vm396, %v862, 0
      %911 = vmatpush.bf16.msra.mxu0 0
      %912 = vmatpush.bf16.msra.mxu0 0
      %913 = vmatpush.bf16.msra.mxu0 0
      %914 = vmatpush.bf16.msra.mxu0 0
      %915 = vmatpush.bf16.msra.mxu0 0
      %916 = vmatpush.bf16.msra.mxu0 0
      %917 = vmatpush.bf16.msra.mxu0 %v393
      %918 = vmatpush.bf16.msra.mxu0 %v392
      %919 = vmatmul.bf16.gmra.mxu0 %v864
      %v920 = vpop.f32.mrf.mxu0
      %v921 = vadd.f32 0.0, %v920
      %v922 = vpop.f32.mrf.mxu0
      %v923 = vadd.f32 0.0, %v922
      %924 = vmatmul.bf16.gmra.mxu0 %v867
      %v925 = vpop.f32.mrf.mxu0
      %v926 = vadd.f32 0.0, %v925
      %v927 = vpop.f32.mrf.mxu0
      %v928 = vadd.f32 0.0, %v927
      %929 = vmatmul.bf16.gmra.mxu0 %v870
      %v930 = vpop.f32.mrf.mxu0
      %v931 = vadd.f32 0.0, %v930
      %v932 = vpop.f32.mrf.mxu0
      %v933 = vadd.f32 0.0, %v932
      %934 = vmatmul.bf16.gmra.mxu0 %v873
      %v935 = vpop.f32.mrf.mxu0
      %v936 = vadd.f32 0.0, %v935
      %v937 = vpop.f32.mrf.mxu0
      %v938 = vadd.f32 0.0, %v937
      %939 = vmatmul.bf16.gmra.mxu0 %v876
      %v940 = vpop.f32.mrf.mxu0
      %v941 = vadd.f32 0.0, %v940
      %v942 = vpop.f32.mrf.mxu0
      %v943 = vadd.f32 0.0, %v942
      %944 = vmatmul.bf16.gmra.mxu0 %v879
      %v945 = vpop.f32.mrf.mxu0
      %v946 = vadd.f32 0.0, %v945
      %v947 = vpop.f32.mrf.mxu0
      %v948 = vadd.f32 0.0, %v947
      %949 = vmatmul.bf16.gmra.mxu0 %v882
      %v950 = vpop.f32.mrf.mxu0
      %v951 = vadd.f32 0.0, %v950
      %v952 = vpop.f32.mrf.mxu0
      %v953 = vadd.f32 0.0, %v952
      %954 = vmatmul.bf16.gmra.mxu0 %v885
      %v955 = vpop.f32.mrf.mxu0
      %v956 = vadd.f32 0.0, %v955
      %v957 = vpop.f32.mrf.mxu0
      %v958 = vadd.f32 0.0, %v957
      %959 = vmatmul.bf16.gmra.mxu0 %v888
      %v960 = vpop.f32.mrf.mxu0
      %v961 = vadd.f32 0.0, %v960
      %v962 = vpop.f32.mrf.mxu0
      %v963 = vadd.f32 0.0, %v962
      %964 = vmatmul.bf16.gmra.mxu0 %v891
      %v965 = vpop.f32.mrf.mxu0
      %v966 = vadd.f32 0.0, %v965
      %v967 = vpop.f32.mrf.mxu0
      %v968 = vadd.f32 0.0, %v967
      %969 = vmatmul.bf16.gmra.mxu0 %v894
      %v970 = vpop.f32.mrf.mxu0
      %v971 = vadd.f32 0.0, %v970
      %v972 = vpop.f32.mrf.mxu0
      %v973 = vadd.f32 0.0, %v972
      %974 = vmatmul.bf16.gmra.mxu0 %v897
      %v975 = vpop.f32.mrf.mxu0
      %v976 = vadd.f32 0.0, %v975
      %v977 = vpop.f32.mrf.mxu0
      %v978 = vadd.f32 0.0, %v977
      %979 = vmatmul.bf16.gmra.mxu0 %v900
      %v980 = vpop.f32.mrf.mxu0
      %v981 = vadd.f32 0.0, %v980
      %v982 = vpop.f32.mrf.mxu0
      %v983 = vadd.f32 0.0, %v982
      %984 = vmatmul.bf16.gmra.mxu0 %v903
      %v985 = vpop.f32.mrf.mxu0
      %v986 = vadd.f32 0.0, %v985
      %v987 = vpop.f32.mrf.mxu0
      %v988 = vadd.f32 0.0, %v987
      %989 = vmatmul.bf16.gmra.mxu0 %v906
      %v990 = vpop.f32.mrf.mxu0
      %v991 = vadd.f32 0.0, %v990
      %v992 = vpop.f32.mrf.mxu0
      %v993 = vadd.f32 0.0, %v992
      %994 = vmatmul.bf16.gmra.mxu0 %v909
      %v995 = vpop.f32.mrf.mxu0
      %v996 = vadd.f32 0.0, %v995
      %v997 = vpop.f32.mrf.mxu0
      %v998 = vadd.f32 0.0, %v997
      %999 = vdwg.mxu0
      %v1000 = vmax.f32 %v751, %v921
      %v1001 = vmax.f32 %v752, %v923
      %v1002 = vmax.f32 %v753, %v926
      %v1003 = vmax.f32 %v754, %v928
      %v1004 = vmax.f32 %v755, %v931
      %v1005 = vmax.f32 %v756, %v933
      %v1006 = vmax.f32 %v757, %v936
      %v1007 = vmax.f32 %v758, %v938
      %v1008 = vmax.f32 %v759, %v941
      %v1009 = vmax.f32 %v760, %v943
      %v1010 = vmax.f32 %v761, %v946
      %v1011 = vmax.f32 %v762, %v948
      %v1012 = vmax.f32 %v763, %v951
      %v1013 = vmax.f32 %v764, %v953
      %v1014 = vmax.f32 %v765, %v956
      %v1015 = vmax.f32 %v766, %v958
      %v1016 = vmax.f32 %v767, %v961
      %v1017 = vmax.f32 %v768, %v963
      %v1018 = vmax.f32 %v769, %v966
      %v1019 = vmax.f32 %v770, %v968
      %v1020 = vmax.f32 %v771, %v971
      %v1021 = vmax.f32 %v772, %v973
      %v1022 = vmax.f32 %v773, %v976
      %v1023 = vmax.f32 %v774, %v978
      %v1024 = vmax.f32 %v775, %v981
      %v1025 = vmax.f32 %v776, %v983
      %v1026 = vmax.f32 %v777, %v986
      %v1027 = vmax.f32 %v778, %v988
      %v1028 = vmax.f32 %v779, %v991
      %v1029 = vmax.f32 %v780, %v993
      %v1030 = vmax.f32 %v781, %v996
      %v1031 = vmax.f32 %v782, %v998
      %v1064 = vunpack.c.l.b16 %v268
      %v1065 = vunpack.c.l.b16 %v269
      %v1066 = vunpack.c.l.b16 %v270
      %v1067 = vunpack.c.l.b16 %v271
      %v1068 = vunpack.c.l.b16 %v272
      %v1069 = vunpack.c.l.b16 %v273
      %v1070 = vunpack.c.l.b16 %v274
      %v1071 = vunpack.c.l.b16 %v275
      %v1072 = vunpack.c.l.b16 %v276
      %v1073 = vunpack.c.l.b16 %v277
      %v1074 = vunpack.c.l.b16 %v278
      %v1075 = vunpack.c.l.b16 %v279
      %v1076 = vunpack.c.l.b16 %v280
      %v1077 = vunpack.c.l.b16 %v281
      %v1078 = vunpack.c.l.b16 %v282
      %v1079 = vunpack.c.l.b16 %v283
      %v1080 = vunpack.c.l.b16 %v284
      %v1081 = vunpack.c.l.b16 %v285
      %v1082 = vunpack.c.l.b16 %v286
      %v1083 = vunpack.c.l.b16 %v287
      %v1084 = vunpack.c.l.b16 %v288
      %v1085 = vunpack.c.l.b16 %v289
      %v1086 = vunpack.c.l.b16 %v290
      %v1087 = vunpack.c.l.b16 %v291
      %v1088 = vunpack.c.l.b16 %v292
      %v1089 = vunpack.c.l.b16 %v293
      %v1090 = vunpack.c.l.b16 %v294
      %v1091 = vunpack.c.l.b16 %v295
      %v1092 = vunpack.c.l.b16 %v296
      %v1093 = vunpack.c.l.b16 %v297
      %v1094 = vunpack.c.l.b16 %v298
      %v1095 = vunpack.c.l.b16 %v299
      %v1096 = vpack.c.b16 %v1065, %v1064
      %v1097 = vpack.c.b16 %v1067, %v1066
      %v1098 = vpack.c.b16 %v1069, %v1068
      %v1099 = vpack.c.b16 %v1071, %v1070
      %v1100 = vpack.c.b16 %v1073, %v1072
      %v1101 = vpack.c.b16 %v1075, %v1074
      %v1102 = vpack.c.b16 %v1077, %v1076
      %v1103 = vpack.c.b16 %v1079, %v1078
      %v1104 = vpack.c.b16 %v1081, %v1080
      %v1105 = vpack.c.b16 %v1083, %v1082
      %v1106 = vpack.c.b16 %v1085, %v1084
      %v1107 = vpack.c.b16 %v1087, %v1086
      %v1108 = vpack.c.b16 %v1089, %v1088
      %v1109 = vpack.c.b16 %v1091, %v1090
      %v1110 = vpack.c.b16 %v1093, %v1092
      %v1111 = vpack.c.b16 %v1095, %v1094
      %v1113 = vsel %vm396, %v1096, 0
      %v1116 = vsel %vm396, %v1097, 0
      %v1119 = vsel %vm396, %v1098, 0
      %v1122 = vsel %vm396, %v1099, 0
      %v1125 = vsel %vm396, %v1100, 0
      %v1128 = vsel %vm396, %v1101, 0
      %v1131 = vsel %vm396, %v1102, 0
      %v1134 = vsel %vm396, %v1103, 0
      %v1137 = vsel %vm396, %v1104, 0
      %v1140 = vsel %vm396, %v1105, 0
      %v1143 = vsel %vm396, %v1106, 0
      %v1146 = vsel %vm396, %v1107, 0
      %v1149 = vsel %vm396, %v1108, 0
      %v1152 = vsel %vm396, %v1109, 0
      %v1155 = vsel %vm396, %v1110, 0
      %v1158 = vsel %vm396, %v1111, 0
      %1160 = vmatpush.bf16.msra.mxu0 0
      %1161 = vmatpush.bf16.msra.mxu0 0
      %1162 = vmatpush.bf16.msra.mxu0 0
      %1163 = vmatpush.bf16.msra.mxu0 0
      %1164 = vmatpush.bf16.msra.mxu0 0
      %1165 = vmatpush.bf16.msra.mxu0 0
      %1166 = vmatpush.bf16.msra.mxu0 %v393
      %1167 = vmatpush.bf16.msra.mxu0 %v392
      %1168 = vmatmul.bf16.gmra.mxu0 %v1113
      %v1169 = vpop.f32.mrf.mxu0
      %v1170 = vadd.f32 0.0, %v1169
      %v1171 = vpop.f32.mrf.mxu0
      %v1172 = vadd.f32 0.0, %v1171
      %1173 = vmatmul.bf16.gmra.mxu0 %v1116
      %v1174 = vpop.f32.mrf.mxu0
      %v1175 = vadd.f32 0.0, %v1174
      %v1176 = vpop.f32.mrf.mxu0
      %v1177 = vadd.f32 0.0, %v1176
      %1178 = vmatmul.bf16.gmra.mxu0 %v1119
      %v1179 = vpop.f32.mrf.mxu0
      %v1180 = vadd.f32 0.0, %v1179
      %v1181 = vpop.f32.mrf.mxu0
      %v1182 = vadd.f32 0.0, %v1181
      %1183 = vmatmul.bf16.gmra.mxu0 %v1122
      %v1184 = vpop.f32.mrf.mxu0
      %v1185 = vadd.f32 0.0, %v1184
      %v1186 = vpop.f32.mrf.mxu0
      %v1187 = vadd.f32 0.0, %v1186
      %1188 = vmatmul.bf16.gmra.mxu0 %v1125
      %v1189 = vpop.f32.mrf.mxu0
      %v1190 = vadd.f32 0.0, %v1189
      %v1191 = vpop.f32.mrf.mxu0
      %v1192 = vadd.f32 0.0, %v1191
      %1193 = vmatmul.bf16.gmra.mxu0 %v1128
      %v1194 = vpop.f32.mrf.mxu0
      %v1195 = vadd.f32 0.0, %v1194
      %v1196 = vpop.f32.mrf.mxu0
      %v1197 = vadd.f32 0.0, %v1196
      %1198 = vmatmul.bf16.gmra.mxu0 %v1131
      %v1199 = vpop.f32.mrf.mxu0
      %v1200 = vadd.f32 0.0, %v1199
      %v1201 = vpop.f32.mrf.mxu0
      %v1202 = vadd.f32 0.0, %v1201
      %1203 = vmatmul.bf16.gmra.mxu0 %v1134
      %v1204 = vpop.f32.mrf.mxu0
      %v1205 = vadd.f32 0.0, %v1204
      %v1206 = vpop.f32.mrf.mxu0
      %v1207 = vadd.f32 0.0, %v1206
      %1208 = vmatmul.bf16.gmra.mxu0 %v1137
      %v1209 = vpop.f32.mrf.mxu0
      %v1210 = vadd.f32 0.0, %v1209
      %v1211 = vpop.f32.mrf.mxu0
      %v1212 = vadd.f32 0.0, %v1211
      %1213 = vmatmul.bf16.gmra.mxu0 %v1140
      %v1214 = vpop.f32.mrf.mxu0
      %v1215 = vadd.f32 0.0, %v1214
      %v1216 = vpop.f32.mrf.mxu0
      %v1217 = vadd.f32 0.0, %v1216
      %1218 = vmatmul.bf16.gmra.mxu0 %v1143
      %v1219 = vpop.f32.mrf.mxu0
      %v1220 = vadd.f32 0.0, %v1219
      %v1221 = vpop.f32.mrf.mxu0
      %v1222 = vadd.f32 0.0, %v1221
      %1223 = vmatmul.bf16.gmra.mxu0 %v1146
      %v1224 = vpop.f32.mrf.mxu0
      %v1225 = vadd.f32 0.0, %v1224
      %v1226 = vpop.f32.mrf.mxu0
      %v1227 = vadd.f32 0.0, %v1226
      %1228 = vmatmul.bf16.gmra.mxu0 %v1149
      %v1229 = vpop.f32.mrf.mxu0
      %v1230 = vadd.f32 0.0, %v1229
      %v1231 = vpop.f32.mrf.mxu0
      %v1232 = vadd.f32 0.0, %v1231
      %1233 = vmatmul.bf16.gmra.mxu0 %v1152
      %v1234 = vpop.f32.mrf.mxu0
      %v1235 = vadd.f32 0.0, %v1234
      %v1236 = vpop.f32.mrf.mxu0
      %v1237 = vadd.f32 0.0, %v1236
      %1238 = vmatmul.bf16.gmra.mxu0 %v1155
      %v1239 = vpop.f32.mrf.mxu0
      %v1240 = vadd.f32 0.0, %v1239
      %v1241 = vpop.f32.mrf.mxu0
      %v1242 = vadd.f32 0.0, %v1241
      %1243 = vmatmul.bf16.gmra.mxu0 %v1158
      %v1244 = vpop.f32.mrf.mxu0
      %v1245 = vadd.f32 0.0, %v1244
      %v1246 = vpop.f32.mrf.mxu0
      %v1247 = vadd.f32 0.0, %v1246
      %1248 = vdwg.mxu0
      %v1249 = vmax.f32 %v1000, %v1170
      %v1250 = vmax.f32 %v1001, %v1172
      %v1251 = vmax.f32 %v1002, %v1175
      %v1252 = vmax.f32 %v1003, %v1177
      %v1253 = vmax.f32 %v1004, %v1180
      %v1254 = vmax.f32 %v1005, %v1182
      %v1255 = vmax.f32 %v1006, %v1185
      %v1256 = vmax.f32 %v1007, %v1187
      %v1257 = vmax.f32 %v1008, %v1190
      %v1258 = vmax.f32 %v1009, %v1192
      %v1259 = vmax.f32 %v1010, %v1195
      %v1260 = vmax.f32 %v1011, %v1197
      %v1261 = vmax.f32 %v1012, %v1200
      %v1262 = vmax.f32 %v1013, %v1202
      %v1263 = vmax.f32 %v1014, %v1205
      %v1264 = vmax.f32 %v1015, %v1207
      %v1265 = vmax.f32 %v1016, %v1210
      %v1266 = vmax.f32 %v1017, %v1212
      %v1267 = vmax.f32 %v1018, %v1215
      %v1268 = vmax.f32 %v1019, %v1217
      %v1269 = vmax.f32 %v1020, %v1220
      %v1270 = vmax.f32 %v1021, %v1222
      %v1271 = vmax.f32 %v1022, %v1225
      %v1272 = vmax.f32 %v1023, %v1227
      %v1273 = vmax.f32 %v1024, %v1230
      %v1274 = vmax.f32 %v1025, %v1232
      %v1275 = vmax.f32 %v1026, %v1235
      %v1276 = vmax.f32 %v1027, %v1237
      %v1277 = vmax.f32 %v1028, %v1240
      %v1278 = vmax.f32 %v1029, %v1242
      %v1279 = vmax.f32 %v1030, %v1245
      %v1280 = vmax.f32 %v1031, %v1247
      %v1281 = vld [vmem:[%s2] sm:$0x1]
      %v1283 = vperm.slane %v1281, 0
      %v1285 = vadd.f32 %v1249, %v1283
      %v1286 = vadd.f32 %v1250, %v1283
      %v1287 = vadd.f32 %v1251, %v1283
      %v1288 = vadd.f32 %v1252, %v1283
      %v1289 = vadd.f32 %v1253, %v1283
      %v1290 = vadd.f32 %v1254, %v1283
      %v1291 = vadd.f32 %v1255, %v1283
      %v1292 = vadd.f32 %v1256, %v1283
      %v1293 = vadd.f32 %v1257, %v1283
      %v1294 = vadd.f32 %v1258, %v1283
      %v1295 = vadd.f32 %v1259, %v1283
      %v1296 = vadd.f32 %v1260, %v1283
      %v1297 = vadd.f32 %v1261, %v1283
      %v1298 = vadd.f32 %v1262, %v1283
      %v1299 = vadd.f32 %v1263, %v1283
      %v1300 = vadd.f32 %v1264, %v1283
      %v1301 = vadd.f32 %v1265, %v1283
      %v1302 = vadd.f32 %v1266, %v1283
      %v1303 = vadd.f32 %v1267, %v1283
      %v1304 = vadd.f32 %v1268, %v1283
      %v1305 = vadd.f32 %v1269, %v1283
      %v1306 = vadd.f32 %v1270, %v1283
      %v1307 = vadd.f32 %v1271, %v1283
      %v1308 = vadd.f32 %v1272, %v1283
      %v1309 = vadd.f32 %v1273, %v1283
      %v1310 = vadd.f32 %v1274, %v1283
      %v1311 = vadd.f32 %v1275, %v1283
      %v1312 = vadd.f32 %v1276, %v1283
      %v1313 = vadd.f32 %v1277, %v1283
      %v1314 = vadd.f32 %v1278, %v1283
      %v1315 = vadd.f32 %v1279, %v1283
      %v1316 = vadd.f32 %v1280, %v1283
      %v1317 = vmax.f32 %v1285, 0.0
      %v1318 = vmax.f32 %v1286, 0.0
      %v1319 = vmax.f32 %v1287, 0.0
      %v1320 = vmax.f32 %v1288, 0.0
      %v1321 = vmax.f32 %v1289, 0.0
      %v1322 = vmax.f32 %v1290, 0.0
      %v1323 = vmax.f32 %v1291, 0.0
      %v1324 = vmax.f32 %v1292, 0.0
      %v1325 = vmax.f32 %v1293, 0.0
      %v1326 = vmax.f32 %v1294, 0.0
      %v1327 = vmax.f32 %v1295, 0.0
      %v1328 = vmax.f32 %v1296, 0.0
      %v1329 = vmax.f32 %v1297, 0.0
      %v1330 = vmax.f32 %v1298, 0.0
      %v1331 = vmax.f32 %v1299, 0.0
      %v1332 = vmax.f32 %v1300, 0.0
      %v1333 = vmax.f32 %v1301, 0.0
      %v1334 = vmax.f32 %v1302, 0.0
      %v1335 = vmax.f32 %v1303, 0.0
      %v1336 = vmax.f32 %v1304, 0.0
      %v1337 = vmax.f32 %v1305, 0.0
      %v1338 = vmax.f32 %v1306, 0.0
      %v1339 = vmax.f32 %v1307, 0.0
      %v1340 = vmax.f32 %v1308, 0.0
      %v1341 = vmax.f32 %v1309, 0.0
      %v1342 = vmax.f32 %v1310, 0.0
      %v1343 = vmax.f32 %v1311, 0.0
      %v1344 = vmax.f32 %v1312, 0.0
      %v1345 = vmax.f32 %v1313, 0.0
      %v1346 = vmax.f32 %v1314, 0.0
      %v1347 = vmax.f32 %v1315, 0.0
      %v1348 = vmax.f32 %v1316, 0.0
      %1349 = vst [vmem:[%s170] sm:$0xff] %v1317
      %1350 = vst [vmem:[%s170 + $0x8] sm:$0xff] %v1318
      %1351 = vst [vmem:[%s170 + $0x10] sm:$0xff] %v1319
      %1352 = vst [vmem:[%s170 + $0x18] sm:$0xff] %v1320
      %1353 = vst [vmem:[%s170 + $0x20] sm:$0xff] %v1321
      %1354 = vst [vmem:[%s170 + $0x28] sm:$0xff] %v1322
      %1355 = vst [vmem:[%s170 + $0x30] sm:$0xff] %v1323
      %1356 = vst [vmem:[%s170 + $0x38] sm:$0xff] %v1324
      %1357 = vst [vmem:[%s170 + $0x40] sm:$0xff] %v1325
      %1358 = vst [vmem:[%s170 + $0x48] sm:$0xff] %v1326
      %1359 = vst [vmem:[%s170 + $0x50] sm:$0xff] %v1327
      %1360 = vst [vmem:[%s170 + $0x58] sm:$0xff] %v1328
      %1361 = vst [vmem:[%s170 + $0x60] sm:$0xff] %v1329
      %1362 = vst [vmem:[%s170 + $0x68] sm:$0xff] %v1330
      %1363 = vst [vmem:[%s170 + $0x70] sm:$0xff] %v1331
      %1364 = vst [vmem:[%s170 + $0x78] sm:$0xff] %v1332
      %1365 = vst [vmem:[%s170 + $0x80] sm:$0xff] %v1333
      %1366 = vst [vmem:[%s170 + $0x88] sm:$0xff] %v1334
      %1367 = vst [vmem:[%s170 + $0x90] sm:$0xff] %v1335
      %1368 = vst [vmem:[%s170 + $0x98] sm:$0xff] %v1336
      %1369 = vst [vmem:[%s170 + $0xa0] sm:$0xff] %v1337
      %1370 = vst [vmem:[%s170 + $0xa8] sm:$0xff] %v1338
      %1371 = vst [vmem:[%s170 + $0xb0] sm:$0xff] %v1339
      %1372 = vst [vmem:[%s170 + $0xb8] sm:$0xff] %v1340
      %1373 = vst [vmem:[%s170 + $0xc0] sm:$0xff] %v1341
      %1374 = vst [vmem:[%s170 + $0xc8] sm:$0xff] %v1342
      %1375 = vst [vmem:[%s170 + $0xd0] sm:$0xff] %v1343
      %1376 = vst [vmem:[%s170 + $0xd8] sm:$0xff] %v1344
      %1377 = vst [vmem:[%s170 + $0xe0] sm:$0xff] %v1345
      %1378 = vst [vmem:[%s170 + $0xe8] sm:$0xff] %v1346
      %1379 = vst [vmem:[%s170 + $0xf0] sm:$0xff] %v1347
      %1380 = vst [vmem:[%s170 + $0xf8] sm:$0xff] %v1348
      %p1381 = scmp.lt.s32.totalorder %s14, 1
      %s1382 = scalar_select %p1381, %s14, 1
      %s1383 = smul.addr %s1382, 32
      %s1384 = smul.addr %s1383, 8
      %s1385 = scalar_lea.vmem %s3, %s1384
      // Predicated region
      $region33: #{simple_cnn_forward.4} parent=31 // pred_check
        %p1386 = pneg %p100
      $region34: #{simple_cnn_forward.4} parent=31 // pred_check_branch
        %1388 = sbr.rel (%p1386) target = $region36
      $region35: #{simple_cnn_forward.4} parent=31 // pred_region
        _
      $region36: #{simple_cnn_forward.4} parent=31 // pred_fallthru
        _
    $region32: #{simple_cnn_forward.4} parent=5 // pred_fallthru
      _
    %p1389 = scmp.le.s32.totalorder 2, %s9
    // Predicated region
    $region37: #{simple_cnn_forward.4} parent=5 // pred_check
      %p1390 = pneg %p1389
    $region38: #{simple_cnn_forward.4} parent=5 // pred_check_branch
      %1392 = sbr.rel (%p1390) target = $region40
    $region39: #{simple_cnn_forward.4} parent=5 // pred_region
      %s1393 = ssub.s32 %s9, 2
      // Predicated region
      $region41: #{simple_cnn_forward.4} parent=39 // pred_check
        %p1394 = pneg %p106
      $region42: #{simple_cnn_forward.4} parent=39 // pred_check_branch
        %1396 = sbr.rel (%p1394) target = $region44
      $region43: #{simple_cnn_forward.4} parent=39 // pred_region
        %p1397 = scmp.lt.s32.totalorder %s15, 1
        %s1398 = scalar_select %p1397, %s15, 1
        %s1399 = smul.addr %s1398, 32
        %s1400 = smul.addr %s1399, 8
        %s1401 = scalar_lea.vmem %s3, %s1400
      $region44: #{simple_cnn_forward.4} parent=39 // pred_fallthru
        _
    $region40: #{simple_cnn_forward.4} parent=5 // pred_fallthru
      _
  $region6: #{simple_cnn_forward.4} parent=0 // loop_footer
    %s13 = sadd.s32 1, %s9
  $region7: #{simple_cnn_forward.4} parent=0 // loop_footer_branch
    %8 = sbr.rel target = $region3
  $region8: #{simple_cnn_forward.4} parent=0 // loop_exit
    _

// kernel: simple_cnn_forward.5
$region0: #{simple_cnn_forward.5}
  #allocation0 [shape = 'u32[]', space=smem, size = 0x4, offset = 0x4, fixed_abs, tag = 'smem constant byte address 0x4 - core index']
  #allocation1 [shape = 'u32[72,128]{1,0:T(1,128)}', space=vmem, size = 0x9000, scoped, tag = 'internal scratch']
  %s0 = inlined_call_operand.vmem [shape: bf16[2,256,144], index: 0, kind: input, shape index: {}]
  %s1 = inlined_call_operand.vmem [shape: bf16[144,128], index: 1, kind: input, shape index: {}]
  %s2 = inlined_call_operand.vmem [shape: f32[1,128], index: 2, kind: input, shape index: {}]
  %s3 = inlined_call_operand.vmem [shape: f32[2,64,128], index: 3, kind: output, shape index: {}]
  %s4 = sld [smem:[#allocation0]]
  $region45: #{simple_cnn_forward.5} parent=0
    _
  %s6 = ssub.s32 1, %s4
  %s7 = scalar_select 0, %s6, %s4
  loop: start=0, step=1, limit=4
  $region2: #{simple_cnn_forward.5} parent=0 // loop_pre_header
    _
  $region3: #{simple_cnn_forward.5} parent=0 // loop_header
    %s9 = sphi 0, %s13
    %p10 = scmp.ge.s32.totalorder %s9, 4
    %s19 = sphi 0, %s21
    %s22 = sphi 0, %s19
    %s23 = sphi 0, %s22
    %s39 = sphi 0, %s23
    %s43 = sphi 0, %s43
    %s45 = sphi 0, %s43
    %s46 = sphi 0, %s45
    %s60 = sphi 0, %s46
    %s64 = sphi 0, %s64
    %s66 = sphi 0, %s64
    %s67 = sphi 0, %s66
    %s81 = sphi 0, %s67
    %s87 = sphi 0, %s89
    %s90 = sphi 0, %s87
    %s91 = sphi 0, %s90
    %s107 = sphi 0, %s91
  $region4: #{simple_cnn_forward.5} parent=0 // loop_header_branch
    %12 = sbr.rel (%p10) target = $region8
  $region5: #{simple_cnn_forward.5} parent=0 // loop_body
    %s14 = ssub.s32 %s9, 1
    %s15 = ssub.s32 %s9, 2
    %s16 = sadd.s32 %s9, 1
    %s17 = ssub.s32 %s9, %s16
    %p18 = scmp.eq.s32.totalorder %s17, 0
    %s20 = sadd.s32 %s19, 1
    %s21 = scalar_select %p18, %s19, %s20
    %p24 = pneg %p18
    %p25 = scmp.eq.s32.totalorder %s9, 1
    %p26 = por %p24, %p25
    %p27 = scmp.ne.s32.totalorder %s19, %s22
    %p28 = scmp.eq.s32.totalorder %s9, 0
    %p29 = por %p27, %p28
    %p30 = scmp.ne.s32.totalorder %s19, %s22
    %p31 = scmp.eq.s32.totalorder %s14, 1
    %p32 = por %p30, %p31
    %p33 = scmp.ne.s32.totalorder %s22, %s23
    %p34 = scmp.eq.s32.totalorder %s14, 0
    %p35 = por %p33, %p34
    %p36 = scmp.ne.s32.totalorder %s22, %s23
    %p37 = scmp.eq.s32.totalorder %s15, 1
    %p38 = por %p36, %p37
    %p40 = scmp.ne.s32.totalorder %s23, %s39
    %p41 = scmp.eq.s32.totalorder %s15, 0
    %p42 = por %p40, %p41
    %s44 = sadd.s32 %s43, 1
    %p47 = scmp.eq.s32.totalorder %s9, 1
    %p48 = scmp.ne.s32.totalorder %s43, %s45
    %p49 = scmp.eq.s32.totalorder %s9, 0
    %p50 = por %p48, %p49
    %p51 = scmp.ne.s32.totalorder %s43, %s45
    %p52 = scmp.eq.s32.totalorder %s14, 1
    %p53 = por %p51, %p52
    %p54 = scmp.ne.s32.totalorder %s45, %s46
    %p55 = scmp.eq.s32.totalorder %s14, 0
    %p56 = por %p54, %p55
    %p57 = scmp.ne.s32.totalorder %s45, %s46
    %p58 = scmp.eq.s32.totalorder %s15, 1
    %p59 = por %p57, %p58
    %p61 = scmp.ne.s32.totalorder %s46, %s60
    %p62 = scmp.eq.s32.totalorder %s15, 0
    %p63 = por %p61, %p62
    %s65 = sadd.s32 %s64, 1
    %p68 = scmp.eq.s32.totalorder %s9, 1
    %p69 = scmp.ne.s32.totalorder %s64, %s66
    %p70 = scmp.eq.s32.totalorder %s9, 0
    %p71 = por %p69, %p70
    %p72 = scmp.ne.s32.totalorder %s64, %s66
    %p73 = scmp.eq.s32.totalorder %s14, 1
    %p74 = por %p72, %p73
    %p75 = scmp.ne.s32.totalorder %s66, %s67
    %p76 = scmp.eq.s32.totalorder %s14, 0
    %p77 = por %p75, %p76
    %p78 = scmp.ne.s32.totalorder %s66, %s67
    %p79 = scmp.eq.s32.totalorder %s15, 1
    %p80 = por %p78, %p79
    %p82 = scmp.ne.s32.totalorder %s67, %s81
    %p83 = scmp.eq.s32.totalorder %s15, 0
    %p84 = por %p82, %p83
    %s85 = ssub.s32 %s9, %s16
    %p86 = scmp.eq.s32.totalorder %s85, 0
    %s88 = sadd.s32 %s87, 1
    %s89 = scalar_select %p86, %s87, %s88
    %p92 = pneg %p86
    %p93 = scmp.eq.s32.totalorder %s9, 1
    %p94 = por %p92, %p93
    %p95 = scmp.ne.s32.totalorder %s87, %s90
    %p96 = scmp.eq.s32.totalorder %s9, 0
    %p97 = por %p95, %p96
    %p98 = scmp.ne.s32.totalorder %s87, %s90
    %p99 = scmp.eq.s32.totalorder %s14, 1
    %p100 = por %p98, %p99
    %p101 = scmp.ne.s32.totalorder %s90, %s91
    %p102 = scmp.eq.s32.totalorder %s14, 0
    %p103 = por %p101, %p102
    %p104 = scmp.ne.s32.totalorder %s90, %s91
    %p105 = scmp.eq.s32.totalorder %s15, 1
    %p106 = por %p104, %p105
    %p108 = scmp.ne.s32.totalorder %s91, %s107
    %p109 = scmp.eq.s32.totalorder %s15, 0
    %p110 = por %p108, %p109
    %p111 = scmp.le.s32.totalorder 1, %s9
    %p112 = scmp.lt.s32.totalorder %s9, 3
    %p113 = pnand %p111, %p112
    %p114 = pneg %p113
    // Predicated region
    $region9: #{simple_cnn_forward.5} parent=5 // pred_check
      _
    $region10: #{simple_cnn_forward.5} parent=5 // pred_check_branch
      %116 = sbr.rel (%p113) target = $region12
    $region11: #{simple_cnn_forward.5} parent=5 // pred_region
      %s117 = ssub.s32 %s9, 1
      // Predicated region
      $region13: #{simple_cnn_forward.5} parent=11 // pred_check
        %p118 = pneg %p56
      $region14: #{simple_cnn_forward.5} parent=11 // pred_check_branch
        %120 = sbr.rel (%p118) target = $region16
      $region15: #{simple_cnn_forward.5} parent=11 // pred_region
        _
      $region16: #{simple_cnn_forward.5} parent=11 // pred_fallthru
        _
      // Predicated region
      $region17: #{simple_cnn_forward.5} parent=11 // pred_check
        %p121 = pneg %p77
      $region18: #{simple_cnn_forward.5} parent=11 // pred_check_branch
        %123 = sbr.rel (%p121) target = $region20
      $region19: #{simple_cnn_forward.5} parent=11 // pred_region
        _
      $region20: #{simple_cnn_forward.5} parent=11 // pred_fallthru
        _
    $region12: #{simple_cnn_forward.5} parent=5 // pred_fallthru
      _
    %p124 = scmp.lt.s32.totalorder %s9, 2
    // Predicated region
    $region21: #{simple_cnn_forward.5} parent=5 // pred_check
      %p125 = pneg %p124
    $region22: #{simple_cnn_forward.5} parent=5 // pred_check_branch
      %127 = sbr.rel (%p125) target = $region24
    $region23: #{simple_cnn_forward.5} parent=5 // pred_region
      // Predicated region
      $region25: #{simple_cnn_forward.5} parent=23 // pred_check
        %p128 = pneg %p29
      $region26: #{simple_cnn_forward.5} parent=23 // pred_check_branch
        %130 = sbr.rel (%p128) target = $region28
      $region27: #{simple_cnn_forward.5} parent=23 // pred_region
        %p131 = scmp.lt.s32.totalorder %s9, 1
        %s132 = scalar_select %p131, %s9, 1
        %s133 = smul.addr %s132, 64
        %s134 = smul.addr %s133, 4
        %s135 = scalar_lea.vmem %s0, %s134
      $region28: #{simple_cnn_forward.5} parent=23 // pred_fallthru
        _
    $region24: #{simple_cnn_forward.5} parent=5 // pred_fallthru
      _
    %p136 = scmp.le.s32.totalorder 1, %s9
    %p137 = scmp.lt.s32.totalorder %s9, 3
    %p138 = pnand %p136, %p137
    %p139 = pneg %p138
    // Predicated region
    $region29: #{simple_cnn_forward.5} parent=5 // pred_check
      _
    $region30: #{simple_cnn_forward.5} parent=5 // pred_check_branch
      %141 = sbr.rel (%p138) target = $region32
    $region31: #{simple_cnn_forward.5} parent=5 // pred_region
      %s142 = ssub.s32 %s9, 1
      %p143 = scmp.lt.s32.totalorder %s14, 1
      %s144 = scalar_select %p143, %s14, 1
      %s145 = smul.addr %s144, 64
      %s146 = smul.addr %s145, 4
      %s147 = scalar_lea.vmem %s0, %s146
      %p148 = pneg %p35
      %p149 = pneg %p32
      %p150 = pneg %p56
      %p151 = pneg %p53
      %p152 = pneg %p77
      %p153 = pneg %p74
      %p154 = pneg %p103
      %p155 = pneg %p100
      %p156 = scmp.lt.s32.totalorder %s14, 1
      %s157 = scalar_select %p156, %s14, 1
      %s158 = smul.addr %s157, 8
      %s159 = smul.addr %s158, 8
      %s160 = scalar_lea.vmem %s3, %s159
      %p161 = scmp.lt.s32.totalorder %s14, 1
      %s162 = scalar_select %p161, %s14, 1
      %s163 = smul.addr %s162, 64
      %s164 = smul.addr %s163, 4
      %s165 = scalar_lea.vmem %s0, %s164
      %p166 = scmp.lt.s32.totalorder %s14, 1
      %s167 = scalar_select %p166, %s14, 1
      %s168 = smul.addr %s167, 8
      %s169 = smul.addr %s168, 8
      %s170 = scalar_lea.vmem %s3, %s169
      %v172 = vld [vmem:[%s165] sm:$0xff]
      %v173 = vld [vmem:[%s165 + $0x8] sm:$0xff]
      %v174 = vld [vmem:[%s165 + $0x10] sm:$0xff]
      %v175 = vld [vmem:[%s165 + $0x18] sm:$0xff]
      %v176 = vld [vmem:[%s165 + $0x20] sm:$0xff]
      %v177 = vld [vmem:[%s165 + $0x28] sm:$0xff]
      %v178 = vld [vmem:[%s165 + $0x30] sm:$0xff]
      %v179 = vld [vmem:[%s165 + $0x38] sm:$0xff]
      %v180 = vld [vmem:[%s165 + $0x40] sm:$0xff]
      %v181 = vld [vmem:[%s165 + $0x48] sm:$0xff]
      %v182 = vld [vmem:[%s165 + $0x50] sm:$0xff]
      %v183 = vld [vmem:[%s165 + $0x58] sm:$0xff]
      %v184 = vld [vmem:[%s165 + $0x60] sm:$0xff]
      %v185 = vld [vmem:[%s165 + $0x68] sm:$0xff]
      %v186 = vld [vmem:[%s165 + $0x70] sm:$0xff]
      %v187 = vld [vmem:[%s165 + $0x78] sm:$0xff]
      %v188 = vld [vmem:[%s165 + $0x80] sm:$0xff]
      %v189 = vld [vmem:[%s165 + $0x88] sm:$0xff]
      %v190 = vld [vmem:[%s165 + $0x90] sm:$0xff]
      %v191 = vld [vmem:[%s165 + $0x98] sm:$0xff]
      %v192 = vld [vmem:[%s165 + $0xa0] sm:$0xff]
      %v193 = vld [vmem:[%s165 + $0xa8] sm:$0xff]
      %v194 = vld [vmem:[%s165 + $0xb0] sm:$0xff]
      %v195 = vld [vmem:[%s165 + $0xb8] sm:$0xff]
      %v196 = vld [vmem:[%s165 + $0xc0] sm:$0xff]
      %v197 = vld [vmem:[%s165 + $0xc8] sm:$0xff]
      %v198 = vld [vmem:[%s165 + $0xd0] sm:$0xff]
      %v199 = vld [vmem:[%s165 + $0xd8] sm:$0xff]
      %v200 = vld [vmem:[%s165 + $0xe0] sm:$0xff]
      %v201 = vld [vmem:[%s165 + $0xe8] sm:$0xff]
      %v202 = vld [vmem:[%s165 + $0xf0] sm:$0xff]
      %v203 = vld [vmem:[%s165 + $0xf8] sm:$0xff]
      %v204 = vld [vmem:[%s1] sm:$0xf]
      %v205 = vld [vmem:[%s1 + $0x4] sm:$0xf]
      %v206 = vld [vmem:[%s1 + $0x8] sm:$0xf]
      %v207 = vld [vmem:[%s1 + $0xc] sm:$0xf]
      %v208 = vld [vmem:[%s1 + $0x10] sm:$0xf]
      %v209 = vld [vmem:[%s1 + $0x14] sm:$0xf]
      %v210 = vld [vmem:[%s1 + $0x18] sm:$0xf]
      %v211 = vld [vmem:[%s1 + $0x1c] sm:$0xf]
      %v212 = vld [vmem:[%s1 + $0x20] sm:$0xf]
      %v213 = vld [vmem:[%s1 + $0x24] sm:$0xf]
      %v214 = vld [vmem:[%s1 + $0x28] sm:$0xf]
      %v215 = vld [vmem:[%s1 + $0x2c] sm:$0xf]
      %v216 = vld [vmem:[%s1 + $0x30] sm:$0xf]
      %v217 = vld [vmem:[%s1 + $0x34] sm:$0xf]
      %v218 = vld [vmem:[%s1 + $0x38] sm:$0xf]
      %v219 = vld [vmem:[%s1 + $0x3c] sm:$0xf]
      %v220 = vld [vmem:[%s1 + $0x40] sm:$0xf]
      %v221 = vld [vmem:[%s1 + $0x44] sm:$0xf]
      %v230 = vunpack.c.l.b16 %v172
      %v231 = vunpack.c.h.b16 %v172
      %v232 = vunpack.c.l.b16 %v173
      %v233 = vunpack.c.h.b16 %v173
      %v234 = vunpack.c.l.b16 %v174
      %v235 = vunpack.c.h.b16 %v174
      %v236 = vunpack.c.l.b16 %v175
      %v237 = vunpack.c.h.b16 %v175
      %v238 = vunpack.c.l.b16 %v176
      %v239 = vunpack.c.h.b16 %v176
      %v240 = vunpack.c.l.b16 %v177
      %v241 = vunpack.c.h.b16 %v177
      %v242 = vunpack.c.l.b16 %v178
      %v243 = vunpack.c.h.b16 %v178
      %v244 = vunpack.c.l.b16 %v179
      %v245 = vunpack.c.h.b16 %v179
      %v246 = vpack.c.b16 %v232, %v230
      %v247 = vpack.c.b16 %v233, %v231
      %v248 = vpack.c.b16 %v236, %v234
      %v249 = vpack.c.b16 %v237, %v235
      %v250 = vpack.c.b16 %v240, %v238
      %v251 = vpack.c.b16 %v241, %v239
      %v252 = vpack.c.b16 %v244, %v242
      %v253 = vpack.c.b16 %v245, %v243
      %v276 = vunpack.c.l.b16 %v204
      %v277 = vunpack.c.l.b16 %v205
      %v278 = vunpack.c.l.b16 %v206
      %v279 = vunpack.c.l.b16 %v207
      %v280 = vunpack.c.l.b16 %v208
      %v281 = vunpack.c.l.b16 %v209
      %v282 = vunpack.c.l.b16 %v210
      %v283 = vunpack.c.l.b16 %v211
      %v284 = vunpack.c.l.b16 %v212
      %v285 = vunpack.c.l.b16 %v213
      %v286 = vunpack.c.l.b16 %v214
      %v287 = vunpack.c.l.b16 %v215
      %v288 = vunpack.c.l.b16 %v216
      %v289 = vunpack.c.l.b16 %v217
      %v290 = vunpack.c.l.b16 %v218
      %v291 = vunpack.c.l.b16 %v219
      %v292 = vunpack.c.l.b16 %v220
      %v293 = vunpack.c.l.b16 %v221
      %v294 = vpack.c.b16 %v277, %v276
      %v295 = vpack.c.b16 %v279, %v278
      %v296 = vpack.c.b16 %v281, %v280
      %v297 = vpack.c.b16 %v283, %v282
      %v298 = vpack.c.b16 %v285, %v284
      %v299 = vpack.c.b16 %v287, %v286
      %v300 = vpack.c.b16 %v289, %v288
      %v301 = vpack.c.b16 %v291, %v290
      %v302 = vpack.c.b16 %v293, %v292
      %vm312 = vcmask 130048
      %v314 = vsel %vm312, %v247, 0
      %v317 = vsel %vm312, %v249, 0
      %v320 = vsel %vm312, %v251, 0
      %v323 = vsel %vm312, %v253, 0
      %325 = vmatpush.bf16.msra.mxu0 %v301
      %326 = vmatpush.bf16.msra.mxu0 %v300
      %327 = vmatpush.bf16.msra.mxu0 %v299
      %328 = vmatpush.bf16.msra.mxu0 %v298
      %329 = vmatpush.bf16.msra.mxu0 %v297
      %330 = vmatpush.bf16.msra.mxu0 %v296
      %331 = vmatpush.bf16.msra.mxu0 %v295
      %332 = vmatpush.bf16.msra.mxu0 %v294
      %333 = vmatmul.bf16.gmra.mxu0 %v246
      %v334 = vpop.f32.mrf.mxu0
      %v335 = vadd.f32 0.0, %v334
      %v336 = vpop.f32.mrf.mxu0
      %v337 = vadd.f32 0.0, %v336
      %338 = vmatmul.bf16.gmra.mxu0 %v248
      %v339 = vpop.f32.mrf.mxu0
      %v340 = vadd.f32 0.0, %v339
      %v341 = vpop.f32.mrf.mxu0
      %v342 = vadd.f32 0.0, %v341
      %343 = vmatmul.bf16.gmra.mxu0 %v250
      %v344 = vpop.f32.mrf.mxu0
      %v345 = vadd.f32 0.0, %v344
      %v346 = vpop.f32.mrf.mxu0
      %v347 = vadd.f32 0.0, %v346
      %348 = vmatmul.bf16.gmra.mxu0 %v252
      %v349 = vpop.f32.mrf.mxu0
      %v350 = vadd.f32 0.0, %v349
      %v351 = vpop.f32.mrf.mxu0
      %v352 = vadd.f32 0.0, %v351
      %353 = vdwg.mxu0
      %354 = vmatpush.bf16.msra.mxu0 0
      %355 = vmatpush.bf16.msra.mxu0 0
      %356 = vmatpush.bf16.msra.mxu0 0
      %357 = vmatpush.bf16.msra.mxu0 0
      %358 = vmatpush.bf16.msra.mxu0 0
      %359 = vmatpush.bf16.msra.mxu0 0
      %360 = vmatpush.bf16.msra.mxu0 0
      %361 = vmatpush.bf16.msra.mxu0 %v302
      %362 = vmatmul.bf16.gmra.mxu0 %v314
      %v363 = vpop.f32.mrf.mxu0
      %v364 = vadd.f32 %v335, %v363
      %v365 = vpop.f32.mrf.mxu0
      %v366 = vadd.f32 %v337, %v365
      %367 = vmatmul.bf16.gmra.mxu0 %v317
      %v368 = vpop.f32.mrf.mxu0
      %v369 = vadd.f32 %v340, %v368
      %v370 = vpop.f32.mrf.mxu0
      %v371 = vadd.f32 %v342, %v370
      %372 = vmatmul.bf16.gmra.mxu0 %v320
      %v373 = vpop.f32.mrf.mxu0
      %v374 = vadd.f32 %v345, %v373
      %v375 = vpop.f32.mrf.mxu0
      %v376 = vadd.f32 %v347, %v375
      %377 = vmatmul.bf16.gmra.mxu0 %v323
      %v378 = vpop.f32.mrf.mxu0
      %v379 = vadd.f32 %v350, %v378
      %v380 = vpop.f32.mrf.mxu0
      %v381 = vadd.f32 %v352, %v380
      %382 = vdwg.mxu0
      %v391 = vunpack.c.l.b16 %v180
      %v392 = vunpack.c.h.b16 %v180
      %v393 = vunpack.c.l.b16 %v181
      %v394 = vunpack.c.h.b16 %v181
      %v395 = vunpack.c.l.b16 %v182
      %v396 = vunpack.c.h.b16 %v182
      %v397 = vunpack.c.l.b16 %v183
      %v398 = vunpack.c.h.b16 %v183
      %v399 = vunpack.c.l.b16 %v184
      %v400 = vunpack.c.h.b16 %v184
      %v401 = vunpack.c.l.b16 %v185
      %v402 = vunpack.c.h.b16 %v185
      %v403 = vunpack.c.l.b16 %v186
      %v404 = vunpack.c.h.b16 %v186
      %v405 = vunpack.c.l.b16 %v187
      %v406 = vunpack.c.h.b16 %v187
      %v407 = vpack.c.b16 %v393, %v391
      %v408 = vpack.c.b16 %v394, %v392
      %v409 = vpack.c.b16 %v397, %v395
      %v410 = vpack.c.b16 %v398, %v396
      %v411 = vpack.c.b16 %v401, %v399
      %v412 = vpack.c.b16 %v402, %v400
      %v413 = vpack.c.b16 %v405, %v403
      %v414 = vpack.c.b16 %v406, %v404
      %v420 = vsel %vm312, %v408, 0
      %v423 = vsel %vm312, %v410, 0
      %v426 = vsel %vm312, %v412, 0
      %v429 = vsel %vm312, %v414, 0
      %431 = vmatpush.bf16.msra.mxu0 %v301
      %432 = vmatpush.bf16.msra.mxu0 %v300
      %433 = vmatpush.bf16.msra.mxu0 %v299
      %434 = vmatpush.bf16.msra.mxu0 %v298
      %435 = vmatpush.bf16.msra.mxu0 %v297
      %436 = vmatpush.bf16.msra.mxu0 %v296
      %437 = vmatpush.bf16.msra.mxu0 %v295
      %438 = vmatpush.bf16.msra.mxu0 %v294
      %439 = vmatmul.bf16.gmra.mxu0 %v407
      %v440 = vpop.f32.mrf.mxu0
      %v441 = vadd.f32 0.0, %v440
      %v442 = vpop.f32.mrf.mxu0
      %v443 = vadd.f32 0.0, %v442
      %444 = vmatmul.bf16.gmra.mxu0 %v409
      %v445 = vpop.f32.mrf.mxu0
      %v446 = vadd.f32 0.0, %v445
      %v447 = vpop.f32.mrf.mxu0
      %v448 = vadd.f32 0.0, %v447
      %449 = vmatmul.bf16.gmra.mxu0 %v411
      %v450 = vpop.f32.mrf.mxu0
      %v451 = vadd.f32 0.0, %v450
      %v452 = vpop.f32.mrf.mxu0
      %v453 = vadd.f32 0.0, %v452
      %454 = vmatmul.bf16.gmra.mxu0 %v413
      %v455 = vpop.f32.mrf.mxu0
      %v456 = vadd.f32 0.0, %v455
      %v457 = vpop.f32.mrf.mxu0
      %v458 = vadd.f32 0.0, %v457
      %459 = vdwg.mxu0
      %460 = vmatpush.bf16.msra.mxu0 0
      %461 = vmatpush.bf16.msra.mxu0 0
      %462 = vmatpush.bf16.msra.mxu0 0
      %463 = vmatpush.bf16.msra.mxu0 0
      %464 = vmatpush.bf16.msra.mxu0 0
      %465 = vmatpush.bf16.msra.mxu0 0
      %466 = vmatpush.bf16.msra.mxu0 0
      %467 = vmatpush.bf16.msra.mxu0 %v302
      %468 = vmatmul.bf16.gmra.mxu0 %v420
      %v469 = vpop.f32.mrf.mxu0
      %v470 = vadd.f32 %v441, %v469
      %v471 = vpop.f32.mrf.mxu0
      %v472 = vadd.f32 %v443, %v471
      %473 = vmatmul.bf16.gmra.mxu0 %v423
      %v474 = vpop.f32.mrf.mxu0
      %v475 = vadd.f32 %v446, %v474
      %v476 = vpop.f32.mrf.mxu0
      %v477 = vadd.f32 %v448, %v476
      %478 = vmatmul.bf16.gmra.mxu0 %v426
      %v479 = vpop.f32.mrf.mxu0
      %v480 = vadd.f32 %v451, %v479
      %v481 = vpop.f32.mrf.mxu0
      %v482 = vadd.f32 %v453, %v481
      %483 = vmatmul.bf16.gmra.mxu0 %v429
      %v484 = vpop.f32.mrf.mxu0
      %v485 = vadd.f32 %v456, %v484
      %v486 = vpop.f32.mrf.mxu0
      %v487 = vadd.f32 %v458, %v486
      %488 = vdwg.mxu0
      %v489 = vmax.f32 %v364, %v470
      %v490 = vmax.f32 %v366, %v472
      %v491 = vmax.f32 %v369, %v475
      %v492 = vmax.f32 %v371, %v477
      %v493 = vmax.f32 %v374, %v480
      %v494 = vmax.f32 %v376, %v482
      %v495 = vmax.f32 %v379, %v485
      %v496 = vmax.f32 %v381, %v487
      %v505 = vunpack.c.l.b16 %v188
      %v506 = vunpack.c.h.b16 %v188
      %v507 = vunpack.c.l.b16 %v189
      %v508 = vunpack.c.h.b16 %v189
      %v509 = vunpack.c.l.b16 %v190
      %v510 = vunpack.c.h.b16 %v190
      %v511 = vunpack.c.l.b16 %v191
      %v512 = vunpack.c.h.b16 %v191
      %v513 = vunpack.c.l.b16 %v192
      %v514 = vunpack.c.h.b16 %v192
      %v515 = vunpack.c.l.b16 %v193
      %v516 = vunpack.c.h.b16 %v193
      %v517 = vunpack.c.l.b16 %v194
      %v518 = vunpack.c.h.b16 %v194
      %v519 = vunpack.c.l.b16 %v195
      %v520 = vunpack.c.h.b16 %v195
      %v521 = vpack.c.b16 %v507, %v505
      %v522 = vpack.c.b16 %v508, %v506
      %v523 = vpack.c.b16 %v511, %v509
      %v524 = vpack.c.b16 %v512, %v510
      %v525 = vpack.c.b16 %v515, %v513
      %v526 = vpack.c.b16 %v516, %v514
      %v527 = vpack.c.b16 %v519, %v517
      %v528 = vpack.c.b16 %v520, %v518
      %v534 = vsel %vm312, %v522, 0
      %v537 = vsel %vm312, %v524, 0
      %v540 = vsel %vm312, %v526, 0
      %v543 = vsel %vm312, %v528, 0
      %545 = vmatpush.bf16.msra.mxu0 %v301
      %546 = vmatpush.bf16.msra.mxu0 %v300
      %547 = vmatpush.bf16.msra.mxu0 %v299
      %548 = vmatpush.bf16.msra.mxu0 %v298
      %549 = vmatpush.bf16.msra.mxu0 %v297
      %550 = vmatpush.bf16.msra.mxu0 %v296
      %551 = vmatpush.bf16.msra.mxu0 %v295
      %552 = vmatpush.bf16.msra.mxu0 %v294
      %553 = vmatmul.bf16.gmra.mxu0 %v521
      %v554 = vpop.f32.mrf.mxu0
      %v555 = vadd.f32 0.0, %v554
      %v556 = vpop.f32.mrf.mxu0
      %v557 = vadd.f32 0.0, %v556
      %558 = vmatmul.bf16.gmra.mxu0 %v523
      %v559 = vpop.f32.mrf.mxu0
      %v560 = vadd.f32 0.0, %v559
      %v561 = vpop.f32.mrf.mxu0
      %v562 = vadd.f32 0.0, %v561
      %563 = vmatmul.bf16.gmra.mxu0 %v525
      %v564 = vpop.f32.mrf.mxu0
      %v565 = vadd.f32 0.0, %v564
      %v566 = vpop.f32.mrf.mxu0
      %v567 = vadd.f32 0.0, %v566
      %568 = vmatmul.bf16.gmra.mxu0 %v527
      %v569 = vpop.f32.mrf.mxu0
      %v570 = vadd.f32 0.0, %v569
      %v571 = vpop.f32.mrf.mxu0
      %v572 = vadd.f32 0.0, %v571
      %573 = vdwg.mxu0
      %574 = vmatpush.bf16.msra.mxu0 0
      %575 = vmatpush.bf16.msra.mxu0 0
      %576 = vmatpush.bf16.msra.mxu0 0
      %577 = vmatpush.bf16.msra.mxu0 0
      %578 = vmatpush.bf16.msra.mxu0 0
      %579 = vmatpush.bf16.msra.mxu0 0
      %580 = vmatpush.bf16.msra.mxu0 0
      %581 = vmatpush.bf16.msra.mxu0 %v302
      %582 = vmatmul.bf16.gmra.mxu0 %v534
      %v583 = vpop.f32.mrf.mxu0
      %v584 = vadd.f32 %v555, %v583
      %v585 = vpop.f32.mrf.mxu0
      %v586 = vadd.f32 %v557, %v585
      %587 = vmatmul.bf16.gmra.mxu0 %v537
      %v588 = vpop.f32.mrf.mxu0
      %v589 = vadd.f32 %v560, %v588
      %v590 = vpop.f32.mrf.mxu0
      %v591 = vadd.f32 %v562, %v590
      %592 = vmatmul.bf16.gmra.mxu0 %v540
      %v593 = vpop.f32.mrf.mxu0
      %v594 = vadd.f32 %v565, %v593
      %v595 = vpop.f32.mrf.mxu0
      %v596 = vadd.f32 %v567, %v595
      %597 = vmatmul.bf16.gmra.mxu0 %v543
      %v598 = vpop.f32.mrf.mxu0
      %v599 = vadd.f32 %v570, %v598
      %v600 = vpop.f32.mrf.mxu0
      %v601 = vadd.f32 %v572, %v600
      %602 = vdwg.mxu0
      %v603 = vmax.f32 %v489, %v584
      %v604 = vmax.f32 %v490, %v586
      %v605 = vmax.f32 %v491, %v589
      %v606 = vmax.f32 %v492, %v591
      %v607 = vmax.f32 %v493, %v594
      %v608 = vmax.f32 %v494, %v596
      %v609 = vmax.f32 %v495, %v599
      %v610 = vmax.f32 %v496, %v601
      %v619 = vunpack.c.l.b16 %v196
      %v620 = vunpack.c.h.b16 %v196
      %v621 = vunpack.c.l.b16 %v197
      %v622 = vunpack.c.h.b16 %v197
      %v623 = vunpack.c.l.b16 %v198
      %v624 = vunpack.c.h.b16 %v198
      %v625 = vunpack.c.l.b16 %v199
      %v626 = vunpack.c.h.b16 %v199
      %v627 = vunpack.c.l.b16 %v200
      %v628 = vunpack.c.h.b16 %v200
      %v629 = vunpack.c.l.b16 %v201
      %v630 = vunpack.c.h.b16 %v201
      %v631 = vunpack.c.l.b16 %v202
      %v632 = vunpack.c.h.b16 %v202
      %v633 = vunpack.c.l.b16 %v203
      %v634 = vunpack.c.h.b16 %v203
      %v635 = vpack.c.b16 %v621, %v619
      %v636 = vpack.c.b16 %v622, %v620
      %v637 = vpack.c.b16 %v625, %v623
      %v638 = vpack.c.b16 %v626, %v624
      %v639 = vpack.c.b16 %v629, %v627
      %v640 = vpack.c.b16 %v630, %v628
      %v641 = vpack.c.b16 %v633, %v631
      %v642 = vpack.c.b16 %v634, %v632
      %v648 = vsel %vm312, %v636, 0
      %v651 = vsel %vm312, %v638, 0
      %v654 = vsel %vm312, %v640, 0
      %v657 = vsel %vm312, %v642, 0
      %659 = vmatpush.bf16.msra.mxu0 %v301
      %660 = vmatpush.bf16.msra.mxu0 %v300
      %661 = vmatpush.bf16.msra.mxu0 %v299
      %662 = vmatpush.bf16.msra.mxu0 %v298
      %663 = vmatpush.bf16.msra.mxu0 %v297
      %664 = vmatpush.bf16.msra.mxu0 %v296
      %665 = vmatpush.bf16.msra.mxu0 %v295
      %666 = vmatpush.bf16.msra.mxu0 %v294
      %667 = vmatmul.bf16.gmra.mxu0 %v635
      %v668 = vpop.f32.mrf.mxu0
      %v669 = vadd.f32 0.0, %v668
      %v670 = vpop.f32.mrf.mxu0
      %v671 = vadd.f32 0.0, %v670
      %672 = vmatmul.bf16.gmra.mxu0 %v637
      %v673 = vpop.f32.mrf.mxu0
      %v674 = vadd.f32 0.0, %v673
      %v675 = vpop.f32.mrf.mxu0
      %v676 = vadd.f32 0.0, %v675
      %677 = vmatmul.bf16.gmra.mxu0 %v639
      %v678 = vpop.f32.mrf.mxu0
      %v679 = vadd.f32 0.0, %v678
      %v680 = vpop.f32.mrf.mxu0
      %v681 = vadd.f32 0.0, %v680
      %682 = vmatmul.bf16.gmra.mxu0 %v641
      %v683 = vpop.f32.mrf.mxu0
      %v684 = vadd.f32 0.0, %v683
      %v685 = vpop.f32.mrf.mxu0
      %v686 = vadd.f32 0.0, %v685
      %687 = vdwg.mxu0
      %688 = vmatpush.bf16.msra.mxu0 0
      %689 = vmatpush.bf16.msra.mxu0 0
      %690 = vmatpush.bf16.msra.mxu0 0
      %691 = vmatpush.bf16.msra.mxu0 0
      %692 = vmatpush.bf16.msra.mxu0 0
      %693 = vmatpush.bf16.msra.mxu0 0
      %694 = vmatpush.bf16.msra.mxu0 0
      %695 = vmatpush.bf16.msra.mxu0 %v302
      %696 = vmatmul.bf16.gmra.mxu0 %v648
      %v697 = vpop.f32.mrf.mxu0
      %v698 = vadd.f32 %v669, %v697
      %v699 = vpop.f32.mrf.mxu0
      %v700 = vadd.f32 %v671, %v699
      %701 = vmatmul.bf16.gmra.mxu0 %v651
      %v702 = vpop.f32.mrf.mxu0
      %v703 = vadd.f32 %v674, %v702
      %v704 = vpop.f32.mrf.mxu0
      %v705 = vadd.f32 %v676, %v704
      %706 = vmatmul.bf16.gmra.mxu0 %v654
      %v707 = vpop.f32.mrf.mxu0
      %v708 = vadd.f32 %v679, %v707
      %v709 = vpop.f32.mrf.mxu0
      %v710 = vadd.f32 %v681, %v709
      %711 = vmatmul.bf16.gmra.mxu0 %v657
      %v712 = vpop.f32.mrf.mxu0
      %v713 = vadd.f32 %v684, %v712
      %v714 = vpop.f32.mrf.mxu0
      %v715 = vadd.f32 %v686, %v714
      %716 = vdwg.mxu0
      %v717 = vmax.f32 %v603, %v698
      %v718 = vmax.f32 %v604, %v700
      %v719 = vmax.f32 %v605, %v703
      %v720 = vmax.f32 %v606, %v705
      %v721 = vmax.f32 %v607, %v708
      %v722 = vmax.f32 %v608, %v710
      %v723 = vmax.f32 %v609, %v713
      %v724 = vmax.f32 %v610, %v715
      %v725 = vld [vmem:[%s2] sm:$0x1]
      %v727 = vperm.slane %v725, 0
      %v729 = vadd.f32 %v717, %v727
      %v730 = vadd.f32 %v718, %v727
      %v731 = vadd.f32 %v719, %v727
      %v732 = vadd.f32 %v720, %v727
      %v733 = vadd.f32 %v721, %v727
      %v734 = vadd.f32 %v722, %v727
      %v735 = vadd.f32 %v723, %v727
      %v736 = vadd.f32 %v724, %v727
      %v737 = vmax.f32 %v729, 0.0
      %v738 = vmax.f32 %v730, 0.0
      %v739 = vmax.f32 %v731, 0.0
      %v740 = vmax.f32 %v732, 0.0
      %v741 = vmax.f32 %v733, 0.0
      %v742 = vmax.f32 %v734, 0.0
      %v743 = vmax.f32 %v735, 0.0
      %v744 = vmax.f32 %v736, 0.0
      %745 = vst [vmem:[%s170] sm:$0xff] %v737
      %746 = vst [vmem:[%s170 + $0x8] sm:$0xff] %v738
      %747 = vst [vmem:[%s170 + $0x10] sm:$0xff] %v739
      %748 = vst [vmem:[%s170 + $0x18] sm:$0xff] %v740
      %749 = vst [vmem:[%s170 + $0x20] sm:$0xff] %v741
      %750 = vst [vmem:[%s170 + $0x28] sm:$0xff] %v742
      %751 = vst [vmem:[%s170 + $0x30] sm:$0xff] %v743
      %752 = vst [vmem:[%s170 + $0x38] sm:$0xff] %v744
      %p753 = scmp.lt.s32.totalorder %s14, 1
      %s754 = scalar_select %p753, %s14, 1
      %s755 = smul.addr %s754, 8
      %s756 = smul.addr %s755, 8
      %s757 = scalar_lea.vmem %s3, %s756
      // Predicated region
      $region33: #{simple_cnn_forward.5} parent=31 // pred_check
        %p758 = pneg %p100
      $region34: #{simple_cnn_forward.5} parent=31 // pred_check_branch
        %760 = sbr.rel (%p758) target = $region36
      $region35: #{simple_cnn_forward.5} parent=31 // pred_region
        _
      $region36: #{simple_cnn_forward.5} parent=31 // pred_fallthru
        _
    $region32: #{simple_cnn_forward.5} parent=5 // pred_fallthru
      _
    %p761 = scmp.le.s32.totalorder 2, %s9
    // Predicated region
    $region37: #{simple_cnn_forward.5} parent=5 // pred_check
      %p762 = pneg %p761
    $region38: #{simple_cnn_forward.5} parent=5 // pred_check_branch
      %764 = sbr.rel (%p762) target = $region40
    $region39: #{simple_cnn_forward.5} parent=5 // pred_region
      %s765 = ssub.s32 %s9, 2
      // Predicated region
      $region41: #{simple_cnn_forward.5} parent=39 // pred_check
        %p766 = pneg %p106
      $region42: #{simple_cnn_forward.5} parent=39 // pred_check_branch
        %768 = sbr.rel (%p766) target = $region44
      $region43: #{simple_cnn_forward.5} parent=39 // pred_region
        %p769 = scmp.lt.s32.totalorder %s15, 1
        %s770 = scalar_select %p769, %s15, 1
        %s771 = smul.addr %s770, 8
        %s772 = smul.addr %s771, 8
        %s773 = scalar_lea.vmem %s3, %s772
      $region44: #{simple_cnn_forward.5} parent=39 // pred_fallthru
        _
    $region40: #{simple_cnn_forward.5} parent=5 // pred_fallthru
      _
  $region6: #{simple_cnn_forward.5} parent=0 // loop_footer
    %s13 = sadd.s32 1, %s9
  $region7: #{simple_cnn_forward.5} parent=0 // loop_footer_branch
    %8 = sbr.rel target = $region3
  $region8: #{simple_cnn_forward.5} parent=0 // loop_exit
    _

// kernel: simple_cnn_forward.6
$region0: #{simple_cnn_forward.6}
  #allocation0 [shape = 'u32[]', space=smem, size = 0x4, offset = 0x4, fixed_abs, tag = 'smem constant byte address 0x4 - core index']
  #allocation1 [shape = 'u32[72,128]{1,0:T(1,128)}', space=vmem, size = 0x9000, scoped, tag = 'internal scratch']
  %s0 = inlined_call_operand.vmem [shape: bf16[2,64,288], index: 0, kind: input, shape index: {}]
  %s1 = inlined_call_operand.vmem [shape: bf16[288,128], index: 1, kind: input, shape index: {}]
  %s2 = inlined_call_operand.vmem [shape: f32[1,128], index: 2, kind: input, shape index: {}]
  %s3 = inlined_call_operand.vmem [shape: f32[2,16,128], index: 3, kind: output, shape index: {}]
  %s4 = sld [smem:[#allocation0]]
  $region45: #{simple_cnn_forward.6} parent=0
    _
  %s6 = ssub.s32 1, %s4
  %s7 = scalar_select 0, %s6, %s4
  loop: start=0, step=1, limit=4
  $region2: #{simple_cnn_forward.6} parent=0 // loop_pre_header
    _
  $region3: #{simple_cnn_forward.6} parent=0 // loop_header
    %s9 = sphi 0, %s13
    %p10 = scmp.ge.s32.totalorder %s9, 4
    %s19 = sphi 0, %s21
    %s22 = sphi 0, %s19
    %s23 = sphi 0, %s22
    %s39 = sphi 0, %s23
    %s43 = sphi 0, %s43
    %s45 = sphi 0, %s43
    %s46 = sphi 0, %s45
    %s60 = sphi 0, %s46
    %s64 = sphi 0, %s64
    %s66 = sphi 0, %s64
    %s67 = sphi 0, %s66
    %s81 = sphi 0, %s67
    %s87 = sphi 0, %s89
    %s90 = sphi 0, %s87
    %s91 = sphi 0, %s90
    %s107 = sphi 0, %s91
  $region4: #{simple_cnn_forward.6} parent=0 // loop_header_branch
    %12 = sbr.rel (%p10) target = $region8
  $region5: #{simple_cnn_forward.6} parent=0 // loop_body
    %s14 = ssub.s32 %s9, 1
    %s15 = ssub.s32 %s9, 2
    %s16 = sadd.s32 %s9, 1
    %s17 = ssub.s32 %s9, %s16
    %p18 = scmp.eq.s32.totalorder %s17, 0
    %s20 = sadd.s32 %s19, 1
    %s21 = scalar_select %p18, %s19, %s20
    %p24 = pneg %p18
    %p25 = scmp.eq.s32.totalorder %s9, 1
    %p26 = por %p24, %p25
    %p27 = scmp.ne.s32.totalorder %s19, %s22
    %p28 = scmp.eq.s32.totalorder %s9, 0
    %p29 = por %p27, %p28
    %p30 = scmp.ne.s32.totalorder %s19, %s22
    %p31 = scmp.eq.s32.totalorder %s14, 1
    %p32 = por %p30, %p31
    %p33 = scmp.ne.s32.totalorder %s22, %s23
    %p34 = scmp.eq.s32.totalorder %s14, 0
    %p35 = por %p33, %p34
    %p36 = scmp.ne.s32.totalorder %s22, %s23
    %p37 = scmp.eq.s32.totalorder %s15, 1
    %p38 = por %p36, %p37
    %p40 = scmp.ne.s32.totalorder %s23, %s39
    %p41 = scmp.eq.s32.totalorder %s15, 0
    %p42 = por %p40, %p41
    %s44 = sadd.s32 %s43, 1
    %p47 = scmp.eq.s32.totalorder %s9, 1
    %p48 = scmp.ne.s32.totalorder %s43, %s45
    %p49 = scmp.eq.s32.totalorder %s9, 0
    %p50 = por %p48, %p49
    %p51 = scmp.ne.s32.totalorder %s43, %s45
    %p52 = scmp.eq.s32.totalorder %s14, 1
    %p53 = por %p51, %p52
    %p54 = scmp.ne.s32.totalorder %s45, %s46
    %p55 = scmp.eq.s32.totalorder %s14, 0
    %p56 = por %p54, %p55
    %p57 = scmp.ne.s32.totalorder %s45, %s46
    %p58 = scmp.eq.s32.totalorder %s15, 1
    %p59 = por %p57, %p58
    %p61 = scmp.ne.s32.totalorder %s46, %s60
    %p62 = scmp.eq.s32.totalorder %s15, 0
    %p63 = por %p61, %p62
    %s65 = sadd.s32 %s64, 1
    %p68 = scmp.eq.s32.totalorder %s9, 1
    %p69 = scmp.ne.s32.totalorder %s64, %s66
    %p70 = scmp.eq.s32.totalorder %s9, 0
    %p71 = por %p69, %p70
    %p72 = scmp.ne.s32.totalorder %s64, %s66
    %p73 = scmp.eq.s32.totalorder %s14, 1
    %p74 = por %p72, %p73
    %p75 = scmp.ne.s32.totalorder %s66, %s67
    %p76 = scmp.eq.s32.totalorder %s14, 0
    %p77 = por %p75, %p76
    %p78 = scmp.ne.s32.totalorder %s66, %s67
    %p79 = scmp.eq.s32.totalorder %s15, 1
    %p80 = por %p78, %p79
    %p82 = scmp.ne.s32.totalorder %s67, %s81
    %p83 = scmp.eq.s32.totalorder %s15, 0
    %p84 = por %p82, %p83
    %s85 = ssub.s32 %s9, %s16
    %p86 = scmp.eq.s32.totalorder %s85, 0
    %s88 = sadd.s32 %s87, 1
    %s89 = scalar_select %p86, %s87, %s88
    %p92 = pneg %p86
    %p93 = scmp.eq.s32.totalorder %s9, 1
    %p94 = por %p92, %p93
    %p95 = scmp.ne.s32.totalorder %s87, %s90
    %p96 = scmp.eq.s32.totalorder %s9, 0
    %p97 = por %p95, %p96
    %p98 = scmp.ne.s32.totalorder %s87, %s90
    %p99 = scmp.eq.s32.totalorder %s14, 1
    %p100 = por %p98, %p99
    %p101 = scmp.ne.s32.totalorder %s90, %s91
    %p102 = scmp.eq.s32.totalorder %s14, 0
    %p103 = por %p101, %p102
    %p104 = scmp.ne.s32.totalorder %s90, %s91
    %p105 = scmp.eq.s32.totalorder %s15, 1
    %p106 = por %p104, %p105
    %p108 = scmp.ne.s32.totalorder %s91, %s107
    %p109 = scmp.eq.s32.totalorder %s15, 0
    %p110 = por %p108, %p109
    %p111 = scmp.le.s32.totalorder 1, %s9
    %p112 = scmp.lt.s32.totalorder %s9, 3
    %p113 = pnand %p111, %p112
    %p114 = pneg %p113
    // Predicated region
    $region9: #{simple_cnn_forward.6} parent=5 // pred_check
      _
    $region10: #{simple_cnn_forward.6} parent=5 // pred_check_branch
      %116 = sbr.rel (%p113) target = $region12
    $region11: #{simple_cnn_forward.6} parent=5 // pred_region
      %s117 = ssub.s32 %s9, 1
      // Predicated region
      $region13: #{simple_cnn_forward.6} parent=11 // pred_check
        %p118 = pneg %p56
      $region14: #{simple_cnn_forward.6} parent=11 // pred_check_branch
        %120 = sbr.rel (%p118) target = $region16
      $region15: #{simple_cnn_forward.6} parent=11 // pred_region
        _
      $region16: #{simple_cnn_forward.6} parent=11 // pred_fallthru
        _
      // Predicated region
      $region17: #{simple_cnn_forward.6} parent=11 // pred_check
        %p121 = pneg %p77
      $region18: #{simple_cnn_forward.6} parent=11 // pred_check_branch
        %123 = sbr.rel (%p121) target = $region20
      $region19: #{simple_cnn_forward.6} parent=11 // pred_region
        _
      $region20: #{simple_cnn_forward.6} parent=11 // pred_fallthru
        _
    $region12: #{simple_cnn_forward.6} parent=5 // pred_fallthru
      _
    %p124 = scmp.lt.s32.totalorder %s9, 2
    // Predicated region
    $region21: #{simple_cnn_forward.6} parent=5 // pred_check
      %p125 = pneg %p124
    $region22: #{simple_cnn_forward.6} parent=5 // pred_check_branch
      %127 = sbr.rel (%p125) target = $region24
    $region23: #{simple_cnn_forward.6} parent=5 // pred_region
      // Predicated region
      $region25: #{simple_cnn_forward.6} parent=23 // pred_check
        %p128 = pneg %p29
      $region26: #{simple_cnn_forward.6} parent=23 // pred_check_branch
        %130 = sbr.rel (%p128) target = $region28
      $region27: #{simple_cnn_forward.6} parent=23 // pred_region
        %p131 = scmp.lt.s32.totalorder %s9, 1
        %s132 = scalar_select %p131, %s9, 1
        %s133 = smul.addr %s132, 24
        %s134 = smul.addr %s133, 4
        %s135 = scalar_lea.vmem %s0, %s134
      $region28: #{simple_cnn_forward.6} parent=23 // pred_fallthru
        _
    $region24: #{simple_cnn_forward.6} parent=5 // pred_fallthru
      _
    %p136 = scmp.le.s32.totalorder 1, %s9
    %p137 = scmp.lt.s32.totalorder %s9, 3
    %p138 = pnand %p136, %p137
    %p139 = pneg %p138
    // Predicated region
    $region29: #{simple_cnn_forward.6} parent=5 // pred_check
      _
    $region30: #{simple_cnn_forward.6} parent=5 // pred_check_branch
      %141 = sbr.rel (%p138) target = $region32
    $region31: #{simple_cnn_forward.6} parent=5 // pred_region
      %s142 = ssub.s32 %s9, 1
      %p143 = scmp.lt.s32.totalorder %s14, 1
      %s144 = scalar_select %p143, %s14, 1
      %s145 = smul.addr %s144, 24
      %s146 = smul.addr %s145, 4
      %s147 = scalar_lea.vmem %s0, %s146
      %p148 = pneg %p35
      %p149 = pneg %p32
      %p150 = pneg %p56
      %p151 = pneg %p53
      %p152 = pneg %p77
      %p153 = pneg %p74
      %p154 = pneg %p103
      %p155 = pneg %p100
      %p156 = scmp.lt.s32.totalorder %s14, 1
      %s157 = scalar_select %p156, %s14, 1
      %s158 = smul.addr %s157, 2
      %s159 = smul.addr %s158, 8
      %s160 = scalar_lea.vmem %s3, %s159
      %p161 = scmp.lt.s32.totalorder %s14, 1
      %s162 = scalar_select %p161, %s14, 1
      %s163 = smul.addr %s162, 24
      %s164 = smul.addr %s163, 4
      %s165 = scalar_lea.vmem %s0, %s164
      %p166 = scmp.lt.s32.totalorder %s14, 1
      %s167 = scalar_select %p166, %s14, 1
      %s168 = smul.addr %s167, 2
      %s169 = smul.addr %s168, 8
      %s170 = scalar_lea.vmem %s3, %s169
      %v172 = vld [vmem:[%s165] sm:$0xff]
      %v173 = vld [vmem:[%s165 + $0x8] sm:$0xf]
      %v174 = vld [vmem:[%s165 + $0xc] sm:$0xff]
      %v175 = vld [vmem:[%s165 + $0x14] sm:$0xf]
      %v176 = vld [vmem:[%s165 + $0x18] sm:$0xff]
      %v177 = vld [vmem:[%s165 + $0x20] sm:$0xf]
      %v178 = vld [vmem:[%s165 + $0x24] sm:$0xff]
      %v179 = vld [vmem:[%s165 + $0x2c] sm:$0xf]
      %v180 = vld [vmem:[%s165 + $0x30] sm:$0xff]
      %v181 = vld [vmem:[%s165 + $0x38] sm:$0xf]
      %v182 = vld [vmem:[%s165 + $0x3c] sm:$0xff]
      %v183 = vld [vmem:[%s165 + $0x44] sm:$0xf]
      %v184 = vld [vmem:[%s165 + $0x48] sm:$0xff]
      %v185 = vld [vmem:[%s165 + $0x50] sm:$0xf]
      %v186 = vld [vmem:[%s165 + $0x54] sm:$0xff]
      %v187 = vld [vmem:[%s165 + $0x5c] sm:$0xf]
      %v188 = vld [vmem:[%s1] sm:$0xf]
      %v189 = vld [vmem:[%s1 + $0x4] sm:$0xf]
      %v190 = vld [vmem:[%s1 + $0x8] sm:$0xf]
      %v191 = vld [vmem:[%s1 + $0xc] sm:$0xf]
      %v192 = vld [vmem:[%s1 + $0x10] sm:$0xf]
      %v193 = vld [vmem:[%s1 + $0x14] sm:$0xf]
      %v194 = vld [vmem:[%s1 + $0x18] sm:$0xf]
      %v195 = vld [vmem:[%s1 + $0x1c] sm:$0xf]
      %v196 = vld [vmem:[%s1 + $0x20] sm:$0xf]
      %v197 = vld [vmem:[%s1 + $0x24] sm:$0xf]
      %v198 = vld [vmem:[%s1 + $0x28] sm:$0xf]
      %v199 = vld [vmem:[%s1 + $0x2c] sm:$0xf]
      %v200 = vld [vmem:[%s1 + $0x30] sm:$0xf]
      %v201 = vld [vmem:[%s1 + $0x34] sm:$0xf]
      %v202 = vld [vmem:[%s1 + $0x38] sm:$0xf]
      %v203 = vld [vmem:[%s1 + $0x3c] sm:$0xf]
      %v204 = vld [vmem:[%s1 + $0x40] sm:$0xf]
      %v205 = vld [vmem:[%s1 + $0x44] sm:$0xf]
      %v206 = vld [vmem:[%s1 + $0x48] sm:$0xf]
      %v207 = vld [vmem:[%s1 + $0x4c] sm:$0xf]
      %v208 = vld [vmem:[%s1 + $0x50] sm:$0xf]
      %v209 = vld [vmem:[%s1 + $0x54] sm:$0xf]
      %v210 = vld [vmem:[%s1 + $0x58] sm:$0xf]
      %v211 = vld [vmem:[%s1 + $0x5c] sm:$0xf]
      %v212 = vld [vmem:[%s1 + $0x60] sm:$0xf]
      %v213 = vld [vmem:[%s1 + $0x64] sm:$0xf]
      %v214 = vld [vmem:[%s1 + $0x68] sm:$0xf]
      %v215 = vld [vmem:[%s1 + $0x6c] sm:$0xf]
      %v216 = vld [vmem:[%s1 + $0x70] sm:$0xf]
      %v217 = vld [vmem:[%s1 + $0x74] sm:$0xf]
      %v218 = vld [vmem:[%s1 + $0x78] sm:$0xf]
      %v219 = vld [vmem:[%s1 + $0x7c] sm:$0xf]
      %v220 = vld [vmem:[%s1 + $0x80] sm:$0xf]
      %v221 = vld [vmem:[%s1 + $0x84] sm:$0xf]
      %v222 = vld [vmem:[%s1 + $0x88] sm:$0xf]
      %v223 = vld [vmem:[%s1 + $0x8c] sm:$0xf]
      %v228 = vunpack.c.l.b16 %v172
      %v229 = vunpack.c.h.b16 %v172
      %v230 = vunpack.c.l.b16 %v173
      %v231 = vunpack.c.l.b16 %v174
      %v232 = vunpack.c.h.b16 %v174
      %v233 = vunpack.c.l.b16 %v175
      %v234 = vpack.c.b16 %v231, %v228
      %v235 = vpack.c.b16 %v232, %v229
      %v236 = vpack.c.b16 %v233, %v230
      %v275 = vunpack.c.l.b16 %v188
      %v276 = vunpack.c.l.b16 %v189
      %v277 = vunpack.c.l.b16 %v190
      %v278 = vunpack.c.l.b16 %v191
      %v279 = vunpack.c.l.b16 %v192
      %v280 = vunpack.c.l.b16 %v193
      %v281 = vunpack.c.l.b16 %v194
      %v282 = vunpack.c.l.b16 %v195
      %v283 = vunpack.c.l.b16 %v196
      %v284 = vunpack.c.l.b16 %v197
      %v285 = vunpack.c.l.b16 %v198
      %v286 = vunpack.c.l.b16 %v199
      %v287 = vunpack.c.l.b16 %v200
      %v288 = vunpack.c.l.b16 %v201
      %v289 = vunpack.c.l.b16 %v202
      %v290 = vunpack.c.l.b16 %v203
      %v291 = vunpack.c.l.b16 %v204
      %v292 = vunpack.c.l.b16 %v205
      %v293 = vunpack.c.l.b16 %v206
      %v294 = vunpack.c.l.b16 %v207
      %v295 = vunpack.c.l.b16 %v208
      %v296 = vunpack.c.l.b16 %v209
      %v297 = vunpack.c.l.b16 %v210
      %v298 = vunpack.c.l.b16 %v211
      %v299 = vunpack.c.l.b16 %v212
      %v300 = vunpack.c.l.b16 %v213
      %v301 = vunpack.c.l.b16 %v214
      %v302 = vunpack.c.l.b16 %v215
      %v303 = vunpack.c.l.b16 %v216
      %v304 = vunpack.c.l.b16 %v217
      %v305 = vunpack.c.l.b16 %v218
      %v306 = vunpack.c.l.b16 %v219
      %v307 = vunpack.c.l.b16 %v220
      %v308 = vunpack.c.l.b16 %v221
      %v309 = vunpack.c.l.b16 %v222
      %v310 = vunpack.c.l.b16 %v223
      %v311 = vpack.c.b16 %v276, %v275
      %v312 = vpack.c.b16 %v278, %v277
      %v313 = vpack.c.b16 %v280, %v279
      %v314 = vpack.c.b16 %v282, %v281
      %v315 = vpack.c.b16 %v284, %v283
      %v316 = vpack.c.b16 %v286, %v285
      %v317 = vpack.c.b16 %v288, %v287
      %v318 = vpack.c.b16 %v290, %v289
      %v319 = vpack.c.b16 %v292, %v291
      %v320 = vpack.c.b16 %v294, %v293
      %v321 = vpack.c.b16 %v296, %v295
      %v322 = vpack.c.b16 %v298, %v297
      %v323 = vpack.c.b16 %v300, %v299
      %v324 = vpack.c.b16 %v302, %v301
      %v325 = vpack.c.b16 %v304, %v303
      %v326 = vpack.c.b16 %v306, %v305
      %v327 = vpack.c.b16 %v308, %v307
      %v328 = vpack.c.b16 %v310, %v309
      %vm347 = vcmask 261120
      %v349 = vsel %vm347, %v236, 0
      %351 = vmatpush.bf16.msra.mxu0 %v318
      %352 = vmatpush.bf16.msra.mxu0 %v317
      %353 = vmatpush.bf16.msra.mxu0 %v316
      %354 = vmatpush.bf16.msra.mxu0 %v315
      %355 = vmatpush.bf16.msra.mxu0 %v314
      %356 = vmatpush.bf16.msra.mxu0 %v313
      %357 = vmatpush.bf16.msra.mxu0 %v312
      %358 = vmatpush.bf16.msra.mxu0 %v311
      %359 = vmatmul.bf16.gmra.mxu0 %v234
      %v360 = vpop.f32.mrf.mxu0
      %v361 = vadd.f32 0.0, %v360
      %v362 = vpop.f32.mrf.mxu0
      %v363 = vadd.f32 0.0, %v362
      %364 = vdwg.mxu0
      %365 = vmatpush.bf16.msra.mxu0 %v326
      %366 = vmatpush.bf16.msra.mxu0 %v325
      %367 = vmatpush.bf16.msra.mxu0 %v324
      %368 = vmatpush.bf16.msra.mxu0 %v323
      %369 = vmatpush.bf16.msra.mxu0 %v322
      %370 = vmatpush.bf16.msra.mxu0 %v321
      %371 = vmatpush.bf16.msra.mxu0 %v320
      %372 = vmatpush.bf16.msra.mxu0 %v319
      %373 = vmatmul.bf16.gmra.mxu0 %v235
      %v374 = vpop.f32.mrf.mxu0
      %v375 = vadd.f32 %v361, %v374
      %v376 = vpop.f32.mrf.mxu0
      %v377 = vadd.f32 %v363, %v376
      %378 = vdwg.mxu0
      %379 = vmatpush.bf16.msra.mxu0 0
      %380 = vmatpush.bf16.msra.mxu0 0
      %381 = vmatpush.bf16.msra.mxu0 0
      %382 = vmatpush.bf16.msra.mxu0 0
      %383 = vmatpush.bf16.msra.mxu0 0
      %384 = vmatpush.bf16.msra.mxu0 0
      %385 = vmatpush.bf16.msra.mxu0 %v328
      %386 = vmatpush.bf16.msra.mxu0 %v327
      %387 = vmatmul.bf16.gmra.mxu0 %v349
      %v388 = vpop.f32.mrf.mxu0
      %v389 = vadd.f32 %v375, %v388
      %v390 = vpop.f32.mrf.mxu0
      %v391 = vadd.f32 %v377, %v390
      %392 = vdwg.mxu0
      %v397 = vunpack.c.l.b16 %v176
      %v398 = vunpack.c.h.b16 %v176
      %v399 = vunpack.c.l.b16 %v177
      %v400 = vunpack.c.l.b16 %v178
      %v401 = vunpack.c.h.b16 %v178
      %v402 = vunpack.c.l.b16 %v179
      %v403 = vpack.c.b16 %v400, %v397
      %v404 = vpack.c.b16 %v401, %v398
      %v405 = vpack.c.b16 %v402, %v399
      %v409 = vsel %vm347, %v405, 0
      %411 = vmatpush.bf16.msra.mxu0 %v318
      %412 = vmatpush.bf16.msra.mxu0 %v317
      %413 = vmatpush.bf16.msra.mxu0 %v316
      %414 = vmatpush.bf16.msra.mxu0 %v315
      %415 = vmatpush.bf16.msra.mxu0 %v314
      %416 = vmatpush.bf16.msra.mxu0 %v313
      %417 = vmatpush.bf16.msra.mxu0 %v312
      %418 = vmatpush.bf16.msra.mxu0 %v311
      %419 = vmatmul.bf16.gmra.mxu0 %v403
      %v420 = vpop.f32.mrf.mxu0
      %v421 = vadd.f32 0.0, %v420
      %v422 = vpop.f32.mrf.mxu0
      %v423 = vadd.f32 0.0, %v422
      %424 = vdwg.mxu0
      %425 = vmatpush.bf16.msra.mxu0 %v326
      %426 = vmatpush.bf16.msra.mxu0 %v325
      %427 = vmatpush.bf16.msra.mxu0 %v324
      %428 = vmatpush.bf16.msra.mxu0 %v323
      %429 = vmatpush.bf16.msra.mxu0 %v322
      %430 = vmatpush.bf16.msra.mxu0 %v321
      %431 = vmatpush.bf16.msra.mxu0 %v320
      %432 = vmatpush.bf16.msra.mxu0 %v319
      %433 = vmatmul.bf16.gmra.mxu0 %v404
      %v434 = vpop.f32.mrf.mxu0
      %v435 = vadd.f32 %v421, %v434
      %v436 = vpop.f32.mrf.mxu0
      %v437 = vadd.f32 %v423, %v436
      %438 = vdwg.mxu0
      %439 = vmatpush.bf16.msra.mxu0 0
      %440 = vmatpush.bf16.msra.mxu0 0
      %441 = vmatpush.bf16.msra.mxu0 0
      %442 = vmatpush.bf16.msra.mxu0 0
      %443 = vmatpush.bf16.msra.mxu0 0
      %444 = vmatpush.bf16.msra.mxu0 0
      %445 = vmatpush.bf16.msra.mxu0 %v328
      %446 = vmatpush.bf16.msra.mxu0 %v327
      %447 = vmatmul.bf16.gmra.mxu0 %v409
      %v448 = vpop.f32.mrf.mxu0
      %v449 = vadd.f32 %v435, %v448
      %v450 = vpop.f32.mrf.mxu0
      %v451 = vadd.f32 %v437, %v450
      %452 = vdwg.mxu0
      %v453 = vmax.f32 %v389, %v449
      %v454 = vmax.f32 %v391, %v451
      %v459 = vunpack.c.l.b16 %v180
      %v460 = vunpack.c.h.b16 %v180
      %v461 = vunpack.c.l.b16 %v181
      %v462 = vunpack.c.l.b16 %v182
      %v463 = vunpack.c.h.b16 %v182
      %v464 = vunpack.c.l.b16 %v183
      %v465 = vpack.c.b16 %v462, %v459
      %v466 = vpack.c.b16 %v463, %v460
      %v467 = vpack.c.b16 %v464, %v461
      %v471 = vsel %vm347, %v467, 0
      %473 = vmatpush.bf16.msra.mxu0 %v318
      %474 = vmatpush.bf16.msra.mxu0 %v317
      %475 = vmatpush.bf16.msra.mxu0 %v316
      %476 = vmatpush.bf16.msra.mxu0 %v315
      %477 = vmatpush.bf16.msra.mxu0 %v314
      %478 = vmatpush.bf16.msra.mxu0 %v313
      %479 = vmatpush.bf16.msra.mxu0 %v312
      %480 = vmatpush.bf16.msra.mxu0 %v311
      %481 = vmatmul.bf16.gmra.mxu0 %v465
      %v482 = vpop.f32.mrf.mxu0
      %v483 = vadd.f32 0.0, %v482
      %v484 = vpop.f32.mrf.mxu0
      %v485 = vadd.f32 0.0, %v484
      %486 = vdwg.mxu0
      %487 = vmatpush.bf16.msra.mxu0 %v326
      %488 = vmatpush.bf16.msra.mxu0 %v325
      %489 = vmatpush.bf16.msra.mxu0 %v324
      %490 = vmatpush.bf16.msra.mxu0 %v323
      %491 = vmatpush.bf16.msra.mxu0 %v322
      %492 = vmatpush.bf16.msra.mxu0 %v321
      %493 = vmatpush.bf16.msra.mxu0 %v320
      %494 = vmatpush.bf16.msra.mxu0 %v319
      %495 = vmatmul.bf16.gmra.mxu0 %v466
      %v496 = vpop.f32.mrf.mxu0
      %v497 = vadd.f32 %v483, %v496
      %v498 = vpop.f32.mrf.mxu0
      %v499 = vadd.f32 %v485, %v498
      %500 = vdwg.mxu0
      %501 = vmatpush.bf16.msra.mxu0 0
      %502 = vmatpush.bf16.msra.mxu0 0
      %503 = vmatpush.bf16.msra.mxu0 0
      %504 = vmatpush.bf16.msra.mxu0 0
      %505 = vmatpush.bf16.msra.mxu0 0
      %506 = vmatpush.bf16.msra.mxu0 0
      %507 = vmatpush.bf16.msra.mxu0 %v328
      %508 = vmatpush.bf16.msra.mxu0 %v327
      %509 = vmatmul.bf16.gmra.mxu0 %v471
      %v510 = vpop.f32.mrf.mxu0
      %v511 = vadd.f32 %v497, %v510
      %v512 = vpop.f32.mrf.mxu0
      %v513 = vadd.f32 %v499, %v512
      %514 = vdwg.mxu0
      %v515 = vmax.f32 %v453, %v511
      %v516 = vmax.f32 %v454, %v513
      %v521 = vunpack.c.l.b16 %v184
      %v522 = vunpack.c.h.b16 %v184
      %v523 = vunpack.c.l.b16 %v185
      %v524 = vunpack.c.l.b16 %v186
      %v525 = vunpack.c.h.b16 %v186
      %v526 = vunpack.c.l.b16 %v187
      %v527 = vpack.c.b16 %v524, %v521
      %v528 = vpack.c.b16 %v525, %v522
      %v529 = vpack.c.b16 %v526, %v523
      %v533 = vsel %vm347, %v529, 0
      %535 = vmatpush.bf16.msra.mxu0 %v318
      %536 = vmatpush.bf16.msra.mxu0 %v317
      %537 = vmatpush.bf16.msra.mxu0 %v316
      %538 = vmatpush.bf16.msra.mxu0 %v315
      %539 = vmatpush.bf16.msra.mxu0 %v314
      %540 = vmatpush.bf16.msra.mxu0 %v313
      %541 = vmatpush.bf16.msra.mxu0 %v312
      %542 = vmatpush.bf16.msra.mxu0 %v311
      %543 = vmatmul.bf16.gmra.mxu0 %v527
      %v544 = vpop.f32.mrf.mxu0
      %v545 = vadd.f32 0.0, %v544
      %v546 = vpop.f32.mrf.mxu0
      %v547 = vadd.f32 0.0, %v546
      %548 = vdwg.mxu0
      %549 = vmatpush.bf16.msra.mxu0 %v326
      %550 = vmatpush.bf16.msra.mxu0 %v325
      %551 = vmatpush.bf16.msra.mxu0 %v324
      %552 = vmatpush.bf16.msra.mxu0 %v323
      %553 = vmatpush.bf16.msra.mxu0 %v322
      %554 = vmatpush.bf16.msra.mxu0 %v321
      %555 = vmatpush.bf16.msra.mxu0 %v320
      %556 = vmatpush.bf16.msra.mxu0 %v319
      %557 = vmatmul.bf16.gmra.mxu0 %v528
      %v558 = vpop.f32.mrf.mxu0
      %v559 = vadd.f32 %v545, %v558
      %v560 = vpop.f32.mrf.mxu0
      %v561 = vadd.f32 %v547, %v560
      %562 = vdwg.mxu0
      %563 = vmatpush.bf16.msra.mxu0 0
      %564 = vmatpush.bf16.msra.mxu0 0
      %565 = vmatpush.bf16.msra.mxu0 0
      %566 = vmatpush.bf16.msra.mxu0 0
      %567 = vmatpush.bf16.msra.mxu0 0
      %568 = vmatpush.bf16.msra.mxu0 0
      %569 = vmatpush.bf16.msra.mxu0 %v328
      %570 = vmatpush.bf16.msra.mxu0 %v327
      %571 = vmatmul.bf16.gmra.mxu0 %v533
      %v572 = vpop.f32.mrf.mxu0
      %v573 = vadd.f32 %v559, %v572
      %v574 = vpop.f32.mrf.mxu0
      %v575 = vadd.f32 %v561, %v574
      %576 = vdwg.mxu0
      %v577 = vmax.f32 %v515, %v573
      %v578 = vmax.f32 %v516, %v575
      %v579 = vld [vmem:[%s2] sm:$0x1]
      %v581 = vperm.slane %v579, 0
      %v583 = vadd.f32 %v577, %v581
      %v584 = vadd.f32 %v578, %v581
      %v585 = vmax.f32 %v583, 0.0
      %v586 = vmax.f32 %v584, 0.0
      %587 = vst [vmem:[%s170] sm:$0xff] %v585
      %588 = vst [vmem:[%s170 + $0x8] sm:$0xff] %v586
      %p589 = scmp.lt.s32.totalorder %s14, 1
      %s590 = scalar_select %p589, %s14, 1
      %s591 = smul.addr %s590, 2
      %s592 = smul.addr %s591, 8
      %s593 = scalar_lea.vmem %s3, %s592
      // Predicated region
      $region33: #{simple_cnn_forward.6} parent=31 // pred_check
        %p594 = pneg %p100
      $region34: #{simple_cnn_forward.6} parent=31 // pred_check_branch
        %596 = sbr.rel (%p594) target = $region36
      $region35: #{simple_cnn_forward.6} parent=31 // pred_region
        _
      $region36: #{simple_cnn_forward.6} parent=31 // pred_fallthru
        _
    $region32: #{simple_cnn_forward.6} parent=5 // pred_fallthru
      _
    %p597 = scmp.le.s32.totalorder 2, %s9
    // Predicated region
    $region37: #{simple_cnn_forward.6} parent=5 // pred_check
      %p598 = pneg %p597
    $region38: #{simple_cnn_forward.6} parent=5 // pred_check_branch
      %600 = sbr.rel (%p598) target = $region40
    $region39: #{simple_cnn_forward.6} parent=5 // pred_region
      %s601 = ssub.s32 %s9, 2
      // Predicated region
      $region41: #{simple_cnn_forward.6} parent=39 // pred_check
        %p602 = pneg %p106
      $region42: #{simple_cnn_forward.6} parent=39 // pred_check_branch
        %604 = sbr.rel (%p602) target = $region44
      $region43: #{simple_cnn_forward.6} parent=39 // pred_region
        %p605 = scmp.lt.s32.totalorder %s15, 1
        %s606 = scalar_select %p605, %s15, 1
        %s607 = smul.addr %s606, 2
        %s608 = smul.addr %s607, 8
        %s609 = scalar_lea.vmem %s3, %s608
      $region44: #{simple_cnn_forward.6} parent=39 // pred_fallthru
        _
    $region40: #{simple_cnn_forward.6} parent=5 // pred_fallthru
      _
  $region6: #{simple_cnn_forward.6} parent=0 // loop_footer
    %s13 = sadd.s32 1, %s9
  $region7: #{simple_cnn_forward.6} parent=0 // loop_footer_branch
    %8 = sbr.rel target = $region3
  $region8: #{simple_cnn_forward.6} parent=0 // loop_exit
    _

// kernel: simple_cnn_forward.7
$region0: #{simple_cnn_forward.7}
  #allocation0 [shape = 'u32[]', space=smem, size = 0x4, offset = 0x4, fixed_abs, tag = 'smem constant byte address 0x4 - core index']
  #allocation1 [shape = 'u32[72,128]{1,0:T(1,128)}', space=vmem, size = 0x9000, scoped, tag = 'internal scratch']
  %s0 = inlined_call_operand.vmem [shape: bf16[2,1024], index: 0, kind: input, shape index: {}]
  %s1 = inlined_call_operand.vmem [shape: bf16[1024,10], index: 1, kind: input, shape index: {}]
  %s2 = inlined_call_operand.vmem [shape: f32[1,10], index: 2, kind: input, shape index: {}]
  %s3 = inlined_call_operand.hbm [shape: f32[2,10], index: 3, kind: output, shape index: {}]
  %s4 = sld [smem:[#allocation0]]
  $region22: #{simple_cnn_forward.7} parent=0
    _
  %s6 = ssub.s32 1, %s4
  %s7 = scalar_select 0, %s6, %s4
  $region1: #{simple_cnn_forward.7} parent=0
    #allocation2 [shape = 'u8[1024]{0}', space=vmem, size = 0x400, scoped, tag = 'output window, operand 0, single buffered']
    #allocation3 [shape = 's32[1]{0}', space=sflag, size = 0x4, scoped, tag = 'scoped memory for simple_cnn_forward.7']
    %8 = vsyncpa [#allocation3], 0
    // Predicated region
    $region2: #{simple_cnn_forward.7} parent=1 // pred_check
      _
    $region3: #{simple_cnn_forward.7} parent=1 // pred_check_branch
      %10 = sbr.rel (0) target = $region5
    $region4: #{simple_cnn_forward.7} parent=1 // pred_region
      _
    $region5: #{simple_cnn_forward.7} parent=1 // pred_fallthru
      _
    // Predicated region
    $region6: #{simple_cnn_forward.7} parent=1 // pred_check
      _
    $region7: #{simple_cnn_forward.7} parent=1 // pred_check_branch
      %12 = sbr.rel (0) target = $region9
    $region8: #{simple_cnn_forward.7} parent=1 // pred_region
      _
    $region9: #{simple_cnn_forward.7} parent=1 // pred_fallthru
      _
    // Predicated region
    $region10: #{simple_cnn_forward.7} parent=1 // pred_check
      _
    $region11: #{simple_cnn_forward.7} parent=1 // pred_check_branch
      %14 = sbr.rel (0) target = $region13
    $region12: #{simple_cnn_forward.7} parent=1 // pred_region
      _
    $region13: #{simple_cnn_forward.7} parent=1 // pred_fallthru
      _
    %v15 = vld [vmem:[%s0] sm:$0xff]
    %v16 = vld [vmem:[%s1] sm:$0xf]
    %v17 = vld [vmem:[%s1 + $0x4] sm:$0xf]
    %v18 = vld [vmem:[%s1 + $0x8] sm:$0xf]
    %v19 = vld [vmem:[%s1 + $0xc] sm:$0xf]
    %v20 = vld [vmem:[%s1 + $0x10] sm:$0xf]
    %v21 = vld [vmem:[%s1 + $0x14] sm:$0xf]
    %v22 = vld [vmem:[%s1 + $0x18] sm:$0xf]
    %v23 = vld [vmem:[%s1 + $0x1c] sm:$0xf]
    %v24 = vld [vmem:[%s1 + $0x20] sm:$0xf]
    %v25 = vld [vmem:[%s1 + $0x24] sm:$0xf]
    %v26 = vld [vmem:[%s1 + $0x28] sm:$0xf]
    %v27 = vld [vmem:[%s1 + $0x2c] sm:$0xf]
    %v28 = vld [vmem:[%s1 + $0x30] sm:$0xf]
    %v29 = vld [vmem:[%s1 + $0x34] sm:$0xf]
    %v30 = vld [vmem:[%s1 + $0x38] sm:$0xf]
    %v31 = vld [vmem:[%s1 + $0x3c] sm:$0xf]
    %v32 = vld [vmem:[%s1 + $0x40] sm:$0xf]
    %v33 = vld [vmem:[%s1 + $0x44] sm:$0xf]
    %v34 = vld [vmem:[%s1 + $0x48] sm:$0xf]
    %v35 = vld [vmem:[%s1 + $0x4c] sm:$0xf]
    %v36 = vld [vmem:[%s1 + $0x50] sm:$0xf]
    %v37 = vld [vmem:[%s1 + $0x54] sm:$0xf]
    %v38 = vld [vmem:[%s1 + $0x58] sm:$0xf]
    %v39 = vld [vmem:[%s1 + $0x5c] sm:$0xf]
    %v40 = vld [vmem:[%s1 + $0x60] sm:$0xf]
    %v41 = vld [vmem:[%s1 + $0x64] sm:$0xf]
    %v42 = vld [vmem:[%s1 + $0x68] sm:$0xf]
    %v43 = vld [vmem:[%s1 + $0x6c] sm:$0xf]
    %v44 = vld [vmem:[%s1 + $0x70] sm:$0xf]
    %v45 = vld [vmem:[%s1 + $0x74] sm:$0xf]
    %v46 = vld [vmem:[%s1 + $0x78] sm:$0xf]
    %v47 = vld [vmem:[%s1 + $0x7c] sm:$0xf]
    %v48 = vld [vmem:[%s1 + $0x80] sm:$0xf]
    %v49 = vld [vmem:[%s1 + $0x84] sm:$0xf]
    %v50 = vld [vmem:[%s1 + $0x88] sm:$0xf]
    %v51 = vld [vmem:[%s1 + $0x8c] sm:$0xf]
    %v52 = vld [vmem:[%s1 + $0x90] sm:$0xf]
    %v53 = vld [vmem:[%s1 + $0x94] sm:$0xf]
    %v54 = vld [vmem:[%s1 + $0x98] sm:$0xf]
    %v55 = vld [vmem:[%s1 + $0x9c] sm:$0xf]
    %v56 = vld [vmem:[%s1 + $0xa0] sm:$0xf]
    %v57 = vld [vmem:[%s1 + $0xa4] sm:$0xf]
    %v58 = vld [vmem:[%s1 + $0xa8] sm:$0xf]
    %v59 = vld [vmem:[%s1 + $0xac] sm:$0xf]
    %v60 = vld [vmem:[%s1 + $0xb0] sm:$0xf]
    %v61 = vld [vmem:[%s1 + $0xb4] sm:$0xf]
    %v62 = vld [vmem:[%s1 + $0xb8] sm:$0xf]
    %v63 = vld [vmem:[%s1 + $0xbc] sm:$0xf]
    %v64 = vld [vmem:[%s1 + $0xc0] sm:$0xf]
    %v65 = vld [vmem:[%s1 + $0xc4] sm:$0xf]
    %v66 = vld [vmem:[%s1 + $0xc8] sm:$0xf]
    %v67 = vld [vmem:[%s1 + $0xcc] sm:$0xf]
    %v68 = vld [vmem:[%s1 + $0xd0] sm:$0xf]
    %v69 = vld [vmem:[%s1 + $0xd4] sm:$0xf]
    %v70 = vld [vmem:[%s1 + $0xd8] sm:$0xf]
    %v71 = vld [vmem:[%s1 + $0xdc] sm:$0xf]
    %v72 = vld [vmem:[%s1 + $0xe0] sm:$0xf]
    %v73 = vld [vmem:[%s1 + $0xe4] sm:$0xf]
    %v74 = vld [vmem:[%s1 + $0xe8] sm:$0xf]
    %v75 = vld [vmem:[%s1 + $0xec] sm:$0xf]
    %v76 = vld [vmem:[%s1 + $0xf0] sm:$0xf]
    %v77 = vld [vmem:[%s1 + $0xf4] sm:$0xf]
    %v78 = vld [vmem:[%s1 + $0xf8] sm:$0xf]
    %v79 = vld [vmem:[%s1 + $0xfc] sm:$0xf]
    %v80 = vld [vmem:[%s1 + $0x100] sm:$0xf]
    %v81 = vld [vmem:[%s1 + $0x104] sm:$0xf]
    %v82 = vld [vmem:[%s1 + $0x108] sm:$0xf]
    %v83 = vld [vmem:[%s1 + $0x10c] sm:$0xf]
    %v84 = vld [vmem:[%s1 + $0x110] sm:$0xf]
    %v85 = vld [vmem:[%s1 + $0x114] sm:$0xf]
    %v86 = vld [vmem:[%s1 + $0x118] sm:$0xf]
    %v87 = vld [vmem:[%s1 + $0x11c] sm:$0xf]
    %v88 = vld [vmem:[%s1 + $0x120] sm:$0xf]
    %v89 = vld [vmem:[%s1 + $0x124] sm:$0xf]
    %v90 = vld [vmem:[%s1 + $0x128] sm:$0xf]
    %v91 = vld [vmem:[%s1 + $0x12c] sm:$0xf]
    %v92 = vld [vmem:[%s1 + $0x130] sm:$0xf]
    %v93 = vld [vmem:[%s1 + $0x134] sm:$0xf]
    %v94 = vld [vmem:[%s1 + $0x138] sm:$0xf]
    %v95 = vld [vmem:[%s1 + $0x13c] sm:$0xf]
    %v96 = vld [vmem:[%s1 + $0x140] sm:$0xf]
    %v97 = vld [vmem:[%s1 + $0x144] sm:$0xf]
    %v98 = vld [vmem:[%s1 + $0x148] sm:$0xf]
    %v99 = vld [vmem:[%s1 + $0x14c] sm:$0xf]
    %v100 = vld [vmem:[%s1 + $0x150] sm:$0xf]
    %v101 = vld [vmem:[%s1 + $0x154] sm:$0xf]
    %v102 = vld [vmem:[%s1 + $0x158] sm:$0xf]
    %v103 = vld [vmem:[%s1 + $0x15c] sm:$0xf]
    %v104 = vld [vmem:[%s1 + $0x160] sm:$0xf]
    %v105 = vld [vmem:[%s1 + $0x164] sm:$0xf]
    %v106 = vld [vmem:[%s1 + $0x168] sm:$0xf]
    %v107 = vld [vmem:[%s1 + $0x16c] sm:$0xf]
    %v108 = vld [vmem:[%s1 + $0x170] sm:$0xf]
    %v109 = vld [vmem:[%s1 + $0x174] sm:$0xf]
    %v110 = vld [vmem:[%s1 + $0x178] sm:$0xf]
    %v111 = vld [vmem:[%s1 + $0x17c] sm:$0xf]
    %v112 = vld [vmem:[%s1 + $0x180] sm:$0xf]
    %v113 = vld [vmem:[%s1 + $0x184] sm:$0xf]
    %v114 = vld [vmem:[%s1 + $0x188] sm:$0xf]
    %v115 = vld [vmem:[%s1 + $0x18c] sm:$0xf]
    %v116 = vld [vmem:[%s1 + $0x190] sm:$0xf]
    %v117 = vld [vmem:[%s1 + $0x194] sm:$0xf]
    %v118 = vld [vmem:[%s1 + $0x198] sm:$0xf]
    %v119 = vld [vmem:[%s1 + $0x19c] sm:$0xf]
    %v120 = vld [vmem:[%s1 + $0x1a0] sm:$0xf]
    %v121 = vld [vmem:[%s1 + $0x1a4] sm:$0xf]
    %v122 = vld [vmem:[%s1 + $0x1a8] sm:$0xf]
    %v123 = vld [vmem:[%s1 + $0x1ac] sm:$0xf]
    %v124 = vld [vmem:[%s1 + $0x1b0] sm:$0xf]
    %v125 = vld [vmem:[%s1 + $0x1b4] sm:$0xf]
    %v126 = vld [vmem:[%s1 + $0x1b8] sm:$0xf]
    %v127 = vld [vmem:[%s1 + $0x1bc] sm:$0xf]
    %v128 = vld [vmem:[%s1 + $0x1c0] sm:$0xf]
    %v129 = vld [vmem:[%s1 + $0x1c4] sm:$0xf]
    %v130 = vld [vmem:[%s1 + $0x1c8] sm:$0xf]
    %v131 = vld [vmem:[%s1 + $0x1cc] sm:$0xf]
    %v132 = vld [vmem:[%s1 + $0x1d0] sm:$0xf]
    %v133 = vld [vmem:[%s1 + $0x1d4] sm:$0xf]
    %v134 = vld [vmem:[%s1 + $0x1d8] sm:$0xf]
    %v135 = vld [vmem:[%s1 + $0x1dc] sm:$0xf]
    %v136 = vld [vmem:[%s1 + $0x1e0] sm:$0xf]
    %v137 = vld [vmem:[%s1 + $0x1e4] sm:$0xf]
    %v138 = vld [vmem:[%s1 + $0x1e8] sm:$0xf]
    %v139 = vld [vmem:[%s1 + $0x1ec] sm:$0xf]
    %v140 = vld [vmem:[%s1 + $0x1f0] sm:$0xf]
    %v141 = vld [vmem:[%s1 + $0x1f4] sm:$0xf]
    %v142 = vld [vmem:[%s1 + $0x1f8] sm:$0xf]
    %v143 = vld [vmem:[%s1 + $0x1fc] sm:$0xf]
    %v144 = vld [vmem:[%s2] sm:$0x1]
    %v146 = vperm.slane %v144, 0
    %149 = vst [vmem:[#allocation1] ss:$9 sm:$0xff] %v15
    %v150 = vld [vmem:[#allocation1] sm:$0xff]
    %v151 = vld [vmem:[#allocation1 + $0x9] sm:$0xff]
    %v152 = vld [vmem:[#allocation1 + $0x12] sm:$0xff]
    %v153 = vld [vmem:[#allocation1 + $0x1b] sm:$0xff]
    %v154 = vld [vmem:[#allocation1 + $0x24] sm:$0xff]
    %v155 = vld [vmem:[#allocation1 + $0x2d] sm:$0xff]
    %v156 = vld [vmem:[#allocation1 + $0x36] sm:$0xff]
    %v157 = vld [vmem:[#allocation1 + $0x3f] sm:$0xff]
    %v294 = vunpack.c.l.b16 %v16
    %v295 = vunpack.c.l.b16 %v17
    %v296 = vunpack.c.l.b16 %v18
    %v297 = vunpack.c.l.b16 %v19
    %v298 = vunpack.c.l.b16 %v20
    %v299 = vunpack.c.l.b16 %v21
    %v300 = vunpack.c.l.b16 %v22
    %v301 = vunpack.c.l.b16 %v23
    %v302 = vunpack.c.l.b16 %v24
    %v303 = vunpack.c.l.b16 %v25
    %v304 = vunpack.c.l.b16 %v26
    %v305 = vunpack.c.l.b16 %v27
    %v306 = vunpack.c.l.b16 %v28
    %v307 = vunpack.c.l.b16 %v29
    %v308 = vunpack.c.l.b16 %v30
    %v309 = vunpack.c.l.b16 %v31
    %v310 = vunpack.c.l.b16 %v32
    %v311 = vunpack.c.l.b16 %v33
    %v312 = vunpack.c.l.b16 %v34
    %v313 = vunpack.c.l.b16 %v35
    %v314 = vunpack.c.l.b16 %v36
    %v315 = vunpack.c.l.b16 %v37
    %v316 = vunpack.c.l.b16 %v38
    %v317 = vunpack.c.l.b16 %v39
    %v318 = vunpack.c.l.b16 %v40
    %v319 = vunpack.c.l.b16 %v41
    %v320 = vunpack.c.l.b16 %v42
    %v321 = vunpack.c.l.b16 %v43
    %v322 = vunpack.c.l.b16 %v44
    %v323 = vunpack.c.l.b16 %v45
    %v324 = vunpack.c.l.b16 %v46
    %v325 = vunpack.c.l.b16 %v47
    %v326 = vunpack.c.l.b16 %v48
    %v327 = vunpack.c.l.b16 %v49
    %v328 = vunpack.c.l.b16 %v50
    %v329 = vunpack.c.l.b16 %v51
    %v330 = vunpack.c.l.b16 %v52
    %v331 = vunpack.c.l.b16 %v53
    %v332 = vunpack.c.l.b16 %v54
    %v333 = vunpack.c.l.b16 %v55
    %v334 = vunpack.c.l.b16 %v56
    %v335 = vunpack.c.l.b16 %v57
    %v336 = vunpack.c.l.b16 %v58
    %v337 = vunpack.c.l.b16 %v59
    %v338 = vunpack.c.l.b16 %v60
    %v339 = vunpack.c.l.b16 %v61
    %v340 = vunpack.c.l.b16 %v62
    %v341 = vunpack.c.l.b16 %v63
    %v342 = vunpack.c.l.b16 %v64
    %v343 = vunpack.c.l.b16 %v65
    %v344 = vunpack.c.l.b16 %v66
    %v345 = vunpack.c.l.b16 %v67
    %v346 = vunpack.c.l.b16 %v68
    %v347 = vunpack.c.l.b16 %v69
    %v348 = vunpack.c.l.b16 %v70
    %v349 = vunpack.c.l.b16 %v71
    %v350 = vunpack.c.l.b16 %v72
    %v351 = vunpack.c.l.b16 %v73
    %v352 = vunpack.c.l.b16 %v74
    %v353 = vunpack.c.l.b16 %v75
    %v354 = vunpack.c.l.b16 %v76
    %v355 = vunpack.c.l.b16 %v77
    %v356 = vunpack.c.l.b16 %v78
    %v357 = vunpack.c.l.b16 %v79
    %v358 = vunpack.c.l.b16 %v80
    %v359 = vunpack.c.l.b16 %v81
    %v360 = vunpack.c.l.b16 %v82
    %v361 = vunpack.c.l.b16 %v83
    %v362 = vunpack.c.l.b16 %v84
    %v363 = vunpack.c.l.b16 %v85
    %v364 = vunpack.c.l.b16 %v86
    %v365 = vunpack.c.l.b16 %v87
    %v366 = vunpack.c.l.b16 %v88
    %v367 = vunpack.c.l.b16 %v89
    %v368 = vunpack.c.l.b16 %v90
    %v369 = vunpack.c.l.b16 %v91
    %v370 = vunpack.c.l.b16 %v92
    %v371 = vunpack.c.l.b16 %v93
    %v372 = vunpack.c.l.b16 %v94
    %v373 = vunpack.c.l.b16 %v95
    %v374 = vunpack.c.l.b16 %v96
    %v375 = vunpack.c.l.b16 %v97
    %v376 = vunpack.c.l.b16 %v98
    %v377 = vunpack.c.l.b16 %v99
    %v378 = vunpack.c.l.b16 %v100
    %v379 = vunpack.c.l.b16 %v101
    %v380 = vunpack.c.l.b16 %v102
    %v381 = vunpack.c.l.b16 %v103
    %v382 = vunpack.c.l.b16 %v104
    %v383 = vunpack.c.l.b16 %v105
    %v384 = vunpack.c.l.b16 %v106
    %v385 = vunpack.c.l.b16 %v107
    %v386 = vunpack.c.l.b16 %v108
    %v387 = vunpack.c.l.b16 %v109
    %v388 = vunpack.c.l.b16 %v110
    %v389 = vunpack.c.l.b16 %v111
    %v390 = vunpack.c.l.b16 %v112
    %v391 = vunpack.c.l.b16 %v113
    %v392 = vunpack.c.l.b16 %v114
    %v393 = vunpack.c.l.b16 %v115
    %v394 = vunpack.c.l.b16 %v116
    %v395 = vunpack.c.l.b16 %v117
    %v396 = vunpack.c.l.b16 %v118
    %v397 = vunpack.c.l.b16 %v119
    %v398 = vunpack.c.l.b16 %v120
    %v399 = vunpack.c.l.b16 %v121
    %v400 = vunpack.c.l.b16 %v122
    %v401 = vunpack.c.l.b16 %v123
    %v402 = vunpack.c.l.b16 %v124
    %v403 = vunpack.c.l.b16 %v125
    %v404 = vunpack.c.l.b16 %v126
    %v405 = vunpack.c.l.b16 %v127
    %v406 = vunpack.c.l.b16 %v128
    %v407 = vunpack.c.l.b16 %v129
    %v408 = vunpack.c.l.b16 %v130
    %v409 = vunpack.c.l.b16 %v131
    %v410 = vunpack.c.l.b16 %v132
    %v411 = vunpack.c.l.b16 %v133
    %v412 = vunpack.c.l.b16 %v134
    %v413 = vunpack.c.l.b16 %v135
    %v414 = vunpack.c.l.b16 %v136
    %v415 = vunpack.c.l.b16 %v137
    %v416 = vunpack.c.l.b16 %v138
    %v417 = vunpack.c.l.b16 %v139
    %v418 = vunpack.c.l.b16 %v140
    %v419 = vunpack.c.l.b16 %v141
    %v420 = vunpack.c.l.b16 %v142
    %v421 = vunpack.c.l.b16 %v143
    %v422 = vpack.c.b16 %v295, %v294
    %v423 = vpack.c.b16 %v297, %v296
    %v424 = vpack.c.b16 %v299, %v298
    %v425 = vpack.c.b16 %v301, %v300
    %v426 = vpack.c.b16 %v303, %v302
    %v427 = vpack.c.b16 %v305, %v304
    %v428 = vpack.c.b16 %v307, %v306
    %v429 = vpack.c.b16 %v309, %v308
    %v430 = vpack.c.b16 %v311, %v310
    %v431 = vpack.c.b16 %v313, %v312
    %v432 = vpack.c.b16 %v315, %v314
    %v433 = vpack.c.b16 %v317, %v316
    %v434 = vpack.c.b16 %v319, %v318
    %v435 = vpack.c.b16 %v321, %v320
    %v436 = vpack.c.b16 %v323, %v322
    %v437 = vpack.c.b16 %v325, %v324
    %v438 = vpack.c.b16 %v327, %v326
    %v439 = vpack.c.b16 %v329, %v328
    %v440 = vpack.c.b16 %v331, %v330
    %v441 = vpack.c.b16 %v333, %v332
    %v442 = vpack.c.b16 %v335, %v334
    %v443 = vpack.c.b16 %v337, %v336
    %v444 = vpack.c.b16 %v339, %v338
    %v445 = vpack.c.b16 %v341, %v340
    %v446 = vpack.c.b16 %v343, %v342
    %v447 = vpack.c.b16 %v345, %v344
    %v448 = vpack.c.b16 %v347, %v346
    %v449 = vpack.c.b16 %v349, %v348
    %v450 = vpack.c.b16 %v351, %v350
    %v451 = vpack.c.b16 %v353, %v352
    %v452 = vpack.c.b16 %v355, %v354
    %v453 = vpack.c.b16 %v357, %v356
    %v454 = vpack.c.b16 %v359, %v358
    %v455 = vpack.c.b16 %v361, %v360
    %v456 = vpack.c.b16 %v363, %v362
    %v457 = vpack.c.b16 %v365, %v364
    %v458 = vpack.c.b16 %v367, %v366
    %v459 = vpack.c.b16 %v369, %v368
    %v460 = vpack.c.b16 %v371, %v370
    %v461 = vpack.c.b16 %v373, %v372
    %v462 = vpack.c.b16 %v375, %v374
    %v463 = vpack.c.b16 %v377, %v376
    %v464 = vpack.c.b16 %v379, %v378
    %v465 = vpack.c.b16 %v381, %v380
    %v466 = vpack.c.b16 %v383, %v382
    %v467 = vpack.c.b16 %v385, %v384
    %v468 = vpack.c.b16 %v387, %v386
    %v469 = vpack.c.b16 %v389, %v388
    %v470 = vpack.c.b16 %v391, %v390
    %v471 = vpack.c.b16 %v393, %v392
    %v472 = vpack.c.b16 %v395, %v394
    %v473 = vpack.c.b16 %v397, %v396
    %v474 = vpack.c.b16 %v399, %v398
    %v475 = vpack.c.b16 %v401, %v400
    %v476 = vpack.c.b16 %v403, %v402
    %v477 = vpack.c.b16 %v405, %v404
    %v478 = vpack.c.b16 %v407, %v406
    %v479 = vpack.c.b16 %v409, %v408
    %v480 = vpack.c.b16 %v411, %v410
    %v481 = vpack.c.b16 %v413, %v412
    %v482 = vpack.c.b16 %v415, %v414
    %v483 = vpack.c.b16 %v417, %v416
    %v484 = vpack.c.b16 %v419, %v418
    %v485 = vpack.c.b16 %v421, %v420
    %550 = vmatpush.bf16.msra.mxu0 %v429
    %551 = vmatpush.bf16.msra.mxu0 %v428
    %552 = vmatpush.bf16.msra.mxu0 %v427
    %553 = vmatpush.bf16.msra.mxu0 %v426
    %554 = vmatpush.bf16.msra.mxu0 %v425
    %555 = vmatpush.bf16.msra.mxu0 %v424
    %556 = vmatpush.bf16.msra.mxu0 %v423
    %557 = vmatpush.bf16.msra.mxu0 %v422
    %558 = vmatmul.bf16.gmra.mxu0 %v150
    %v559 = vpop.f32.mrf.mxu0
    %v560 = vadd.f32 %v146, %v559
    %v561 = vpop.f32.mrf.mxu0
    %562 = vdwg.mxu0
    %563 = vmatpush.bf16.msra.mxu0 %v437
    %564 = vmatpush.bf16.msra.mxu0 %v436
    %565 = vmatpush.bf16.msra.mxu0 %v435
    %566 = vmatpush.bf16.msra.mxu0 %v434
    %567 = vmatpush.bf16.msra.mxu0 %v433
    %568 = vmatpush.bf16.msra.mxu0 %v432
    %569 = vmatpush.bf16.msra.mxu0 %v431
    %570 = vmatpush.bf16.msra.mxu0 %v430
    %571 = vmatmul.bf16.gmra.mxu0 %v151
    %v572 = vpop.f32.mrf.mxu0
    %v573 = vadd.f32 %v560, %v572
    %v574 = vpop.f32.mrf.mxu0
    %575 = vdwg.mxu0
    %576 = vmatpush.bf16.msra.mxu0 %v445
    %577 = vmatpush.bf16.msra.mxu0 %v444
    %578 = vmatpush.bf16.msra.mxu0 %v443
    %579 = vmatpush.bf16.msra.mxu0 %v442
    %580 = vmatpush.bf16.msra.mxu0 %v441
    %581 = vmatpush.bf16.msra.mxu0 %v440
    %582 = vmatpush.bf16.msra.mxu0 %v439
    %583 = vmatpush.bf16.msra.mxu0 %v438
    %584 = vmatmul.bf16.gmra.mxu0 %v152
    %v585 = vpop.f32.mrf.mxu0
    %v586 = vadd.f32 %v573, %v585
    %v587 = vpop.f32.mrf.mxu0
    %588 = vdwg.mxu0
    %589 = vmatpush.bf16.msra.mxu0 %v453
    %590 = vmatpush.bf16.msra.mxu0 %v452
    %591 = vmatpush.bf16.msra.mxu0 %v451
    %592 = vmatpush.bf16.msra.mxu0 %v450
    %593 = vmatpush.bf16.msra.mxu0 %v449
    %594 = vmatpush.bf16.msra.mxu0 %v448
    %595 = vmatpush.bf16.msra.mxu0 %v447
    %596 = vmatpush.bf16.msra.mxu0 %v446
    %597 = vmatmul.bf16.gmra.mxu0 %v153
    %v598 = vpop.f32.mrf.mxu0
    %v599 = vadd.f32 %v586, %v598
    %v600 = vpop.f32.mrf.mxu0
    %601 = vdwg.mxu0
    %602 = vmatpush.bf16.msra.mxu0 %v461
    %603 = vmatpush.bf16.msra.mxu0 %v460
    %604 = vmatpush.bf16.msra.mxu0 %v459
    %605 = vmatpush.bf16.msra.mxu0 %v458
    %606 = vmatpush.bf16.msra.mxu0 %v457
    %607 = vmatpush.bf16.msra.mxu0 %v456
    %608 = vmatpush.bf16.msra.mxu0 %v455
    %609 = vmatpush.bf16.msra.mxu0 %v454
    %610 = vmatmul.bf16.gmra.mxu0 %v154
    %v611 = vpop.f32.mrf.mxu0
    %v612 = vadd.f32 %v599, %v611
    %v613 = vpop.f32.mrf.mxu0
    %614 = vdwg.mxu0
    %615 = vmatpush.bf16.msra.mxu0 %v469
    %616 = vmatpush.bf16.msra.mxu0 %v468
    %617 = vmatpush.bf16.msra.mxu0 %v467
    %618 = vmatpush.bf16.msra.mxu0 %v466
    %619 = vmatpush.bf16.msra.mxu0 %v465
    %620 = vmatpush.bf16.msra.mxu0 %v464
    %621 = vmatpush.bf16.msra.mxu0 %v463
    %622 = vmatpush.bf16.msra.mxu0 %v462
    %623 = vmatmul.bf16.gmra.mxu0 %v155
    %v624 = vpop.f32.mrf.mxu0
    %v625 = vadd.f32 %v612, %v624
    %v626 = vpop.f32.mrf.mxu0
    %627 = vdwg.mxu0
    %628 = vmatpush.bf16.msra.mxu0 %v477
    %629 = vmatpush.bf16.msra.mxu0 %v476
    %630 = vmatpush.bf16.msra.mxu0 %v475
    %631 = vmatpush.bf16.msra.mxu0 %v474
    %632 = vmatpush.bf16.msra.mxu0 %v473
    %633 = vmatpush.bf16.msra.mxu0 %v472
    %634 = vmatpush.bf16.msra.mxu0 %v471
    %635 = vmatpush.bf16.msra.mxu0 %v470
    %636 = vmatmul.bf16.gmra.mxu0 %v156
    %v637 = vpop.f32.mrf.mxu0
    %v638 = vadd.f32 %v625, %v637
    %v639 = vpop.f32.mrf.mxu0
    %640 = vdwg.mxu0
    %641 = vmatpush.bf16.msra.mxu0 %v485
    %642 = vmatpush.bf16.msra.mxu0 %v484
    %643 = vmatpush.bf16.msra.mxu0 %v483
    %644 = vmatpush.bf16.msra.mxu0 %v482
    %645 = vmatpush.bf16.msra.mxu0 %v481
    %646 = vmatpush.bf16.msra.mxu0 %v480
    %647 = vmatpush.bf16.msra.mxu0 %v479
    %648 = vmatpush.bf16.msra.mxu0 %v478
    %649 = vmatmul.bf16.gmra.mxu0 %v157
    %v650 = vpop.f32.mrf.mxu0
    %v651 = vadd.f32 %v638, %v650
    %v652 = vpop.f32.mrf.mxu0
    %653 = vdwg.mxu0
    %vm654 = vcmask 74752
    %655 = vst.msk [vmem:[#allocation2] sm:$0x3] %vm654, %v651
    // Predicated region
    $region14: #{simple_cnn_forward.7} parent=1 // pred_check
      _
    $region15: #{simple_cnn_forward.7} parent=1 // pred_check_branch
      %657 = sbr.rel (0) target = $region17
    $region16: #{simple_cnn_forward.7} parent=1 // pred_region
      %659 = vsyncadd [#allocation3], 0
      %s661 = sshll.u32 [#allocation2], 4
      %s662 = int_to_ptr.vmem [resolvable:$true] %s661
      %s663 = sshll.u32 %s3, 4
      %s664 = int_to_ptr.hbm [resolvable:$true] %s663
      %666 = dma.vmem_to_hbm [thread:$0]  %s662, 32, %s664, [#allocation3]
    $region17: #{simple_cnn_forward.7} parent=1 // pred_fallthru
      _
    // Predicated region
    $region18: #{simple_cnn_forward.7} parent=1 // pred_check
      _
    $region19: #{simple_cnn_forward.7} parent=1 // pred_check_branch
      %668 = sbr.rel (0) target = $region21
    $region20: #{simple_cnn_forward.7} parent=1 // pred_region
      %670 = dma.done [#allocation3], 32
    $region21: #{simple_cnn_forward.7} parent=1 // pred_fallthru
      _
    %671 = vsyncpa [#allocation3], 1

</llo_original>
